<compile_context>
chip_gen: v7x
topology: tpu7x:2x2x1
jax: 0.10.0
libtpu: 0.0.40
codegen_flags: <defaults>
</compile_context>

<pallas_src>
import functools

import jax
import jax.numpy as jnp
from jax.experimental import pallas as pl
from jax.experimental.pallas import tpu as pltpu

LEAKY_SLOPE = 0.2
BN_EPS = 1e-5


def _conv_stats_kernel(x_ref, w_ref, y_ref, sum_ref, sq_ref, *, group_k):
    """3x3 conv (bf16 MXU operands, f32 accum) + per-tile BN partial stats.

    x_ref  : (1, TH+2, Wp, Cin)  bf16 zero-padded input row band (incl. halo)
    w_ref  : (3, 3*Cin, Cout) bf16 if group_k else (9, Cin, Cout) bf16
    y_ref  : (1, TH, W, Cout)    bf16 conv output tile
    sum_ref: (1, 1, Cout)        f32  per-tile sum over TH*W
    sq_ref : (1, 1, Cout)        f32  per-tile sum of squares over TH*W
    """
    _, _, Wp, Cin = x_ref.shape
    _, TH, W, Cout = y_ref.shape
    rows = TH * Wp

    xb = x_ref[0]                                        # (TH+2, Wp, Cin) bf16
    # dy taps are pure leading-dim slices of the band (no sublane re-tiling).
    bands = [xb[dy:dy + TH].reshape(rows, Cin) for dy in range(3)]

    # dx (column) shift is applied to the f32 *product* with pltpu.roll: the
    # wrapped rows only land in padded columns (w >= W since Wp >= W+2), which
    # are sliced away below.
    acc = jnp.zeros((rows, Cout), jnp.float32)
    if group_k:
        # Partial im2col over dy: K = 3*Cin (>= 256 at FastGAN widths) fills
        # the 256-deep MXU on v6e / v7x with 3 matmuls instead of 9.
        slab = jnp.concatenate(bands, axis=-1)           # (rows, 3*Cin) bf16
        for dx in range(3):
            prod = jnp.dot(slab, w_ref[dx], preferred_element_type=jnp.float32)
            if dx:
                prod = pltpu.roll(prod, shift=rows - dx, axis=0)
            acc = acc + prod
    else:
        for dy in range(3):
            for dx in range(3):
                prod = jnp.dot(bands[dy], w_ref[dy * 3 + dx],
                               preferred_element_type=jnp.float32)
                if dx:
                    prod = pltpu.roll(prod, shift=rows - dx, axis=0)
                acc = acc + prod

    y = acc.reshape(TH, Wp, Cout)[:, :W, :]              # drop padded-W cols (f32)
    y_ref[0] = y.astype(y_ref.dtype)                     # bf16 to HBM

    # Fused BN batch-stat partials in f32 (no second pass over y).
    ps = jnp.sum(y, axis=0)                              # (W, Cout)
    sum_ref[0] = jnp.sum(ps, axis=0, keepdims=True)
    pq = jnp.sum(y * y, axis=0)
    sq_ref[0] = jnp.sum(pq, axis=0, keepdims=True)


def _norm_act_pool_kernel(y_ref, scale_ref, shift_ref, o_ref):
    """BN affine + LeakyReLU(0.2) + 2x2 average pool on one row tile.

    y_ref    : (1, TH, W, Cout)       bf16 conv output tile
    scale_ref: (1, Cout)              f32  gamma / sqrt(var + eps)
    shift_ref: (1, Cout)              f32  beta - mean * scale
    o_ref    : (1, TH//2, W//2, Cout) f32
    """
    _, TH, W, Cout = y_ref.shape
    Hot, Wo = TH // 2, W // 2

    sc = scale_ref[...].reshape(1, 1, Cout)
    sh = shift_ref[...].reshape(1, 1, Cout)
    a = y_ref[0].astype(jnp.float32) * sc + sh           # elementwise math in f32
    a = jnp.where(a >= 0, a, LEAKY_SLOPE * a)

    a = a.reshape(Hot, 2, W, Cout)                       # pool H: leading regroup
    a = a[:, 0] + a[:, 1]                                # (Hot, W, Cout)
    a = a.reshape(Hot, Wo, 2, Cout)                      # pool W
    a = (a[:, :, 0, :] + a[:, :, 1, :]) * 0.25
    o_ref[0] = a.astype(o_ref.dtype)


def _vmem_limit_bytes():
    """Generation-aware VMEM limit: 75% of physical, capped at 100 MiB
    (v5e/v6e: ~96-100 MiB of 128 MiB; v7x: 48 MiB of its 64 MiB)."""
    try:
        cap = int(pltpu.get_tpu_info().vmem_capacity_bytes)
    except Exception:
        cap = 64 << 20                                   # conservative fallback
    return int(min(cap * 3 // 4, 100 << 20))


def _p1_step_bytes(th, wp, w, cin, cout):
    """Real pass-1 per-grid-step working set, in-kernel temporaries included."""
    rows = th * wp
    band_in = (th + 2) * wp * cin * 2        # bf16 input block
    y_out = th * w * cout * 2                # bf16 y block
    stats = 2 * cout * 4
    weights = 9 * cin * cout * 2             # resident (constant index_map)
    slab = 3 * rows * cin * 2                # dy band slices / K-grouped slab
    prod = 2 * rows * cout * 4               # matmul product + rolled copy
    acc = rows * cout * 4
    return 2 * (band_in + y_out + stats) + weights + slab + prod + acc


def _pick_tile_h(H, wp, w, cin, cout, budget):
    """Largest even divisor of H whose pass-1 working set fits `budget`."""
    best = 2
    for th in range(2, H + 1, 2):
        if H % th == 0 and _p1_step_bytes(th, wp, w, cin, cout) <= budget:
            best = th
    return best


def discriminator_block_forward(x_nchw, w_oihw, gamma, beta):
    """x_nchw: (N, Cin, H, W); w_oihw: (Cout, Cin, 3, 3) spectral-normalized."""
    N, Cin, H, W = x_nchw.shape
    Cout = w_oihw.shape[0]
    assert H % 2 == 0 and W % 2 == 0, "2x2 avg-pool expects even H and W"
    Ho, Wo = H // 2, W // 2
    Wp = ((W + 2 + 15) // 16) * 16           # bf16 sublane-tile aligned padded width
    # The product-roll trick relies on wrapped rows landing in dropped padded
    # columns, i.e. Wp >= W + 2.
    assert Wp >= W + 2

    vmem_limit = _vmem_limit_bytes()
    TH = _pick_tile_h(H, Wp, W, Cin, Cout, budget=int(vmem_limit * 0.6))
    Ht = H // TH
    group_k = (Cin % 128 == 0)               # lane-aligned deep-K path (v6e/v7x)

    # ---- glue: layout, padding, bf16 casts, overlapping row bands -----------
    # TODO(synk): keep the whole network NHWC (and fold the zero-padding into a
    # manual-DMA prologue) to drop these transposes and the padded HBM copy.
    x_nhwc = jnp.transpose(x_nchw, (0, 2, 3, 1)).astype(jnp.bfloat16)
    xp = jnp.pad(x_nhwc, ((0, 0), (1, 1), (1, Wp - W - 1), (0, 0)))
    row_idx = jnp.arange(Ht)[:, None] * TH + jnp.arange(TH + 2)[None, :]
    xbands = xp[:, row_idx].reshape(N * Ht, TH + 2, Wp, Cin)   # halo-duplicated bands

    if group_k:
        w_k = jnp.transpose(w_oihw, (3, 2, 1, 0)).reshape(3, 3 * Cin, Cout)
        w_spec = pl.BlockSpec((3, 3 * Cin, Cout), lambda n, h: (0, 0, 0))
    else:
        w_k = jnp.transpose(w_oihw, (2, 3, 1, 0)).reshape(9, Cin, Cout)
        w_spec = pl.BlockSpec((9, Cin, Cout), lambda n, h: (0, 0, 0))
    w_k = w_k.astype(jnp.bfloat16)

    # ---- pass 1: conv + per-tile BN partial sums -----------------------------
    y, ysum, ysq = pl.pallas_call(
        functools.partial(_conv_stats_kernel, group_k=group_k),
        out_shape=(
            jax.ShapeDtypeStruct((N, H, W, Cout), jnp.bfloat16),
            jax.ShapeDtypeStruct((N * Ht, 1, Cout), jnp.float32),
            jax.ShapeDtypeStruct((N * Ht, 1, Cout), jnp.float32),
        ),
        grid=(N, Ht),
        in_specs=[
            pl.BlockSpec((1, TH + 2, Wp, Cin), lambda n, h: (n * Ht + h, 0, 0, 0)),
            w_spec,
        ],
        out_specs=(
            pl.BlockSpec((1, TH, W, Cout), lambda n, h: (n, h, 0, 0)),
            pl.BlockSpec((1, 1, Cout), lambda n, h: (n * Ht + h, 0, 0)),
            pl.BlockSpec((1, 1, Cout), lambda n, h: (n * Ht + h, 0, 0)),
        ),
        compiler_params=pltpu.CompilerParams(
            dimension_semantics=("parallel", "parallel"),
            vmem_limit_bytes=vmem_limit),
    )(xbands, w_k)

    # ---- tiny (Cout,)-sized BN stat math: plain XLA between the passes -------
    m = float(N * H * W)
    mean = ysum.sum(axis=0) / m                                 # (1, Cout)
    var = jnp.maximum(ysq.sum(axis=0) / m - mean * mean, 0.0)   # biased var
    scale = gamma.reshape(1, Cout).astype(jnp.float32) * jax.lax.rsqrt(var + BN_EPS)
    shift = beta.reshape(1, Cout).astype(jnp.float32) - mean * scale

    # ---- pass 2: normalize + LeakyReLU + 2x2 average pool --------------------
    # TODO(synk): fuse this pass into the *next* block's conv pass 1 once BN
    # stats are available, removing a full read+write of y.
    out_nhwc = pl.pallas_call(
        _norm_act_pool_kernel,
        out_shape=jax.ShapeDtypeStruct((N, Ho, Wo, Cout), jnp.float32),
        grid=(N, Ht),
        in_specs=[
            pl.BlockSpec((1, TH, W, Cout), lambda n, h: (n, h, 0, 0)),
            pl.BlockSpec((1, Cout), lambda n, h: (0, 0)),
            pl.BlockSpec((1, Cout), lambda n, h: (0, 0)),
        ],
        out_specs=pl.BlockSpec((1, TH // 2, Wo, Cout), lambda n, h: (n, h, 0, 0)),
        compiler_params=pltpu.CompilerParams(
            dimension_semantics=("parallel", "parallel"),
            vmem_limit_bytes=vmem_limit),
    )(y, scale, shift)

    return jnp.transpose(out_nhwc, (0, 3, 1, 2))                # back to NCHW


def spectral_normalize(w_oihw, key, n_iter=1, eps=1e-12):
    """Mimics torch spectral_norm's first forward: one power iteration from a
    deterministic random u, then W / sigma (u/v buffer updates are host glue)."""
    cout = w_oihw.shape[0]
    w_mat = w_oihw.reshape(cout, -1)
    u = jax.random.normal(key, (cout,), jnp.float32)
    u = u / (jnp.linalg.norm(u) + eps)
    v = None
    for _ in range(n_iter):
        v = w_mat.T @ u
        v = v / (jnp.linalg.norm(v) + eps)
        u = w_mat @ v
        u = u / (jnp.linalg.norm(u) + eps)
    sigma = u @ (w_mat @ v)
    return w_oihw / sigma


def _reference(x_nchw, w_oihw, gamma, beta):
    """Pure-JAX (f32) reference of the same forward for a correctness check."""
    y = jax.lax.conv_general_dilated(
        x_nchw, w_oihw, window_strides=(1, 1), padding=((1, 1), (1, 1)),
        dimension_numbers=("NCHW", "OIHW", "NCHW"))
    mean = y.mean(axis=(0, 2, 3), keepdims=True)
    var = ((y - mean) ** 2).mean(axis=(0, 2, 3), keepdims=True)
    yn = (y - mean) * jax.lax.rsqrt(var + BN_EPS)
    yn = yn * gamma.reshape(1, -1, 1, 1) + beta.reshape(1, -1, 1, 1)
    a = jnp.where(yn >= 0, yn, LEAKY_SLOPE * yn)
    N, C, H, W = a.shape
    return a.reshape(N, C, H // 2, 2, W // 2, 2).mean(axis=(3, 5))


if __name__ == "__main__":
    key = jax.random.PRNGKey(0)
    k_x, k_w, k_u = jax.random.split(key, 3)

    N, Cin, Cout, H, W = 2, 4, 8, 16, 16

    x = jax.random.normal(k_x, (N, Cin, H, W), jnp.float32)

    # Deterministic Conv2d-like init (uniform in [-1/sqrt(fan_in), 1/sqrt(fan_in)])
    fan_in = Cin * 3 * 3
    bound = 1.0 / (fan_in ** 0.5)
    w = jax.random.uniform(k_w, (Cout, Cin, 3, 3), jnp.float32, -bound, bound)
    w_sn = spectral_normalize(w, k_u)

    # BatchNorm2d init: gamma=1, beta=0
    gamma = jnp.ones((Cout,), jnp.float32)
    beta = jnp.zeros((Cout,), jnp.float32)

    out = jax.jit(discriminator_block_forward)(x, w_sn, gamma, beta)
    out = jax.block_until_ready(out)

    ref = _reference(x, w_sn, gamma, beta)
    assert out.shape == (N, Cout, H // 2, W // 2), out.shape
    max_err = float(jnp.max(jnp.abs(out - ref)))
    # bf16 conv operands and bf16 inter-pass y -> slightly loose tolerance.
    assert jnp.allclose(out, ref, atol=3e-2, rtol=3e-2), f"max_err={max_err}"

    print("KERNEL_OK")
</pallas_src>

<mosaic_0001>
module attributes {stable_mosaic.version = 11 : i64} {
  func.func @_conv_stats_kernel(%arg0: i32, %arg1: i32, %arg2: memref<1x18x32x4xbf16, #tpu.memory_space<vmem>>, %arg3: memref<9x4x8xbf16, #tpu.memory_space<vmem>>, %arg4: memref<1x16x16x8xbf16, #tpu.memory_space<vmem>>, %arg5: memref<1x1x8xf32, #tpu.memory_space<vmem>>, %arg6: memref<1x1x8xf32, #tpu.memory_space<vmem>>) attributes {dimension_semantics = [#tpu.dimension_semantics<parallel>, #tpu.dimension_semantics<parallel>], iteration_bounds = array<i64: 2, 1>, scalar_prefetch = 0 : i64, scratch_operands = 0 : i64, tpu.core_type = #tpu.core_type<tc>, window_params = [{transform_indices = @transform_0, window_bounds = array<i64: 1, 18, 32, 4>}, {pipeline_mode = #tpu.pipeline_mode<synchronous>, transform_indices = @transform_1, window_bounds = array<i64: 9, 4, 8>}, {transform_indices = @transform_2, window_bounds = array<i64: 1, 16, 16, 8>}, {transform_indices = @transform_3, window_bounds = array<i64: 1, 1, 8>}, {transform_indices = @transform_4, window_bounds = array<i64: 1, 1, 8>}]} {
    %c0 = arith.constant 0 : index
    %c0_0 = arith.constant 0 : index
    %c0_1 = arith.constant 0 : index
    %c0_2 = arith.constant 0 : index
    %0 = vector.load %arg2[%c0, %c0_0, %c0_1, %c0_2] : memref<1x18x32x4xbf16, #tpu.memory_space<vmem>>, vector<1x18x32x4xbf16>
    %1 = vector.shape_cast %0 : vector<1x18x32x4xbf16> to vector<18x32x4xbf16>
    %2 = vector.extract_strided_slice %1 {offsets = [0, 0, 0], sizes = [16, 32, 4], strides = [1, 1, 1]} : vector<18x32x4xbf16> to vector<16x32x4xbf16>
    %3 = vector.shape_cast %2 : vector<16x32x4xbf16> to vector<512x4xbf16>
    %4 = vector.extract_strided_slice %1 {offsets = [1, 0, 0], sizes = [16, 32, 4], strides = [1, 1, 1]} : vector<18x32x4xbf16> to vector<16x32x4xbf16>
    %5 = vector.shape_cast %4 : vector<16x32x4xbf16> to vector<512x4xbf16>
    %6 = vector.extract_strided_slice %1 {offsets = [2, 0, 0], sizes = [16, 32, 4], strides = [1, 1, 1]} : vector<18x32x4xbf16> to vector<16x32x4xbf16>
    %7 = vector.shape_cast %6 : vector<16x32x4xbf16> to vector<512x4xbf16>
    %cst = arith.constant 0.000000e+00 : f32
    %8 = vector.broadcast %cst : f32 to vector<512x8xf32>
    %c0_3 = arith.constant 0 : index
    %c0_4 = arith.constant 0 : index
    %c0_5 = arith.constant 0 : index
    %9 = vector.load %arg3[%c0_3, %c0_4, %c0_5] : memref<9x4x8xbf16, #tpu.memory_space<vmem>>, vector<1x4x8xbf16>
    %10 = vector.shape_cast %9 : vector<1x4x8xbf16> to vector<4x8xbf16>
    %cst_6 = arith.constant dense<0.000000e+00> : vector<512x8xf32>
    %11 = tpu.matmul %3, %10, %cst_6 {dimension_numbers = #tpu.dot_dimension_numbers<[1], [0], [0], [1], [0, 0, 1, 1], [], []>} : vector<512x4xbf16>, vector<4x8xbf16>, vector<512x8xf32> -> vector<512x8xf32>
    %12 = arith.addf %8, %11 : vector<512x8xf32>
    %c1 = arith.constant 1 : index
    %c0_7 = arith.constant 0 : index
    %c0_8 = arith.constant 0 : index
    %13 = vector.load %arg3[%c1, %c0_7, %c0_8] : memref<9x4x8xbf16, #tpu.memory_space<vmem>>, vector<1x4x8xbf16>
    %14 = vector.shape_cast %13 : vector<1x4x8xbf16> to vector<4x8xbf16>
    %cst_9 = arith.constant dense<0.000000e+00> : vector<512x8xf32>
    %15 = tpu.matmul %3, %14, %cst_9 {dimension_numbers = #tpu.dot_dimension_numbers<[1], [0], [0], [1], [0, 0, 1, 1], [], []>} : vector<512x4xbf16>, vector<4x8xbf16>, vector<512x8xf32> -> vector<512x8xf32>
    %c511_i32 = arith.constant 511 : i32
    %16 = tpu.dynamic_rotate %15 by %c511_i32 dim 0 : vector<512x8xf32>, i32 -> vector<512x8xf32>
    %17 = arith.addf %12, %16 : vector<512x8xf32>
    %c2 = arith.constant 2 : index
    %c0_10 = arith.constant 0 : index
    %c0_11 = arith.constant 0 : index
    %18 = vector.load %arg3[%c2, %c0_10, %c0_11] : memref<9x4x8xbf16, #tpu.memory_space<vmem>>, vector<1x4x8xbf16>
    %19 = vector.shape_cast %18 : vector<1x4x8xbf16> to vector<4x8xbf16>
    %cst_12 = arith.constant dense<0.000000e+00> : vector<512x8xf32>
    %20 = tpu.matmul %3, %19, %cst_12 {dimension_numbers = #tpu.dot_dimension_numbers<[1], [0], [0], [1], [0, 0, 1, 1], [], []>} : vector<512x4xbf16>, vector<4x8xbf16>, vector<512x8xf32> -> vector<512x8xf32>
    %c510_i32 = arith.constant 510 : i32
    %21 = tpu.dynamic_rotate %20 by %c510_i32 dim 0 : vector<512x8xf32>, i32 -> vector<512x8xf32>
    %22 = arith.addf %17, %21 : vector<512x8xf32>
    %c3 = arith.constant 3 : index
    %c0_13 = arith.constant 0 : index
    %c0_14 = arith.constant 0 : index
    %23 = vector.load %arg3[%c3, %c0_13, %c0_14] : memref<9x4x8xbf16, #tpu.memory_space<vmem>>, vector<1x4x8xbf16>
    %24 = vector.shape_cast %23 : vector<1x4x8xbf16> to vector<4x8xbf16>
    %cst_15 = arith.constant dense<0.000000e+00> : vector<512x8xf32>
    %25 = tpu.matmul %5, %24, %cst_15 {dimension_numbers = #tpu.dot_dimension_numbers<[1], [0], [0], [1], [0, 0, 1, 1], [], []>} : vector<512x4xbf16>, vector<4x8xbf16>, vector<512x8xf32> -> vector<512x8xf32>
    %26 = arith.addf %22, %25 : vector<512x8xf32>
    %c4 = arith.constant 4 : index
    %c0_16 = arith.constant 0 : index
    %c0_17 = arith.constant 0 : index
    %27 = vector.load %arg3[%c4, %c0_16, %c0_17] : memref<9x4x8xbf16, #tpu.memory_space<vmem>>, vector<1x4x8xbf16>
    %28 = vector.shape_cast %27 : vector<1x4x8xbf16> to vector<4x8xbf16>
    %cst_18 = arith.constant dense<0.000000e+00> : vector<512x8xf32>
    %29 = tpu.matmul %5, %28, %cst_18 {dimension_numbers = #tpu.dot_dimension_numbers<[1], [0], [0], [1], [0, 0, 1, 1], [], []>} : vector<512x4xbf16>, vector<4x8xbf16>, vector<512x8xf32> -> vector<512x8xf32>
    %c511_i32_19 = arith.constant 511 : i32
    %30 = tpu.dynamic_rotate %29 by %c511_i32_19 dim 0 : vector<512x8xf32>, i32 -> vector<512x8xf32>
    %31 = arith.addf %26, %30 : vector<512x8xf32>
    %c5 = arith.constant 5 : index
    %c0_20 = arith.constant 0 : index
    %c0_21 = arith.constant 0 : index
    %32 = vector.load %arg3[%c5, %c0_20, %c0_21] : memref<9x4x8xbf16, #tpu.memory_space<vmem>>, vector<1x4x8xbf16>
    %33 = vector.shape_cast %32 : vector<1x4x8xbf16> to vector<4x8xbf16>
    %cst_22 = arith.constant dense<0.000000e+00> : vector<512x8xf32>
    %34 = tpu.matmul %5, %33, %cst_22 {dimension_numbers = #tpu.dot_dimension_numbers<[1], [0], [0], [1], [0, 0, 1, 1], [], []>} : vector<512x4xbf16>, vector<4x8xbf16>, vector<512x8xf32> -> vector<512x8xf32>
    %c510_i32_23 = arith.constant 510 : i32
    %35 = tpu.dynamic_rotate %34 by %c510_i32_23 dim 0 : vector<512x8xf32>, i32 -> vector<512x8xf32>
    %36 = arith.addf %31, %35 : vector<512x8xf32>
    %c6 = arith.constant 6 : index
    %c0_24 = arith.constant 0 : index
    %c0_25 = arith.constant 0 : index
    %37 = vector.load %arg3[%c6, %c0_24, %c0_25] : memref<9x4x8xbf16, #tpu.memory_space<vmem>>, vector<1x4x8xbf16>
    %38 = vector.shape_cast %37 : vector<1x4x8xbf16> to vector<4x8xbf16>
    %cst_26 = arith.constant dense<0.000000e+00> : vector<512x8xf32>
    %39 = tpu.matmul %7, %38, %cst_26 {dimension_numbers = #tpu.dot_dimension_numbers<[1], [0], [0], [1], [0, 0, 1, 1], [], []>} : vector<512x4xbf16>, vector<4x8xbf16>, vector<512x8xf32> -> vector<512x8xf32>
    %40 = arith.addf %36, %39 : vector<512x8xf32>
    %c7 = arith.constant 7 : index
    %c0_27 = arith.constant 0 : index
    %c0_28 = arith.constant 0 : index
    %41 = vector.load %arg3[%c7, %c0_27, %c0_28] : memref<9x4x8xbf16, #tpu.memory_space<vmem>>, vector<1x4x8xbf16>
    %42 = vector.shape_cast %41 : vector<1x4x8xbf16> to vector<4x8xbf16>
    %cst_29 = arith.constant dense<0.000000e+00> : vector<512x8xf32>
    %43 = tpu.matmul %7, %42, %cst_29 {dimension_numbers = #tpu.dot_dimension_numbers<[1], [0], [0], [1], [0, 0, 1, 1], [], []>} : vector<512x4xbf16>, vector<4x8xbf16>, vector<512x8xf32> -> vector<512x8xf32>
    %c511_i32_30 = arith.constant 511 : i32
    %44 = tpu.dynamic_rotate %43 by %c511_i32_30 dim 0 : vector<512x8xf32>, i32 -> vector<512x8xf32>
    %45 = arith.addf %40, %44 : vector<512x8xf32>
    %c8 = arith.constant 8 : index
    %c0_31 = arith.constant 0 : index
    %c0_32 = arith.constant 0 : index
    %46 = vector.load %arg3[%c8, %c0_31, %c0_32] : memref<9x4x8xbf16, #tpu.memory_space<vmem>>, vector<1x4x8xbf16>
    %47 = vector.shape_cast %46 : vector<1x4x8xbf16> to vector<4x8xbf16>
    %cst_33 = arith.constant dense<0.000000e+00> : vector<512x8xf32>
    %48 = tpu.matmul %7, %47, %cst_33 {dimension_numbers = #tpu.dot_dimension_numbers<[1], [0], [0], [1], [0, 0, 1, 1], [], []>} : vector<512x4xbf16>, vector<4x8xbf16>, vector<512x8xf32> -> vector<512x8xf32>
    %c510_i32_34 = arith.constant 510 : i32
    %49 = tpu.dynamic_rotate %48 by %c510_i32_34 dim 0 : vector<512x8xf32>, i32 -> vector<512x8xf32>
    %50 = arith.addf %45, %49 : vector<512x8xf32>
    %51 = vector.shape_cast %50 : vector<512x8xf32> to vector<16x32x8xf32>
    %52 = vector.extract_strided_slice %51 {offsets = [0, 0, 0], sizes = [16, 16, 8], strides = [1, 1, 1]} : vector<16x32x8xf32> to vector<16x16x8xf32>
    %53 = arith.truncf %52 : vector<16x16x8xf32> to vector<16x16x8xbf16>
    %c0_35 = arith.constant 0 : index
    %c0_36 = arith.constant 0 : index
    %c0_37 = arith.constant 0 : index
    %c0_38 = arith.constant 0 : index
    %54 = vector.load %arg4[%c0_35, %c0_36, %c0_37, %c0_38] : memref<1x16x16x8xbf16, #tpu.memory_space<vmem>>, vector<1x16x16x8xbf16>
    %55 = vector.shape_cast %54 : vector<1x16x16x8xbf16> to vector<16x16x8xbf16>
    %56 = vector.shape_cast %53 : vector<16x16x8xbf16> to vector<1x16x16x8xbf16>
    tpu.vector_store %arg4[%c0_35, %c0_36, %c0_37, %c0_38], %56 {strides = array<i32>} : memref<1x16x16x8xbf16, #tpu.memory_space<vmem>>, vector<1x16x16x8xbf16>,
    %cst_39 = arith.constant dense<0.000000e+00> : vector<16x8xf32>
    %57 = vector.multi_reduction <add>, %52, %cst_39 [0] : vector<16x16x8xf32> to vector<16x8xf32>
    %cst_40 = arith.constant dense<0.000000e+00> : vector<8xf32>
    %58 = vector.multi_reduction <add>, %57, %cst_40 [0] : vector<16x8xf32> to vector<8xf32>
    %59 = vector.shape_cast %58 : vector<8xf32> to vector<1x8xf32>
    %c0_41 = arith.constant 0 : index
    %c0_42 = arith.constant 0 : index
    %c0_43 = arith.constant 0 : index
    %60 = vector.load %arg5[%c0_41, %c0_42, %c0_43] : memref<1x1x8xf32, #tpu.memory_space<vmem>>, vector<1x1x8xf32>
    %61 = vector.shape_cast %60 : vector<1x1x8xf32> to vector<1x8xf32>
    %62 = vector.shape_cast %59 : vector<1x8xf32> to vector<1x1x8xf32>
    tpu.vector_store %arg5[%c0_41, %c0_42, %c0_43], %62 {strides = array<i32>} : memref<1x1x8xf32, #tpu.memory_space<vmem>>, vector<1x1x8xf32>,
    %63 = arith.mulf %52, %52 : vector<16x16x8xf32>
    %cst_44 = arith.constant dense<0.000000e+00> : vector<16x8xf32>
    %64 = vector.multi_reduction <add>, %63, %cst_44 [0] : vector<16x16x8xf32> to vector<16x8xf32>
    %cst_45 = arith.constant dense<0.000000e+00> : vector<8xf32>
    %65 = vector.multi_reduction <add>, %64, %cst_45 [0] : vector<16x8xf32> to vector<8xf32>
    %66 = vector.shape_cast %65 : vector<8xf32> to vector<1x8xf32>
    %c0_46 = arith.constant 0 : index
    %c0_47 = arith.constant 0 : index
    %c0_48 = arith.constant 0 : index
    %67 = vector.load %arg6[%c0_46, %c0_47, %c0_48] : memref<1x1x8xf32, #tpu.memory_space<vmem>>, vector<1x1x8xf32>
    %68 = vector.shape_cast %67 : vector<1x1x8xf32> to vector<1x8xf32>
    %69 = vector.shape_cast %66 : vector<1x8xf32> to vector<1x1x8xf32>
    tpu.vector_store %arg6[%c0_46, %c0_47, %c0_48], %69 {strides = array<i32>} : memref<1x1x8xf32, #tpu.memory_space<vmem>>, vector<1x1x8xf32>,
    return
  }
  func.func @transform_0(%arg0: i32, %arg1: i32) -> (i32, i32, i32, i32) {
    %c1_i32 = arith.constant 1 : i32
    %0 = arith.muli %arg0, %c1_i32 : i32
    %1 = arith.addi %0, %arg1 : i32
    %c0_i32 = arith.constant 0 : i32
    %c0_i32_0 = arith.constant 0 : i32
    %c0_i32_1 = arith.constant 0 : i32
    %c0_i32_2 = arith.constant 0 : i32
    return %1, %c0_i32, %c0_i32_0, %c0_i32_1 : i32, i32, i32, i32
  }
  func.func @transform_1(%arg0: i32, %arg1: i32) -> (i32, i32, i32) {
    %c0_i32 = arith.constant 0 : i32
    %c0_i32_0 = arith.constant 0 : i32
    %c0_i32_1 = arith.constant 0 : i32
    %c0_i32_2 = arith.constant 0 : i32
    return %c0_i32, %c0_i32_0, %c0_i32_1 : i32, i32, i32
  }
  func.func @transform_2(%arg0: i32, %arg1: i32) -> (i32, i32, i32, i32) {
    %c0_i32 = arith.constant 0 : i32
    %c0_i32_0 = arith.constant 0 : i32
    %c0_i32_1 = arith.constant 0 : i32
    return %arg0, %arg1, %c0_i32, %c0_i32_0 : i32, i32, i32, i32
  }
  func.func @transform_3(%arg0: i32, %arg1: i32) -> (i32, i32, i32) {
    %c1_i32 = arith.constant 1 : i32
    %0 = arith.muli %arg0, %c1_i32 : i32
    %1 = arith.addi %0, %arg1 : i32
    %c0_i32 = arith.constant 0 : i32
    %c0_i32_0 = arith.constant 0 : i32
    %c0_i32_1 = arith.constant 0 : i32
    return %1, %c0_i32, %c0_i32_0 : i32, i32, i32
  }
  func.func @transform_4(%arg0: i32, %arg1: i32) -> (i32, i32, i32) {
    %c1_i32 = arith.constant 1 : i32
    %0 = arith.muli %arg0, %c1_i32 : i32
    %1 = arith.addi %0, %arg1 : i32
    %c0_i32 = arith.constant 0 : i32
    %c0_i32_0 = arith.constant 0 : i32
    %c0_i32_1 = arith.constant 0 : i32
    return %1, %c0_i32, %c0_i32_0 : i32, i32, i32
  }
}

module attributes {stable_mosaic.version = 11 : i64} {
  func.func @_norm_act_pool_kernel(%arg0: i32, %arg1: i32, %arg2: memref<1x16x16x8xbf16, #tpu.memory_space<vmem>>, %arg3: memref<1x8xf32, #tpu.memory_space<vmem>>, %arg4: memref<1x8xf32, #tpu.memory_space<vmem>>, %arg5: memref<1x8x8x8xf32, #tpu.memory_space<vmem>>) attributes {dimension_semantics = [#tpu.dimension_semantics<parallel>, #tpu.dimension_semantics<parallel>], iteration_bounds = array<i64: 2, 1>, scalar_prefetch = 0 : i64, scratch_operands = 0 : i64, tpu.core_type = #tpu.core_type<tc>, window_params = [{transform_indices = @transform_0, window_bounds = array<i64: 1, 16, 16, 8>}, {pipeline_mode = #tpu.pipeline_mode<synchronous>, transform_indices = @transform_1, window_bounds = array<i64: 1, 8>}, {pipeline_mode = #tpu.pipeline_mode<synchronous>, transform_indices = @transform_2, window_bounds = array<i64: 1, 8>}, {transform_indices = @transform_3, window_bounds = array<i64: 1, 8, 8, 8>}]} {
    %c0 = arith.constant 0 : index
    %c0_0 = arith.constant 0 : index
    %0 = vector.load %arg3[%c0, %c0_0] : memref<1x8xf32, #tpu.memory_space<vmem>>, vector<1x8xf32>
    %1 = vector.shape_cast %0 : vector<1x8xf32> to vector<1x1x8xf32>
    %c0_1 = arith.constant 0 : index
    %c0_2 = arith.constant 0 : index
    %2 = vector.load %arg4[%c0_1, %c0_2] : memref<1x8xf32, #tpu.memory_space<vmem>>, vector<1x8xf32>
    %3 = vector.shape_cast %2 : vector<1x8xf32> to vector<1x1x8xf32>
    %c0_3 = arith.constant 0 : index
    %c0_4 = arith.constant 0 : index
    %c0_5 = arith.constant 0 : index
    %c0_6 = arith.constant 0 : index
    %4 = vector.load %arg2[%c0_3, %c0_4, %c0_5, %c0_6] : memref<1x16x16x8xbf16, #tpu.memory_space<vmem>>, vector<1x16x16x8xbf16>
    %5 = vector.shape_cast %4 : vector<1x16x16x8xbf16> to vector<16x16x8xbf16>
    %6 = arith.extf %5 : vector<16x16x8xbf16> to vector<16x16x8xf32>
    %7 = vector.broadcast %1 : vector<1x1x8xf32> to vector<16x16x8xf32>
    %8 = arith.mulf %6, %7 : vector<16x16x8xf32>
    %9 = vector.broadcast %3 : vector<1x1x8xf32> to vector<16x16x8xf32>
    %10 = arith.addf %8, %9 : vector<16x16x8xf32>
    %cst = arith.constant 0.000000e+00 : f32
    %11 = vector.broadcast %cst : f32 to vector<16x16x8xf32>
    %12 = arith.cmpf oge, %10, %11 : vector<16x16x8xf32>
    %cst_7 = arith.constant 2.000000e-01 : f32
    %13 = vector.broadcast %cst_7 : f32 to vector<16x16x8xf32>
    %14 = arith.mulf %13, %10 : vector<16x16x8xf32>
    %15 = arith.select %12, %10, %14 : vector<16x16x8xi1>, vector<16x16x8xf32>
    %16 = vector.shape_cast %15 : vector<16x16x8xf32> to vector<8x2x16x8xf32>
    %17 = vector.extract_strided_slice %16 {offsets = [0, 0, 0, 0], sizes = [8, 1, 16, 8], strides = [1, 1, 1, 1]} : vector<8x2x16x8xf32> to vector<8x1x16x8xf32>
    %18 = vector.shape_cast %17 : vector<8x1x16x8xf32> to vector<8x16x8xf32>
    %19 = vector.extract_strided_slice %16 {offsets = [0, 1, 0, 0], sizes = [8, 1, 16, 8], strides = [1, 1, 1, 1]} : vector<8x2x16x8xf32> to vector<8x1x16x8xf32>
    %20 = vector.shape_cast %19 : vector<8x1x16x8xf32> to vector<8x16x8xf32>
    %21 = arith.addf %18, %20 : vector<8x16x8xf32>
    %22 = vector.shape_cast %21 : vector<8x16x8xf32> to vector<8x8x2x8xf32>
    %23 = vector.extract_strided_slice %22 {offsets = [0, 0, 0, 0], sizes = [8, 8, 1, 8], strides = [1, 1, 1, 1]} : vector<8x8x2x8xf32> to vector<8x8x1x8xf32>
    %24 = vector.shape_cast %23 : vector<8x8x1x8xf32> to vector<8x8x8xf32>
    %25 = vector.extract_strided_slice %22 {offsets = [0, 0, 1, 0], sizes = [8, 8, 1, 8], strides = [1, 1, 1, 1]} : vector<8x8x2x8xf32> to vector<8x8x1x8xf32>
    %26 = vector.shape_cast %25 : vector<8x8x1x8xf32> to vector<8x8x8xf32>
    %27 = arith.addf %24, %26 : vector<8x8x8xf32>
    %cst_8 = arith.constant 2.500000e-01 : f32
    %28 = vector.broadcast %cst_8 : f32 to vector<8x8x8xf32>
    %29 = arith.mulf %27, %28 : vector<8x8x8xf32>
    %c0_9 = arith.constant 0 : index
    %c0_10 = arith.constant 0 : index
    %c0_11 = arith.constant 0 : index
    %c0_12 = arith.constant 0 : index
    %30 = vector.load %arg5[%c0_9, %c0_10, %c0_11, %c0_12] : memref<1x8x8x8xf32, #tpu.memory_space<vmem>>, vector<1x8x8x8xf32>
    %31 = vector.shape_cast %30 : vector<1x8x8x8xf32> to vector<8x8x8xf32>
    %32 = vector.shape_cast %29 : vector<8x8x8xf32> to vector<1x8x8x8xf32>
    tpu.vector_store %arg5[%c0_9, %c0_10, %c0_11, %c0_12], %32 {strides = array<i32>} : memref<1x8x8x8xf32, #tpu.memory_space<vmem>>, vector<1x8x8x8xf32>,
    return
  }
  func.func @transform_0(%arg0: i32, %arg1: i32) -> (i32, i32, i32, i32) {
    %c0_i32 = arith.constant 0 : i32
    %c0_i32_0 = arith.constant 0 : i32
    %c0_i32_1 = arith.constant 0 : i32
    return %arg0, %arg1, %c0_i32, %c0_i32_0 : i32, i32, i32, i32
  }
  func.func @transform_1(%arg0: i32, %arg1: i32) -> (i32, i32) {
    %c0_i32 = arith.constant 0 : i32
    %c0_i32_0 = arith.constant 0 : i32
    %c0_i32_1 = arith.constant 0 : i32
    return %c0_i32, %c0_i32_0 : i32, i32
  }
  func.func @transform_2(%arg0: i32, %arg1: i32) -> (i32, i32) {
    %c0_i32 = arith.constant 0 : i32
    %c0_i32_0 = arith.constant 0 : i32
    %c0_i32_1 = arith.constant 0 : i32
    return %c0_i32, %c0_i32_0 : i32, i32
  }
  func.func @transform_3(%arg0: i32, %arg1: i32) -> (i32, i32, i32, i32) {
    %c0_i32 = arith.constant 0 : i32
    %c0_i32_0 = arith.constant 0 : i32
    %c0_i32_1 = arith.constant 0 : i32
    return %arg0, %arg1, %c0_i32, %c0_i32_0 : i32, i32, i32, i32
  }
}

</mosaic_0001>

<llo_original>
// kernel: discriminator_block_forward.3
$region0: #{discriminator_block_forward.3}
  #allocation0 [shape = 'u32[]', space=smem, size = 0x4, offset = 0x4, fixed_abs, tag = 'smem constant byte address 0x4 - core index']
  #allocation1 [shape = 'u32[144,128]{1,0:T(1,128)}', space=vmem, size = 0x12000, scoped, tag = 'internal scratch']
  %s0 = inlined_call_operand.vmem [shape: bf16[2,16,16,8], index: 0, kind: input, shape index: {}]
  %s1 = inlined_call_operand.vmem [shape: f32[1,8], index: 1, kind: input, shape index: {}]
  %s2 = inlined_call_operand.vmem [shape: f32[1,8], index: 2, kind: input, shape index: {}]
  %s3 = inlined_call_operand.vmem [shape: f32[2,8,8,8], index: 3, kind: output, shape index: {}]
  %s4 = sld [smem:[#allocation0]]
  $region45: #{discriminator_block_forward.3} parent=0
    _
  %s6 = ssub.s32 1, %s4
  %s7 = scalar_select 0, %s6, %s4
  loop: start=0, step=1, limit=4
  $region2: #{discriminator_block_forward.3} parent=0 // loop_pre_header
    _
  $region3: #{discriminator_block_forward.3} parent=0 // loop_header
    %s9 = sphi 0, %s13
    %p10 = scmp.ge.s32.totalorder %s9, 4
    %s16 = sphi 0, %s28
    %s17 = sphi 0, %s24
    %s18 = sphi 0, %s16
    %s19 = sphi 0, %s17
    %s20 = sphi 0, %s18
    %s21 = sphi 0, %s19
    %s33 = sphi 0, %s35
    %s36 = sphi 0, %s33
    %s37 = sphi 0, %s36
    %s53 = sphi 0, %s37
    %s57 = sphi 0, %s57
    %s59 = sphi 0, %s57
    %s60 = sphi 0, %s59
    %s74 = sphi 0, %s60
    %s78 = sphi 0, %s78
    %s80 = sphi 0, %s78
    %s81 = sphi 0, %s80
    %s95 = sphi 0, %s81
    %s103 = sphi 0, %s105
    %s106 = sphi 0, %s103
    %s107 = sphi 0, %s106
    %s123 = sphi 0, %s107
  $region4: #{discriminator_block_forward.3} parent=0 // loop_header_branch
    %12 = sbr.rel (%p10) target = $region8
  $region5: #{discriminator_block_forward.3} parent=0 // loop_body
    %s14 = ssub.s32 %s9, 1
    %s15 = ssub.s32 %s9, 2
    %s22 = sadd.s32 1, %s17
    %p23 = scmp.ge.s32.totalorder %s22, 1
    %s24 = scalar_select %p23, 0, %s22
    %s25 = sadd.s32 1, %s16
    %s26 = scalar_select %p23, %s25, %s16
    %p27 = scmp.ge.s32.totalorder %s26, 2
    %s28 = scalar_select %p27, 0, %s26
    %s29 = ssub.s32 %s16, %s28
    %s30 = ssub.s32 %s17, %s24
    %s31 = sor.u32 %s29, %s30
    %p32 = scmp.eq.s32.totalorder %s31, 0
    %s34 = sadd.s32 %s33, 1
    %s35 = scalar_select %p32, %s33, %s34
    %p38 = pneg %p32
    %p39 = scmp.eq.s32.totalorder %s9, 1
    %p40 = por %p38, %p39
    %p41 = scmp.ne.s32.totalorder %s33, %s36
    %p42 = scmp.eq.s32.totalorder %s9, 0
    %p43 = por %p41, %p42
    %p44 = scmp.ne.s32.totalorder %s33, %s36
    %p45 = scmp.eq.s32.totalorder %s14, 1
    %p46 = por %p44, %p45
    %p47 = scmp.ne.s32.totalorder %s36, %s37
    %p48 = scmp.eq.s32.totalorder %s14, 0
    %p49 = por %p47, %p48
    %p50 = scmp.ne.s32.totalorder %s36, %s37
    %p51 = scmp.eq.s32.totalorder %s15, 1
    %p52 = por %p50, %p51
    %p54 = scmp.ne.s32.totalorder %s37, %s53
    %p55 = scmp.eq.s32.totalorder %s15, 0
    %p56 = por %p54, %p55
    %s58 = sadd.s32 %s57, 1
    %p61 = scmp.eq.s32.totalorder %s9, 1
    %p62 = scmp.ne.s32.totalorder %s57, %s59
    %p63 = scmp.eq.s32.totalorder %s9, 0
    %p64 = por %p62, %p63
    %p65 = scmp.ne.s32.totalorder %s57, %s59
    %p66 = scmp.eq.s32.totalorder %s14, 1
    %p67 = por %p65, %p66
    %p68 = scmp.ne.s32.totalorder %s59, %s60
    %p69 = scmp.eq.s32.totalorder %s14, 0
    %p70 = por %p68, %p69
    %p71 = scmp.ne.s32.totalorder %s59, %s60
    %p72 = scmp.eq.s32.totalorder %s15, 1
    %p73 = por %p71, %p72
    %p75 = scmp.ne.s32.totalorder %s60, %s74
    %p76 = scmp.eq.s32.totalorder %s15, 0
    %p77 = por %p75, %p76
    %s79 = sadd.s32 %s78, 1
    %p82 = scmp.eq.s32.totalorder %s9, 1
    %p83 = scmp.ne.s32.totalorder %s78, %s80
    %p84 = scmp.eq.s32.totalorder %s9, 0
    %p85 = por %p83, %p84
    %p86 = scmp.ne.s32.totalorder %s78, %s80
    %p87 = scmp.eq.s32.totalorder %s14, 1
    %p88 = por %p86, %p87
    %p89 = scmp.ne.s32.totalorder %s80, %s81
    %p90 = scmp.eq.s32.totalorder %s14, 0
    %p91 = por %p89, %p90
    %p92 = scmp.ne.s32.totalorder %s80, %s81
    %p93 = scmp.eq.s32.totalorder %s15, 1
    %p94 = por %p92, %p93
    %p96 = scmp.ne.s32.totalorder %s81, %s95
    %p97 = scmp.eq.s32.totalorder %s15, 0
    %p98 = por %p96, %p97
    %s99 = ssub.s32 %s16, %s28
    %s100 = ssub.s32 %s17, %s24
    %s101 = sor.u32 %s99, %s100
    %p102 = scmp.eq.s32.totalorder %s101, 0
    %s104 = sadd.s32 %s103, 1
    %s105 = scalar_select %p102, %s103, %s104
    %p108 = pneg %p102
    %p109 = scmp.eq.s32.totalorder %s9, 1
    %p110 = por %p108, %p109
    %p111 = scmp.ne.s32.totalorder %s103, %s106
    %p112 = scmp.eq.s32.totalorder %s9, 0
    %p113 = por %p111, %p112
    %p114 = scmp.ne.s32.totalorder %s103, %s106
    %p115 = scmp.eq.s32.totalorder %s14, 1
    %p116 = por %p114, %p115
    %p117 = scmp.ne.s32.totalorder %s106, %s107
    %p118 = scmp.eq.s32.totalorder %s14, 0
    %p119 = por %p117, %p118
    %p120 = scmp.ne.s32.totalorder %s106, %s107
    %p121 = scmp.eq.s32.totalorder %s15, 1
    %p122 = por %p120, %p121
    %p124 = scmp.ne.s32.totalorder %s107, %s123
    %p125 = scmp.eq.s32.totalorder %s15, 0
    %p126 = por %p124, %p125
    %p127 = scmp.le.s32.totalorder 1, %s9
    %p128 = scmp.lt.s32.totalorder %s9, 3
    %p129 = pnand %p127, %p128
    %p130 = pneg %p129
    // Predicated region
    $region9: #{discriminator_block_forward.3} parent=5 // pred_check
      _
    $region10: #{discriminator_block_forward.3} parent=5 // pred_check_branch
      %132 = sbr.rel (%p129) target = $region12
    $region11: #{discriminator_block_forward.3} parent=5 // pred_region
      %s133 = ssub.s32 %s9, 1
      // Predicated region
      $region13: #{discriminator_block_forward.3} parent=11 // pred_check
        %p134 = pneg %p70
      $region14: #{discriminator_block_forward.3} parent=11 // pred_check_branch
        %136 = sbr.rel (%p134) target = $region16
      $region15: #{discriminator_block_forward.3} parent=11 // pred_region
        _
      $region16: #{discriminator_block_forward.3} parent=11 // pred_fallthru
        _
      // Predicated region
      $region17: #{discriminator_block_forward.3} parent=11 // pred_check
        %p137 = pneg %p91
      $region18: #{discriminator_block_forward.3} parent=11 // pred_check_branch
        %139 = sbr.rel (%p137) target = $region20
      $region19: #{discriminator_block_forward.3} parent=11 // pred_region
        _
      $region20: #{discriminator_block_forward.3} parent=11 // pred_fallthru
        _
    $region12: #{discriminator_block_forward.3} parent=5 // pred_fallthru
      _
    %p140 = scmp.lt.s32.totalorder %s9, 2
    // Predicated region
    $region21: #{discriminator_block_forward.3} parent=5 // pred_check
      %p141 = pneg %p140
    $region22: #{discriminator_block_forward.3} parent=5 // pred_check_branch
      %143 = sbr.rel (%p141) target = $region24
    $region23: #{discriminator_block_forward.3} parent=5 // pred_region
      // Predicated region
      $region25: #{discriminator_block_forward.3} parent=23 // pred_check
        %p144 = pneg %p43
      $region26: #{discriminator_block_forward.3} parent=23 // pred_check_branch
        %146 = sbr.rel (%p144) target = $region28
      $region27: #{discriminator_block_forward.3} parent=23 // pred_region
        %s147 = smul.u32 16, %s17
        %p148 = scmp.lt.s32.totalorder %s16, 1
        %s149 = scalar_select %p148, %s16, 1
        %p150 = scmp.lt.s32.totalorder %s147, 15
        %s151 = scalar_select %p150, %s147, 15
        %s152 = smul.addr %s151, 2
        %s153 = smul.addr %s149, 32
        %s154 = sadd.s32 %s152, %s153
        %s155 = smul.addr %s154, 4
        %s156 = scalar_lea.vmem %s0, %s155
        %s157 = smul.u32 16, %s17
      $region28: #{discriminator_block_forward.3} parent=23 // pred_fallthru
        _
    $region24: #{discriminator_block_forward.3} parent=5 // pred_fallthru
      _
    %p158 = scmp.le.s32.totalorder 1, %s9
    %p159 = scmp.lt.s32.totalorder %s9, 3
    %p160 = pnand %p158, %p159
    %p161 = pneg %p160
    // Predicated region
    $region29: #{discriminator_block_forward.3} parent=5 // pred_check
      _
    $region30: #{discriminator_block_forward.3} parent=5 // pred_check_branch
      %163 = sbr.rel (%p160) target = $region32
    $region31: #{discriminator_block_forward.3} parent=5 // pred_region
      %s164 = ssub.s32 %s9, 1
      %s165 = smul.u32 16, %s19
      %p166 = scmp.lt.s32.totalorder %s18, 1
      %s167 = scalar_select %p166, %s18, 1
      %p168 = scmp.lt.s32.totalorder %s165, 15
      %s169 = scalar_select %p168, %s165, 15
      %s170 = smul.addr %s169, 2
      %s171 = smul.addr %s167, 32
      %s172 = sadd.s32 %s170, %s171
      %s173 = smul.addr %s172, 4
      %s174 = scalar_lea.vmem %s0, %s173
      %p175 = pneg %p49
      %p176 = pneg %p46
      %p177 = pneg %p70
      %p178 = pneg %p67
      %p179 = pneg %p91
      %p180 = pneg %p88
      %p181 = pneg %p119
      %p182 = pneg %p116
      %s183 = smul.u32 8, %s19
      %p184 = scmp.lt.s32.totalorder %s18, 1
      %s185 = scalar_select %p184, %s18, 1
      %p186 = scmp.lt.s32.totalorder %s183, 7
      %s187 = scalar_select %p186, %s183, 7
      %s188 = smul.addr %s185, 8
      %s189 = sadd.s32 %s187, %s188
      %s190 = smul.addr %s189, 8
      %s191 = scalar_lea.vmem %s3, %s190
      %s192 = smul.u32 16, %s19
      %p193 = scmp.lt.s32.totalorder %s18, 1
      %s194 = scalar_select %p193, %s18, 1
      %p195 = scmp.lt.s32.totalorder %s192, 15
      %s196 = scalar_select %p195, %s192, 15
      %s197 = smul.addr %s196, 2
      %s198 = smul.addr %s194, 32
      %s199 = sadd.s32 %s197, %s198
      %s200 = smul.addr %s199, 4
      %s201 = scalar_lea.vmem %s0, %s200
      %s202 = smul.u32 16, %s19
      %s203 = smul.u32 8, %s19
      %p204 = scmp.lt.s32.totalorder %s18, 1
      %s205 = scalar_select %p204, %s18, 1
      %p206 = scmp.lt.s32.totalorder %s203, 7
      %s207 = scalar_select %p206, %s203, 7
      %s208 = smul.addr %s205, 8
      %s209 = sadd.s32 %s207, %s208
      %s210 = smul.addr %s209, 8
      %s211 = scalar_lea.vmem %s3, %s210
      %s212 = smul.u32 8, %s19
      %v213 = vld [vmem:[%s1] sm:$0x1]
      %v214 = vld [vmem:[%s2] sm:$0x1]
      %v215 = vld [vmem:[%s201] sm:$0xf]
      %v216 = vld [vmem:[%s201 + $0x4] sm:$0xf]
      %v217 = vld [vmem:[%s201 + $0x8] sm:$0xf]
      %v218 = vld [vmem:[%s201 + $0xc] sm:$0xf]
      %v219 = vld [vmem:[%s201 + $0x10] sm:$0xf]
      %v220 = vld [vmem:[%s201 + $0x14] sm:$0xf]
      %v221 = vld [vmem:[%s201 + $0x18] sm:$0xf]
      %v222 = vld [vmem:[%s201 + $0x1c] sm:$0xf]
      %v223 = vld [vmem:[%s201 + $0x20] sm:$0xf]
      %v224 = vld [vmem:[%s201 + $0x24] sm:$0xf]
      %v225 = vld [vmem:[%s201 + $0x28] sm:$0xf]
      %v226 = vld [vmem:[%s201 + $0x2c] sm:$0xf]
      %v227 = vld [vmem:[%s201 + $0x30] sm:$0xf]
      %v228 = vld [vmem:[%s201 + $0x34] sm:$0xf]
      %v229 = vld [vmem:[%s201 + $0x38] sm:$0xf]
      %v230 = vld [vmem:[%s201 + $0x3c] sm:$0xf]
      %v231 = vld [vmem:[%s201 + $0x40] sm:$0xf]
      %v232 = vld [vmem:[%s201 + $0x44] sm:$0xf]
      %v233 = vld [vmem:[%s201 + $0x48] sm:$0xf]
      %v234 = vld [vmem:[%s201 + $0x4c] sm:$0xf]
      %v235 = vld [vmem:[%s201 + $0x50] sm:$0xf]
      %v236 = vld [vmem:[%s201 + $0x54] sm:$0xf]
      %v237 = vld [vmem:[%s201 + $0x58] sm:$0xf]
      %v238 = vld [vmem:[%s201 + $0x5c] sm:$0xf]
      %v239 = vld [vmem:[%s201 + $0x60] sm:$0xf]
      %v240 = vld [vmem:[%s201 + $0x64] sm:$0xf]
      %v241 = vld [vmem:[%s201 + $0x68] sm:$0xf]
      %v242 = vld [vmem:[%s201 + $0x6c] sm:$0xf]
      %v243 = vld [vmem:[%s201 + $0x70] sm:$0xf]
      %v244 = vld [vmem:[%s201 + $0x74] sm:$0xf]
      %v245 = vld [vmem:[%s201 + $0x78] sm:$0xf]
      %v246 = vld [vmem:[%s201 + $0x7c] sm:$0xf]
      %v247 = vunpack.c.l.bf16 %v215
      %v248 = vunpack.c.l.bf16 %v216
      %v249 = vunpack.c.l.bf16 %v217
      %v250 = vunpack.c.l.bf16 %v218
      %v251 = vunpack.c.l.bf16 %v219
      %v252 = vunpack.c.l.bf16 %v220
      %v253 = vunpack.c.l.bf16 %v221
      %v254 = vunpack.c.l.bf16 %v222
      %v255 = vunpack.c.l.bf16 %v223
      %v256 = vunpack.c.l.bf16 %v224
      %v257 = vunpack.c.l.bf16 %v225
      %v258 = vunpack.c.l.bf16 %v226
      %v259 = vunpack.c.l.bf16 %v227
      %v260 = vunpack.c.l.bf16 %v228
      %v261 = vunpack.c.l.bf16 %v229
      %v262 = vunpack.c.l.bf16 %v230
      %v263 = vunpack.c.l.bf16 %v231
      %v264 = vunpack.c.l.bf16 %v232
      %v265 = vunpack.c.l.bf16 %v233
      %v266 = vunpack.c.l.bf16 %v234
      %v267 = vunpack.c.l.bf16 %v235
      %v268 = vunpack.c.l.bf16 %v236
      %v269 = vunpack.c.l.bf16 %v237
      %v270 = vunpack.c.l.bf16 %v238
      %v271 = vunpack.c.l.bf16 %v239
      %v272 = vunpack.c.l.bf16 %v240
      %v273 = vunpack.c.l.bf16 %v241
      %v274 = vunpack.c.l.bf16 %v242
      %v275 = vunpack.c.l.bf16 %v243
      %v276 = vunpack.c.l.bf16 %v244
      %v277 = vunpack.c.l.bf16 %v245
      %v278 = vunpack.c.l.bf16 %v246
      %v280 = vlaneseq
      %v281 = vshrl.u32 %v280, 7
      %v282 = vsub.s32 0, %v281
      %v283 = vrot.slane %v213, %v282
      %v285 = vmul.f32 %v247, %v283
      %v286 = vmul.f32 %v248, %v283
      %v287 = vmul.f32 %v249, %v283
      %v288 = vmul.f32 %v250, %v283
      %v289 = vmul.f32 %v251, %v283
      %v290 = vmul.f32 %v252, %v283
      %v291 = vmul.f32 %v253, %v283
      %v292 = vmul.f32 %v254, %v283
      %v293 = vmul.f32 %v255, %v283
      %v294 = vmul.f32 %v256, %v283
      %v295 = vmul.f32 %v257, %v283
      %v296 = vmul.f32 %v258, %v283
      %v297 = vmul.f32 %v259, %v283
      %v298 = vmul.f32 %v260, %v283
      %v299 = vmul.f32 %v261, %v283
      %v300 = vmul.f32 %v262, %v283
      %v301 = vmul.f32 %v263, %v283
      %v302 = vmul.f32 %v264, %v283
      %v303 = vmul.f32 %v265, %v283
      %v304 = vmul.f32 %v266, %v283
      %v305 = vmul.f32 %v267, %v283
      %v306 = vmul.f32 %v268, %v283
      %v307 = vmul.f32 %v269, %v283
      %v308 = vmul.f32 %v270, %v283
      %v309 = vmul.f32 %v271, %v283
      %v310 = vmul.f32 %v272, %v283
      %v311 = vmul.f32 %v273, %v283
      %v312 = vmul.f32 %v274, %v283
      %v313 = vmul.f32 %v275, %v283
      %v314 = vmul.f32 %v276, %v283
      %v315 = vmul.f32 %v277, %v283
      %v316 = vmul.f32 %v278, %v283
      %v318 = vlaneseq
      %v319 = vshrl.u32 %v318, 7
      %v320 = vsub.s32 0, %v319
      %v321 = vrot.slane %v214, %v320
      %v323 = vadd.f32 %v285, %v321
      %v324 = vadd.f32 %v286, %v321
      %v325 = vadd.f32 %v287, %v321
      %v326 = vadd.f32 %v288, %v321
      %v327 = vadd.f32 %v289, %v321
      %v328 = vadd.f32 %v290, %v321
      %v329 = vadd.f32 %v291, %v321
      %v330 = vadd.f32 %v292, %v321
      %v331 = vadd.f32 %v293, %v321
      %v332 = vadd.f32 %v294, %v321
      %v333 = vadd.f32 %v295, %v321
      %v334 = vadd.f32 %v296, %v321
      %v335 = vadd.f32 %v297, %v321
      %v336 = vadd.f32 %v298, %v321
      %v337 = vadd.f32 %v299, %v321
      %v338 = vadd.f32 %v300, %v321
      %v339 = vadd.f32 %v301, %v321
      %v340 = vadd.f32 %v302, %v321
      %v341 = vadd.f32 %v303, %v321
      %v342 = vadd.f32 %v304, %v321
      %v343 = vadd.f32 %v305, %v321
      %v344 = vadd.f32 %v306, %v321
      %v345 = vadd.f32 %v307, %v321
      %v346 = vadd.f32 %v308, %v321
      %v347 = vadd.f32 %v309, %v321
      %v348 = vadd.f32 %v310, %v321
      %v349 = vadd.f32 %v311, %v321
      %v350 = vadd.f32 %v312, %v321
      %v351 = vadd.f32 %v313, %v321
      %v352 = vadd.f32 %v314, %v321
      %v353 = vadd.f32 %v315, %v321
      %v354 = vadd.f32 %v316, %v321
      %vm355 = vcmp.ge.f32.partialorder %v323, 0.0
      %vm356 = vcmp.ge.f32.partialorder %v324, 0.0
      %vm357 = vcmp.ge.f32.partialorder %v325, 0.0
      %vm358 = vcmp.ge.f32.partialorder %v326, 0.0
      %vm359 = vcmp.ge.f32.partialorder %v327, 0.0
      %vm360 = vcmp.ge.f32.partialorder %v328, 0.0
      %vm361 = vcmp.ge.f32.partialorder %v329, 0.0
      %vm362 = vcmp.ge.f32.partialorder %v330, 0.0
      %vm363 = vcmp.ge.f32.partialorder %v331, 0.0
      %vm364 = vcmp.ge.f32.partialorder %v332, 0.0
      %vm365 = vcmp.ge.f32.partialorder %v333, 0.0
      %vm366 = vcmp.ge.f32.partialorder %v334, 0.0
      %vm367 = vcmp.ge.f32.partialorder %v335, 0.0
      %vm368 = vcmp.ge.f32.partialorder %v336, 0.0
      %vm369 = vcmp.ge.f32.partialorder %v337, 0.0
      %vm370 = vcmp.ge.f32.partialorder %v338, 0.0
      %vm371 = vcmp.ge.f32.partialorder %v339, 0.0
      %vm372 = vcmp.ge.f32.partialorder %v340, 0.0
      %vm373 = vcmp.ge.f32.partialorder %v341, 0.0
      %vm374 = vcmp.ge.f32.partialorder %v342, 0.0
      %vm375 = vcmp.ge.f32.partialorder %v343, 0.0
      %vm376 = vcmp.ge.f32.partialorder %v344, 0.0
      %vm377 = vcmp.ge.f32.partialorder %v345, 0.0
      %vm378 = vcmp.ge.f32.partialorder %v346, 0.0
      %vm379 = vcmp.ge.f32.partialorder %v347, 0.0
      %vm380 = vcmp.ge.f32.partialorder %v348, 0.0
      %vm381 = vcmp.ge.f32.partialorder %v349, 0.0
      %vm382 = vcmp.ge.f32.partialorder %v350, 0.0
      %vm383 = vcmp.ge.f32.partialorder %v351, 0.0
      %vm384 = vcmp.ge.f32.partialorder %v352, 0.0
      %vm385 = vcmp.ge.f32.partialorder %v353, 0.0
      %vm386 = vcmp.ge.f32.partialorder %v354, 0.0
      %v387 = vmul.f32 %v323, 0.2
      %v388 = vmul.f32 %v324, 0.2
      %v389 = vmul.f32 %v325, 0.2
      %v390 = vmul.f32 %v326, 0.2
      %v391 = vmul.f32 %v327, 0.2
      %v392 = vmul.f32 %v328, 0.2
      %v393 = vmul.f32 %v329, 0.2
      %v394 = vmul.f32 %v330, 0.2
      %v395 = vmul.f32 %v331, 0.2
      %v396 = vmul.f32 %v332, 0.2
      %v397 = vmul.f32 %v333, 0.2
      %v398 = vmul.f32 %v334, 0.2
      %v399 = vmul.f32 %v335, 0.2
      %v400 = vmul.f32 %v336, 0.2
      %v401 = vmul.f32 %v337, 0.2
      %v402 = vmul.f32 %v338, 0.2
      %v403 = vmul.f32 %v339, 0.2
      %v404 = vmul.f32 %v340, 0.2
      %v405 = vmul.f32 %v341, 0.2
      %v406 = vmul.f32 %v342, 0.2
      %v407 = vmul.f32 %v343, 0.2
      %v408 = vmul.f32 %v344, 0.2
      %v409 = vmul.f32 %v345, 0.2
      %v410 = vmul.f32 %v346, 0.2
      %v411 = vmul.f32 %v347, 0.2
      %v412 = vmul.f32 %v348, 0.2
      %v413 = vmul.f32 %v349, 0.2
      %v414 = vmul.f32 %v350, 0.2
      %v415 = vmul.f32 %v351, 0.2
      %v416 = vmul.f32 %v352, 0.2
      %v417 = vmul.f32 %v353, 0.2
      %v418 = vmul.f32 %v354, 0.2
      %v419 = vsel %vm355, %v323, %v387
      %v420 = vsel %vm356, %v324, %v388
      %v421 = vsel %vm357, %v325, %v389
      %v422 = vsel %vm358, %v326, %v390
      %v423 = vsel %vm359, %v327, %v391
      %v424 = vsel %vm360, %v328, %v392
      %v425 = vsel %vm361, %v329, %v393
      %v426 = vsel %vm362, %v330, %v394
      %v427 = vsel %vm363, %v331, %v395
      %v428 = vsel %vm364, %v332, %v396
      %v429 = vsel %vm365, %v333, %v397
      %v430 = vsel %vm366, %v334, %v398
      %v431 = vsel %vm367, %v335, %v399
      %v432 = vsel %vm368, %v336, %v400
      %v433 = vsel %vm369, %v337, %v401
      %v434 = vsel %vm370, %v338, %v402
      %v435 = vsel %vm371, %v339, %v403
      %v436 = vsel %vm372, %v340, %v404
      %v437 = vsel %vm373, %v341, %v405
      %v438 = vsel %vm374, %v342, %v406
      %v439 = vsel %vm375, %v343, %v407
      %v440 = vsel %vm376, %v344, %v408
      %v441 = vsel %vm377, %v345, %v409
      %v442 = vsel %vm378, %v346, %v410
      %v443 = vsel %vm379, %v347, %v411
      %v444 = vsel %vm380, %v348, %v412
      %v445 = vsel %vm381, %v349, %v413
      %v446 = vsel %vm382, %v350, %v414
      %v447 = vsel %vm383, %v351, %v415
      %v448 = vsel %vm384, %v352, %v416
      %v449 = vsel %vm385, %v353, %v417
      %v450 = vsel %vm386, %v354, %v418
      %v451 = vadd.f32 %v419, %v421
      %v452 = vadd.f32 %v420, %v422
      %v453 = vadd.f32 %v423, %v425
      %v454 = vadd.f32 %v424, %v426
      %v455 = vadd.f32 %v427, %v429
      %v456 = vadd.f32 %v428, %v430
      %v457 = vadd.f32 %v431, %v433
      %v458 = vadd.f32 %v432, %v434
      %v459 = vadd.f32 %v435, %v437
      %v460 = vadd.f32 %v436, %v438
      %v461 = vadd.f32 %v439, %v441
      %v462 = vadd.f32 %v440, %v442
      %v463 = vadd.f32 %v443, %v445
      %v464 = vadd.f32 %v444, %v446
      %v465 = vadd.f32 %v447, %v449
      %v466 = vadd.f32 %v448, %v450
      %v483 = vcombine.high %v451, %v451
      %v485 = vunpack.c.l.s4 1983009808
      %v486 = vunpack.c.0.s8 %v485
      %v487 = vlaneseq
      %v488 = vshrl.u32 %v487, 7
      %v489 = vsub.s32 %v486, %v488
      %v490 = vrot.slane %v451, %v489
      %v492 = vunpack.c.l.s4 1983009808
      %v493 = vunpack.c.0.s8 %v492
      %v494 = vlaneseq
      %v495 = vshrl.u32 %v494, 7
      %v496 = vsub.s32 %v493, %v495
      %v497 = vrot.slane %v483, %v496
      %v498 = vcombine.high %v490, %v490
      %v499 = vcombine.high %v497, %v497
      %v500 = vcombine.high %v452, %v452
      %v502 = vunpack.c.l.s4 1983009808
      %v503 = vunpack.c.0.s8 %v502
      %v504 = vlaneseq
      %v505 = vshrl.u32 %v504, 7
      %v506 = vsub.s32 %v503, %v505
      %v507 = vrot.slane %v452, %v506
      %v509 = vunpack.c.l.s4 1983009808
      %v510 = vunpack.c.0.s8 %v509
      %v511 = vlaneseq
      %v512 = vshrl.u32 %v511, 7
      %v513 = vsub.s32 %v510, %v512
      %v514 = vrot.slane %v500, %v513
      %v515 = vcombine.high %v507, %v507
      %v516 = vcombine.high %v514, %v514
      %v517 = vcombine.high %v453, %v453
      %v519 = vunpack.c.l.s4 1983009808
      %v520 = vunpack.c.0.s8 %v519
      %v521 = vlaneseq
      %v522 = vshrl.u32 %v521, 7
      %v523 = vsub.s32 %v520, %v522
      %v524 = vrot.slane %v453, %v523
      %v526 = vunpack.c.l.s4 1983009808
      %v527 = vunpack.c.0.s8 %v526
      %v528 = vlaneseq
      %v529 = vshrl.u32 %v528, 7
      %v530 = vsub.s32 %v527, %v529
      %v531 = vrot.slane %v517, %v530
      %v532 = vcombine.high %v524, %v524
      %v533 = vcombine.high %v531, %v531
      %v534 = vcombine.high %v454, %v454
      %v536 = vunpack.c.l.s4 1983009808
      %v537 = vunpack.c.0.s8 %v536
      %v538 = vlaneseq
      %v539 = vshrl.u32 %v538, 7
      %v540 = vsub.s32 %v537, %v539
      %v541 = vrot.slane %v454, %v540
      %v543 = vunpack.c.l.s4 1983009808
      %v544 = vunpack.c.0.s8 %v543
      %v545 = vlaneseq
      %v546 = vshrl.u32 %v545, 7
      %v547 = vsub.s32 %v544, %v546
      %v548 = vrot.slane %v534, %v547
      %v549 = vcombine.high %v541, %v541
      %v550 = vcombine.high %v548, %v548
      %v551 = vcombine.high %v455, %v455
      %v553 = vunpack.c.l.s4 1983009808
      %v554 = vunpack.c.0.s8 %v553
      %v555 = vlaneseq
      %v556 = vshrl.u32 %v555, 7
      %v557 = vsub.s32 %v554, %v556
      %v558 = vrot.slane %v455, %v557
      %v560 = vunpack.c.l.s4 1983009808
      %v561 = vunpack.c.0.s8 %v560
      %v562 = vlaneseq
      %v563 = vshrl.u32 %v562, 7
      %v564 = vsub.s32 %v561, %v563
      %v565 = vrot.slane %v551, %v564
      %v566 = vcombine.high %v558, %v558
      %v567 = vcombine.high %v565, %v565
      %v568 = vcombine.high %v456, %v456
      %v570 = vunpack.c.l.s4 1983009808
      %v571 = vunpack.c.0.s8 %v570
      %v572 = vlaneseq
      %v573 = vshrl.u32 %v572, 7
      %v574 = vsub.s32 %v571, %v573
      %v575 = vrot.slane %v456, %v574
      %v577 = vunpack.c.l.s4 1983009808
      %v578 = vunpack.c.0.s8 %v577
      %v579 = vlaneseq
      %v580 = vshrl.u32 %v579, 7
      %v581 = vsub.s32 %v578, %v580
      %v582 = vrot.slane %v568, %v581
      %v583 = vcombine.high %v575, %v575
      %v584 = vcombine.high %v582, %v582
      %v585 = vcombine.high %v457, %v457
      %v587 = vunpack.c.l.s4 1983009808
      %v588 = vunpack.c.0.s8 %v587
      %v589 = vlaneseq
      %v590 = vshrl.u32 %v589, 7
      %v591 = vsub.s32 %v588, %v590
      %v592 = vrot.slane %v457, %v591
      %v594 = vunpack.c.l.s4 1983009808
      %v595 = vunpack.c.0.s8 %v594
      %v596 = vlaneseq
      %v597 = vshrl.u32 %v596, 7
      %v598 = vsub.s32 %v595, %v597
      %v599 = vrot.slane %v585, %v598
      %v600 = vcombine.high %v592, %v592
      %v601 = vcombine.high %v599, %v599
      %v602 = vcombine.high %v458, %v458
      %v604 = vunpack.c.l.s4 1983009808
      %v605 = vunpack.c.0.s8 %v604
      %v606 = vlaneseq
      %v607 = vshrl.u32 %v606, 7
      %v608 = vsub.s32 %v605, %v607
      %v609 = vrot.slane %v458, %v608
      %v611 = vunpack.c.l.s4 1983009808
      %v612 = vunpack.c.0.s8 %v611
      %v613 = vlaneseq
      %v614 = vshrl.u32 %v613, 7
      %v615 = vsub.s32 %v612, %v614
      %v616 = vrot.slane %v602, %v615
      %v617 = vcombine.high %v609, %v609
      %v618 = vcombine.high %v616, %v616
      %v619 = vcombine.high %v459, %v459
      %v621 = vunpack.c.l.s4 1983009808
      %v622 = vunpack.c.0.s8 %v621
      %v623 = vlaneseq
      %v624 = vshrl.u32 %v623, 7
      %v625 = vsub.s32 %v622, %v624
      %v626 = vrot.slane %v459, %v625
      %v628 = vunpack.c.l.s4 1983009808
      %v629 = vunpack.c.0.s8 %v628
      %v630 = vlaneseq
      %v631 = vshrl.u32 %v630, 7
      %v632 = vsub.s32 %v629, %v631
      %v633 = vrot.slane %v619, %v632
      %v634 = vcombine.high %v626, %v626
      %v635 = vcombine.high %v633, %v633
      %v636 = vcombine.high %v460, %v460
      %v638 = vunpack.c.l.s4 1983009808
      %v639 = vunpack.c.0.s8 %v638
      %v640 = vlaneseq
      %v641 = vshrl.u32 %v640, 7
      %v642 = vsub.s32 %v639, %v641
      %v643 = vrot.slane %v460, %v642
      %v645 = vunpack.c.l.s4 1983009808
      %v646 = vunpack.c.0.s8 %v645
      %v647 = vlaneseq
      %v648 = vshrl.u32 %v647, 7
      %v649 = vsub.s32 %v646, %v648
      %v650 = vrot.slane %v636, %v649
      %v651 = vcombine.high %v643, %v643
      %v652 = vcombine.high %v650, %v650
      %v653 = vcombine.high %v461, %v461
      %v655 = vunpack.c.l.s4 1983009808
      %v656 = vunpack.c.0.s8 %v655
      %v657 = vlaneseq
      %v658 = vshrl.u32 %v657, 7
      %v659 = vsub.s32 %v656, %v658
      %v660 = vrot.slane %v461, %v659
      %v662 = vunpack.c.l.s4 1983009808
      %v663 = vunpack.c.0.s8 %v662
      %v664 = vlaneseq
      %v665 = vshrl.u32 %v664, 7
      %v666 = vsub.s32 %v663, %v665
      %v667 = vrot.slane %v653, %v666
      %v668 = vcombine.high %v660, %v660
      %v669 = vcombine.high %v667, %v667
      %v670 = vcombine.high %v462, %v462
      %v672 = vunpack.c.l.s4 1983009808
      %v673 = vunpack.c.0.s8 %v672
      %v674 = vlaneseq
      %v675 = vshrl.u32 %v674, 7
      %v676 = vsub.s32 %v673, %v675
      %v677 = vrot.slane %v462, %v676
      %v679 = vunpack.c.l.s4 1983009808
      %v680 = vunpack.c.0.s8 %v679
      %v681 = vlaneseq
      %v682 = vshrl.u32 %v681, 7
      %v683 = vsub.s32 %v680, %v682
      %v684 = vrot.slane %v670, %v683
      %v685 = vcombine.high %v677, %v677
      %v686 = vcombine.high %v684, %v684
      %v687 = vcombine.high %v463, %v463
      %v689 = vunpack.c.l.s4 1983009808
      %v690 = vunpack.c.0.s8 %v689
      %v691 = vlaneseq
      %v692 = vshrl.u32 %v691, 7
      %v693 = vsub.s32 %v690, %v692
      %v694 = vrot.slane %v463, %v693
      %v696 = vunpack.c.l.s4 1983009808
      %v697 = vunpack.c.0.s8 %v696
      %v698 = vlaneseq
      %v699 = vshrl.u32 %v698, 7
      %v700 = vsub.s32 %v697, %v699
      %v701 = vrot.slane %v687, %v700
      %v702 = vcombine.high %v694, %v694
      %v703 = vcombine.high %v701, %v701
      %v704 = vcombine.high %v464, %v464
      %v706 = vunpack.c.l.s4 1983009808
      %v707 = vunpack.c.0.s8 %v706
      %v708 = vlaneseq
      %v709 = vshrl.u32 %v708, 7
      %v710 = vsub.s32 %v707, %v709
      %v711 = vrot.slane %v464, %v710
      %v713 = vunpack.c.l.s4 1983009808
      %v714 = vunpack.c.0.s8 %v713
      %v715 = vlaneseq
      %v716 = vshrl.u32 %v715, 7
      %v717 = vsub.s32 %v714, %v716
      %v718 = vrot.slane %v704, %v717
      %v719 = vcombine.high %v711, %v711
      %v720 = vcombine.high %v718, %v718
      %v721 = vcombine.high %v465, %v465
      %v723 = vunpack.c.l.s4 1983009808
      %v724 = vunpack.c.0.s8 %v723
      %v725 = vlaneseq
      %v726 = vshrl.u32 %v725, 7
      %v727 = vsub.s32 %v724, %v726
      %v728 = vrot.slane %v465, %v727
      %v730 = vunpack.c.l.s4 1983009808
      %v731 = vunpack.c.0.s8 %v730
      %v732 = vlaneseq
      %v733 = vshrl.u32 %v732, 7
      %v734 = vsub.s32 %v731, %v733
      %v735 = vrot.slane %v721, %v734
      %v736 = vcombine.high %v728, %v728
      %v737 = vcombine.high %v735, %v735
      %v738 = vcombine.high %v466, %v466
      %v740 = vunpack.c.l.s4 1983009808
      %v741 = vunpack.c.0.s8 %v740
      %v742 = vlaneseq
      %v743 = vshrl.u32 %v742, 7
      %v744 = vsub.s32 %v741, %v743
      %v745 = vrot.slane %v466, %v744
      %v747 = vunpack.c.l.s4 1983009808
      %v748 = vunpack.c.0.s8 %v747
      %v749 = vlaneseq
      %v750 = vshrl.u32 %v749, 7
      %v751 = vsub.s32 %v748, %v750
      %v752 = vrot.slane %v738, %v751
      %v753 = vcombine.high %v745, %v745
      %v754 = vcombine.high %v752, %v752
      %v819 = vrot.slane %v490, 7
      %v820 = vrot.slane %v819, 2
      %v821 = vrot.slane %v498, 7
      %v822 = vrot.slane %v821, 2
      %v823 = vrot.slane %v497, 7
      %v824 = vrot.slane %v823, 2
      %v825 = vrot.slane %v499, 7
      %v826 = vrot.slane %v825, 2
      %v827 = vrot.slane %v507, 7
      %v828 = vrot.slane %v827, 2
      %v829 = vrot.slane %v515, 7
      %v830 = vrot.slane %v829, 2
      %v831 = vrot.slane %v514, 7
      %v832 = vrot.slane %v831, 2
      %v833 = vrot.slane %v516, 7
      %v834 = vrot.slane %v833, 2
      %v835 = vrot.slane %v524, 7
      %v836 = vrot.slane %v835, 2
      %v837 = vrot.slane %v532, 7
      %v838 = vrot.slane %v837, 2
      %v839 = vrot.slane %v531, 7
      %v840 = vrot.slane %v839, 2
      %v841 = vrot.slane %v533, 7
      %v842 = vrot.slane %v841, 2
      %v843 = vrot.slane %v541, 7
      %v844 = vrot.slane %v843, 2
      %v845 = vrot.slane %v549, 7
      %v846 = vrot.slane %v845, 2
      %v847 = vrot.slane %v548, 7
      %v848 = vrot.slane %v847, 2
      %v849 = vrot.slane %v550, 7
      %v850 = vrot.slane %v849, 2
      %v851 = vrot.slane %v558, 7
      %v852 = vrot.slane %v851, 2
      %v853 = vrot.slane %v566, 7
      %v854 = vrot.slane %v853, 2
      %v855 = vrot.slane %v565, 7
      %v856 = vrot.slane %v855, 2
      %v857 = vrot.slane %v567, 7
      %v858 = vrot.slane %v857, 2
      %v859 = vrot.slane %v575, 7
      %v860 = vrot.slane %v859, 2
      %v861 = vrot.slane %v583, 7
      %v862 = vrot.slane %v861, 2
      %v863 = vrot.slane %v582, 7
      %v864 = vrot.slane %v863, 2
      %v865 = vrot.slane %v584, 7
      %v866 = vrot.slane %v865, 2
      %v867 = vrot.slane %v592, 7
      %v868 = vrot.slane %v867, 2
      %v869 = vrot.slane %v600, 7
      %v870 = vrot.slane %v869, 2
      %v871 = vrot.slane %v599, 7
      %v872 = vrot.slane %v871, 2
      %v873 = vrot.slane %v601, 7
      %v874 = vrot.slane %v873, 2
      %v875 = vrot.slane %v609, 7
      %v876 = vrot.slane %v875, 2
      %v877 = vrot.slane %v617, 7
      %v878 = vrot.slane %v877, 2
      %v879 = vrot.slane %v616, 7
      %v880 = vrot.slane %v879, 2
      %v881 = vrot.slane %v618, 7
      %v882 = vrot.slane %v881, 2
      %v883 = vrot.slane %v626, 7
      %v884 = vrot.slane %v883, 2
      %v885 = vrot.slane %v634, 7
      %v886 = vrot.slane %v885, 2
      %v887 = vrot.slane %v633, 7
      %v888 = vrot.slane %v887, 2
      %v889 = vrot.slane %v635, 7
      %v890 = vrot.slane %v889, 2
      %v891 = vrot.slane %v643, 7
      %v892 = vrot.slane %v891, 2
      %v893 = vrot.slane %v651, 7
      %v894 = vrot.slane %v893, 2
      %v895 = vrot.slane %v650, 7
      %v896 = vrot.slane %v895, 2
      %v897 = vrot.slane %v652, 7
      %v898 = vrot.slane %v897, 2
      %v899 = vrot.slane %v660, 7
      %v900 = vrot.slane %v899, 2
      %v901 = vrot.slane %v668, 7
      %v902 = vrot.slane %v901, 2
      %v903 = vrot.slane %v667, 7
      %v904 = vrot.slane %v903, 2
      %v905 = vrot.slane %v669, 7
      %v906 = vrot.slane %v905, 2
      %v907 = vrot.slane %v677, 7
      %v908 = vrot.slane %v907, 2
      %v909 = vrot.slane %v685, 7
      %v910 = vrot.slane %v909, 2
      %v911 = vrot.slane %v684, 7
      %v912 = vrot.slane %v911, 2
      %v913 = vrot.slane %v686, 7
      %v914 = vrot.slane %v913, 2
      %v915 = vrot.slane %v694, 7
      %v916 = vrot.slane %v915, 2
      %v917 = vrot.slane %v702, 7
      %v918 = vrot.slane %v917, 2
      %v919 = vrot.slane %v701, 7
      %v920 = vrot.slane %v919, 2
      %v921 = vrot.slane %v703, 7
      %v922 = vrot.slane %v921, 2
      %v923 = vrot.slane %v711, 7
      %v924 = vrot.slane %v923, 2
      %v925 = vrot.slane %v719, 7
      %v926 = vrot.slane %v925, 2
      %v927 = vrot.slane %v718, 7
      %v928 = vrot.slane %v927, 2
      %v929 = vrot.slane %v720, 7
      %v930 = vrot.slane %v929, 2
      %v931 = vrot.slane %v728, 7
      %v932 = vrot.slane %v931, 2
      %v933 = vrot.slane %v736, 7
      %v934 = vrot.slane %v933, 2
      %v935 = vrot.slane %v735, 7
      %v936 = vrot.slane %v935, 2
      %v937 = vrot.slane %v737, 7
      %v938 = vrot.slane %v937, 2
      %v939 = vrot.slane %v745, 7
      %v940 = vrot.slane %v939, 2
      %v941 = vrot.slane %v753, 7
      %v942 = vrot.slane %v941, 2
      %v943 = vrot.slane %v752, 7
      %v944 = vrot.slane %v943, 2
      %v945 = vrot.slane %v754, 7
      %v946 = vrot.slane %v945, 2
      %v1011 = vadd.f32 %v490, %v820
      %v1012 = vadd.f32 %v498, %v822
      %v1013 = vadd.f32 %v497, %v824
      %v1014 = vadd.f32 %v499, %v826
      %v1015 = vadd.f32 %v507, %v828
      %v1016 = vadd.f32 %v515, %v830
      %v1017 = vadd.f32 %v514, %v832
      %v1018 = vadd.f32 %v516, %v834
      %v1019 = vadd.f32 %v524, %v836
      %v1020 = vadd.f32 %v532, %v838
      %v1021 = vadd.f32 %v531, %v840
      %v1022 = vadd.f32 %v533, %v842
      %v1023 = vadd.f32 %v541, %v844
      %v1024 = vadd.f32 %v549, %v846
      %v1025 = vadd.f32 %v548, %v848
      %v1026 = vadd.f32 %v550, %v850
      %v1027 = vadd.f32 %v558, %v852
      %v1028 = vadd.f32 %v566, %v854
      %v1029 = vadd.f32 %v565, %v856
      %v1030 = vadd.f32 %v567, %v858
      %v1031 = vadd.f32 %v575, %v860
      %v1032 = vadd.f32 %v583, %v862
      %v1033 = vadd.f32 %v582, %v864
      %v1034 = vadd.f32 %v584, %v866
      %v1035 = vadd.f32 %v592, %v868
      %v1036 = vadd.f32 %v600, %v870
      %v1037 = vadd.f32 %v599, %v872
      %v1038 = vadd.f32 %v601, %v874
      %v1039 = vadd.f32 %v609, %v876
      %v1040 = vadd.f32 %v617, %v878
      %v1041 = vadd.f32 %v616, %v880
      %v1042 = vadd.f32 %v618, %v882
      %v1043 = vadd.f32 %v626, %v884
      %v1044 = vadd.f32 %v634, %v886
      %v1045 = vadd.f32 %v633, %v888
      %v1046 = vadd.f32 %v635, %v890
      %v1047 = vadd.f32 %v643, %v892
      %v1048 = vadd.f32 %v651, %v894
      %v1049 = vadd.f32 %v650, %v896
      %v1050 = vadd.f32 %v652, %v898
      %v1051 = vadd.f32 %v660, %v900
      %v1052 = vadd.f32 %v668, %v902
      %v1053 = vadd.f32 %v667, %v904
      %v1054 = vadd.f32 %v669, %v906
      %v1055 = vadd.f32 %v677, %v908
      %v1056 = vadd.f32 %v685, %v910
      %v1057 = vadd.f32 %v684, %v912
      %v1058 = vadd.f32 %v686, %v914
      %v1059 = vadd.f32 %v694, %v916
      %v1060 = vadd.f32 %v702, %v918
      %v1061 = vadd.f32 %v701, %v920
      %v1062 = vadd.f32 %v703, %v922
      %v1063 = vadd.f32 %v711, %v924
      %v1064 = vadd.f32 %v719, %v926
      %v1065 = vadd.f32 %v718, %v928
      %v1066 = vadd.f32 %v720, %v930
      %v1067 = vadd.f32 %v728, %v932
      %v1068 = vadd.f32 %v736, %v934
      %v1069 = vadd.f32 %v735, %v936
      %v1070 = vadd.f32 %v737, %v938
      %v1071 = vadd.f32 %v745, %v940
      %v1072 = vadd.f32 %v753, %v942
      %v1073 = vadd.f32 %v752, %v944
      %v1074 = vadd.f32 %v754, %v946
      %v1075 = vmul.f32 %v1011, 0.25
      %v1076 = vmul.f32 %v1012, 0.25
      %v1077 = vmul.f32 %v1013, 0.25
      %v1078 = vmul.f32 %v1014, 0.25
      %v1079 = vmul.f32 %v1015, 0.25
      %v1080 = vmul.f32 %v1016, 0.25
      %v1081 = vmul.f32 %v1017, 0.25
      %v1082 = vmul.f32 %v1018, 0.25
      %v1083 = vmul.f32 %v1019, 0.25
      %v1084 = vmul.f32 %v1020, 0.25
      %v1085 = vmul.f32 %v1021, 0.25
      %v1086 = vmul.f32 %v1022, 0.25
      %v1087 = vmul.f32 %v1023, 0.25
      %v1088 = vmul.f32 %v1024, 0.25
      %v1089 = vmul.f32 %v1025, 0.25
      %v1090 = vmul.f32 %v1026, 0.25
      %v1091 = vmul.f32 %v1027, 0.25
      %v1092 = vmul.f32 %v1028, 0.25
      %v1093 = vmul.f32 %v1029, 0.25
      %v1094 = vmul.f32 %v1030, 0.25
      %v1095 = vmul.f32 %v1031, 0.25
      %v1096 = vmul.f32 %v1032, 0.25
      %v1097 = vmul.f32 %v1033, 0.25
      %v1098 = vmul.f32 %v1034, 0.25
      %v1099 = vmul.f32 %v1035, 0.25
      %v1100 = vmul.f32 %v1036, 0.25
      %v1101 = vmul.f32 %v1037, 0.25
      %v1102 = vmul.f32 %v1038, 0.25
      %v1103 = vmul.f32 %v1039, 0.25
      %v1104 = vmul.f32 %v1040, 0.25
      %v1105 = vmul.f32 %v1041, 0.25
      %v1106 = vmul.f32 %v1042, 0.25
      %v1107 = vmul.f32 %v1043, 0.25
      %v1108 = vmul.f32 %v1044, 0.25
      %v1109 = vmul.f32 %v1045, 0.25
      %v1110 = vmul.f32 %v1046, 0.25
      %v1111 = vmul.f32 %v1047, 0.25
      %v1112 = vmul.f32 %v1048, 0.25
      %v1113 = vmul.f32 %v1049, 0.25
      %v1114 = vmul.f32 %v1050, 0.25
      %v1115 = vmul.f32 %v1051, 0.25
      %v1116 = vmul.f32 %v1052, 0.25
      %v1117 = vmul.f32 %v1053, 0.25
      %v1118 = vmul.f32 %v1054, 0.25
      %v1119 = vmul.f32 %v1055, 0.25
      %v1120 = vmul.f32 %v1056, 0.25
      %v1121 = vmul.f32 %v1057, 0.25
      %v1122 = vmul.f32 %v1058, 0.25
      %v1123 = vmul.f32 %v1059, 0.25
      %v1124 = vmul.f32 %v1060, 0.25
      %v1125 = vmul.f32 %v1061, 0.25
      %v1126 = vmul.f32 %v1062, 0.25
      %v1127 = vmul.f32 %v1063, 0.25
      %v1128 = vmul.f32 %v1064, 0.25
      %v1129 = vmul.f32 %v1065, 0.25
      %v1130 = vmul.f32 %v1066, 0.25
      %v1131 = vmul.f32 %v1067, 0.25
      %v1132 = vmul.f32 %v1068, 0.25
      %v1133 = vmul.f32 %v1069, 0.25
      %v1134 = vmul.f32 %v1070, 0.25
      %v1135 = vmul.f32 %v1071, 0.25
      %v1136 = vmul.f32 %v1072, 0.25
      %v1137 = vmul.f32 %v1073, 0.25
      %v1138 = vmul.f32 %v1074, 0.25
      %v1203 = vlaneseq
      %v1204 = vshrl.u32 %v1203, 7
      %v1205 = vsub.s32 0, %v1204
      %v1206 = vrot.slane %v1075, %v1205
      %v1207 = vlaneseq
      %v1208 = vshrl.u32 %v1207, 7
      %v1209 = vsub.s32 0, %v1208
      %v1210 = vrot.slane %v1076, %v1209
      %v1211 = vlaneseq
      %v1212 = vshrl.u32 %v1211, 7
      %v1213 = vsub.s32 0, %v1212
      %v1214 = vrot.slane %v1077, %v1213
      %v1215 = vlaneseq
      %v1216 = vshrl.u32 %v1215, 7
      %v1217 = vsub.s32 0, %v1216
      %v1218 = vrot.slane %v1078, %v1217
      %v1219 = vlaneseq
      %v1220 = vshrl.u32 %v1219, 7
      %v1221 = vsub.s32 0, %v1220
      %v1222 = vrot.slane %v1079, %v1221
      %v1223 = vlaneseq
      %v1224 = vshrl.u32 %v1223, 7
      %v1225 = vsub.s32 0, %v1224
      %v1226 = vrot.slane %v1080, %v1225
      %v1227 = vlaneseq
      %v1228 = vshrl.u32 %v1227, 7
      %v1229 = vsub.s32 0, %v1228
      %v1230 = vrot.slane %v1081, %v1229
      %v1231 = vlaneseq
      %v1232 = vshrl.u32 %v1231, 7
      %v1233 = vsub.s32 0, %v1232
      %v1234 = vrot.slane %v1082, %v1233
      %v1235 = vlaneseq
      %v1236 = vshrl.u32 %v1235, 7
      %v1237 = vsub.s32 0, %v1236
      %v1238 = vrot.slane %v1083, %v1237
      %v1239 = vlaneseq
      %v1240 = vshrl.u32 %v1239, 7
      %v1241 = vsub.s32 0, %v1240
      %v1242 = vrot.slane %v1084, %v1241
      %v1243 = vlaneseq
      %v1244 = vshrl.u32 %v1243, 7
      %v1245 = vsub.s32 0, %v1244
      %v1246 = vrot.slane %v1085, %v1245
      %v1247 = vlaneseq
      %v1248 = vshrl.u32 %v1247, 7
      %v1249 = vsub.s32 0, %v1248
      %v1250 = vrot.slane %v1086, %v1249
      %v1251 = vlaneseq
      %v1252 = vshrl.u32 %v1251, 7
      %v1253 = vsub.s32 0, %v1252
      %v1254 = vrot.slane %v1087, %v1253
      %v1255 = vlaneseq
      %v1256 = vshrl.u32 %v1255, 7
      %v1257 = vsub.s32 0, %v1256
      %v1258 = vrot.slane %v1088, %v1257
      %v1259 = vlaneseq
      %v1260 = vshrl.u32 %v1259, 7
      %v1261 = vsub.s32 0, %v1260
      %v1262 = vrot.slane %v1089, %v1261
      %v1263 = vlaneseq
      %v1264 = vshrl.u32 %v1263, 7
      %v1265 = vsub.s32 0, %v1264
      %v1266 = vrot.slane %v1090, %v1265
      %v1267 = vlaneseq
      %v1268 = vshrl.u32 %v1267, 7
      %v1269 = vsub.s32 0, %v1268
      %v1270 = vrot.slane %v1091, %v1269
      %v1271 = vlaneseq
      %v1272 = vshrl.u32 %v1271, 7
      %v1273 = vsub.s32 0, %v1272
      %v1274 = vrot.slane %v1092, %v1273
      %v1275 = vlaneseq
      %v1276 = vshrl.u32 %v1275, 7
      %v1277 = vsub.s32 0, %v1276
      %v1278 = vrot.slane %v1093, %v1277
      %v1279 = vlaneseq
      %v1280 = vshrl.u32 %v1279, 7
      %v1281 = vsub.s32 0, %v1280
      %v1282 = vrot.slane %v1094, %v1281
      %v1283 = vlaneseq
      %v1284 = vshrl.u32 %v1283, 7
      %v1285 = vsub.s32 0, %v1284
      %v1286 = vrot.slane %v1095, %v1285
      %v1287 = vlaneseq
      %v1288 = vshrl.u32 %v1287, 7
      %v1289 = vsub.s32 0, %v1288
      %v1290 = vrot.slane %v1096, %v1289
      %v1291 = vlaneseq
      %v1292 = vshrl.u32 %v1291, 7
      %v1293 = vsub.s32 0, %v1292
      %v1294 = vrot.slane %v1097, %v1293
      %v1295 = vlaneseq
      %v1296 = vshrl.u32 %v1295, 7
      %v1297 = vsub.s32 0, %v1296
      %v1298 = vrot.slane %v1098, %v1297
      %v1299 = vlaneseq
      %v1300 = vshrl.u32 %v1299, 7
      %v1301 = vsub.s32 0, %v1300
      %v1302 = vrot.slane %v1099, %v1301
      %v1303 = vlaneseq
      %v1304 = vshrl.u32 %v1303, 7
      %v1305 = vsub.s32 0, %v1304
      %v1306 = vrot.slane %v1100, %v1305
      %v1307 = vlaneseq
      %v1308 = vshrl.u32 %v1307, 7
      %v1309 = vsub.s32 0, %v1308
      %v1310 = vrot.slane %v1101, %v1309
      %v1311 = vlaneseq
      %v1312 = vshrl.u32 %v1311, 7
      %v1313 = vsub.s32 0, %v1312
      %v1314 = vrot.slane %v1102, %v1313
      %v1315 = vlaneseq
      %v1316 = vshrl.u32 %v1315, 7
      %v1317 = vsub.s32 0, %v1316
      %v1318 = vrot.slane %v1103, %v1317
      %v1319 = vlaneseq
      %v1320 = vshrl.u32 %v1319, 7
      %v1321 = vsub.s32 0, %v1320
      %v1322 = vrot.slane %v1104, %v1321
      %v1323 = vlaneseq
      %v1324 = vshrl.u32 %v1323, 7
      %v1325 = vsub.s32 0, %v1324
      %v1326 = vrot.slane %v1105, %v1325
      %v1327 = vlaneseq
      %v1328 = vshrl.u32 %v1327, 7
      %v1329 = vsub.s32 0, %v1328
      %v1330 = vrot.slane %v1106, %v1329
      %v1331 = vlaneseq
      %v1332 = vshrl.u32 %v1331, 7
      %v1333 = vsub.s32 0, %v1332
      %v1334 = vrot.slane %v1107, %v1333
      %v1335 = vlaneseq
      %v1336 = vshrl.u32 %v1335, 7
      %v1337 = vsub.s32 0, %v1336
      %v1338 = vrot.slane %v1108, %v1337
      %v1339 = vlaneseq
      %v1340 = vshrl.u32 %v1339, 7
      %v1341 = vsub.s32 0, %v1340
      %v1342 = vrot.slane %v1109, %v1341
      %v1343 = vlaneseq
      %v1344 = vshrl.u32 %v1343, 7
      %v1345 = vsub.s32 0, %v1344
      %v1346 = vrot.slane %v1110, %v1345
      %v1347 = vlaneseq
      %v1348 = vshrl.u32 %v1347, 7
      %v1349 = vsub.s32 0, %v1348
      %v1350 = vrot.slane %v1111, %v1349
      %v1351 = vlaneseq
      %v1352 = vshrl.u32 %v1351, 7
      %v1353 = vsub.s32 0, %v1352
      %v1354 = vrot.slane %v1112, %v1353
      %v1355 = vlaneseq
      %v1356 = vshrl.u32 %v1355, 7
      %v1357 = vsub.s32 0, %v1356
      %v1358 = vrot.slane %v1113, %v1357
      %v1359 = vlaneseq
      %v1360 = vshrl.u32 %v1359, 7
      %v1361 = vsub.s32 0, %v1360
      %v1362 = vrot.slane %v1114, %v1361
      %v1363 = vlaneseq
      %v1364 = vshrl.u32 %v1363, 7
      %v1365 = vsub.s32 0, %v1364
      %v1366 = vrot.slane %v1115, %v1365
      %v1367 = vlaneseq
      %v1368 = vshrl.u32 %v1367, 7
      %v1369 = vsub.s32 0, %v1368
      %v1370 = vrot.slane %v1116, %v1369
      %v1371 = vlaneseq
      %v1372 = vshrl.u32 %v1371, 7
      %v1373 = vsub.s32 0, %v1372
      %v1374 = vrot.slane %v1117, %v1373
      %v1375 = vlaneseq
      %v1376 = vshrl.u32 %v1375, 7
      %v1377 = vsub.s32 0, %v1376
      %v1378 = vrot.slane %v1118, %v1377
      %v1379 = vlaneseq
      %v1380 = vshrl.u32 %v1379, 7
      %v1381 = vsub.s32 0, %v1380
      %v1382 = vrot.slane %v1119, %v1381
      %v1383 = vlaneseq
      %v1384 = vshrl.u32 %v1383, 7
      %v1385 = vsub.s32 0, %v1384
      %v1386 = vrot.slane %v1120, %v1385
      %v1387 = vlaneseq
      %v1388 = vshrl.u32 %v1387, 7
      %v1389 = vsub.s32 0, %v1388
      %v1390 = vrot.slane %v1121, %v1389
      %v1391 = vlaneseq
      %v1392 = vshrl.u32 %v1391, 7
      %v1393 = vsub.s32 0, %v1392
      %v1394 = vrot.slane %v1122, %v1393
      %v1395 = vlaneseq
      %v1396 = vshrl.u32 %v1395, 7
      %v1397 = vsub.s32 0, %v1396
      %v1398 = vrot.slane %v1123, %v1397
      %v1399 = vlaneseq
      %v1400 = vshrl.u32 %v1399, 7
      %v1401 = vsub.s32 0, %v1400
      %v1402 = vrot.slane %v1124, %v1401
      %v1403 = vlaneseq
      %v1404 = vshrl.u32 %v1403, 7
      %v1405 = vsub.s32 0, %v1404
      %v1406 = vrot.slane %v1125, %v1405
      %v1407 = vlaneseq
      %v1408 = vshrl.u32 %v1407, 7
      %v1409 = vsub.s32 0, %v1408
      %v1410 = vrot.slane %v1126, %v1409
      %v1411 = vlaneseq
      %v1412 = vshrl.u32 %v1411, 7
      %v1413 = vsub.s32 0, %v1412
      %v1414 = vrot.slane %v1127, %v1413
      %v1415 = vlaneseq
      %v1416 = vshrl.u32 %v1415, 7
      %v1417 = vsub.s32 0, %v1416
      %v1418 = vrot.slane %v1128, %v1417
      %v1419 = vlaneseq
      %v1420 = vshrl.u32 %v1419, 7
      %v1421 = vsub.s32 0, %v1420
      %v1422 = vrot.slane %v1129, %v1421
      %v1423 = vlaneseq
      %v1424 = vshrl.u32 %v1423, 7
      %v1425 = vsub.s32 0, %v1424
      %v1426 = vrot.slane %v1130, %v1425
      %v1427 = vlaneseq
      %v1428 = vshrl.u32 %v1427, 7
      %v1429 = vsub.s32 0, %v1428
      %v1430 = vrot.slane %v1131, %v1429
      %v1431 = vlaneseq
      %v1432 = vshrl.u32 %v1431, 7
      %v1433 = vsub.s32 0, %v1432
      %v1434 = vrot.slane %v1132, %v1433
      %v1435 = vlaneseq
      %v1436 = vshrl.u32 %v1435, 7
      %v1437 = vsub.s32 0, %v1436
      %v1438 = vrot.slane %v1133, %v1437
      %v1439 = vlaneseq
      %v1440 = vshrl.u32 %v1439, 7
      %v1441 = vsub.s32 0, %v1440
      %v1442 = vrot.slane %v1134, %v1441
      %v1443 = vlaneseq
      %v1444 = vshrl.u32 %v1443, 7
      %v1445 = vsub.s32 0, %v1444
      %v1446 = vrot.slane %v1135, %v1445
      %v1447 = vlaneseq
      %v1448 = vshrl.u32 %v1447, 7
      %v1449 = vsub.s32 0, %v1448
      %v1450 = vrot.slane %v1136, %v1449
      %v1451 = vlaneseq
      %v1452 = vshrl.u32 %v1451, 7
      %v1453 = vsub.s32 0, %v1452
      %v1454 = vrot.slane %v1137, %v1453
      %v1455 = vlaneseq
      %v1456 = vshrl.u32 %v1455, 7
      %v1457 = vsub.s32 0, %v1456
      %v1458 = vrot.slane %v1138, %v1457
      %vm1459 = vcmask 1041409
      %v1460 = vsel %vm1459, %v1210, %v1206
      %vm1461 = vcmask 1042434
      %v1462 = vsel %vm1461, %v1214, %v1460
      %vm1463 = vcmask 1043459
      %v1464 = vsel %vm1463, %v1218, %v1462
      %vm1465 = vcmask 1044484
      %v1466 = vsel %vm1465, %v1222, %v1464
      %vm1467 = vcmask 1045509
      %v1468 = vsel %vm1467, %v1226, %v1466
      %vm1469 = vcmask 1046534
      %v1470 = vsel %vm1469, %v1230, %v1468
      %vm1471 = vcmask 1047559
      %v1472 = vsel %vm1471, %v1234, %v1470
      %v1473 = vsel %vm1459, %v1242, %v1238
      %v1474 = vsel %vm1461, %v1246, %v1473
      %v1475 = vsel %vm1463, %v1250, %v1474
      %v1476 = vsel %vm1465, %v1254, %v1475
      %v1477 = vsel %vm1467, %v1258, %v1476
      %v1478 = vsel %vm1469, %v1262, %v1477
      %v1479 = vsel %vm1471, %v1266, %v1478
      %v1480 = vsel %vm1459, %v1274, %v1270
      %v1481 = vsel %vm1461, %v1278, %v1480
      %v1482 = vsel %vm1463, %v1282, %v1481
      %v1483 = vsel %vm1465, %v1286, %v1482
      %v1484 = vsel %vm1467, %v1290, %v1483
      %v1485 = vsel %vm1469, %v1294, %v1484
      %v1486 = vsel %vm1471, %v1298, %v1485
      %v1487 = vsel %vm1459, %v1306, %v1302
      %v1488 = vsel %vm1461, %v1310, %v1487
      %v1489 = vsel %vm1463, %v1314, %v1488
      %v1490 = vsel %vm1465, %v1318, %v1489
      %v1491 = vsel %vm1467, %v1322, %v1490
      %v1492 = vsel %vm1469, %v1326, %v1491
      %v1493 = vsel %vm1471, %v1330, %v1492
      %v1494 = vsel %vm1459, %v1338, %v1334
      %v1495 = vsel %vm1461, %v1342, %v1494
      %v1496 = vsel %vm1463, %v1346, %v1495
      %v1497 = vsel %vm1465, %v1350, %v1496
      %v1498 = vsel %vm1467, %v1354, %v1497
      %v1499 = vsel %vm1469, %v1358, %v1498
      %v1500 = vsel %vm1471, %v1362, %v1499
      %v1501 = vsel %vm1459, %v1370, %v1366
      %v1502 = vsel %vm1461, %v1374, %v1501
      %v1503 = vsel %vm1463, %v1378, %v1502
      %v1504 = vsel %vm1465, %v1382, %v1503
      %v1505 = vsel %vm1467, %v1386, %v1504
      %v1506 = vsel %vm1469, %v1390, %v1505
      %v1507 = vsel %vm1471, %v1394, %v1506
      %v1508 = vsel %vm1459, %v1402, %v1398
      %v1509 = vsel %vm1461, %v1406, %v1508
      %v1510 = vsel %vm1463, %v1410, %v1509
      %v1511 = vsel %vm1465, %v1414, %v1510
      %v1512 = vsel %vm1467, %v1418, %v1511
      %v1513 = vsel %vm1469, %v1422, %v1512
      %v1514 = vsel %vm1471, %v1426, %v1513
      %v1515 = vsel %vm1459, %v1434, %v1430
      %v1516 = vsel %vm1461, %v1438, %v1515
      %v1517 = vsel %vm1463, %v1442, %v1516
      %v1518 = vsel %vm1465, %v1446, %v1517
      %v1519 = vsel %vm1467, %v1450, %v1518
      %v1520 = vsel %vm1469, %v1454, %v1519
      %v1521 = vsel %vm1471, %v1458, %v1520
      %vm1530 = vcmask 64512
      %1531 = vst.msk [vmem:[%s211] sm:$0xff] %vm1530, %v1472
      %1532 = vst.msk [vmem:[%s211 + $0x8] sm:$0xff] %vm1530, %v1479
      %1533 = vst.msk [vmem:[%s211 + $0x10] sm:$0xff] %vm1530, %v1486
      %1534 = vst.msk [vmem:[%s211 + $0x18] sm:$0xff] %vm1530, %v1493
      %1535 = vst.msk [vmem:[%s211 + $0x20] sm:$0xff] %vm1530, %v1500
      %1536 = vst.msk [vmem:[%s211 + $0x28] sm:$0xff] %vm1530, %v1507
      %1537 = vst.msk [vmem:[%s211 + $0x30] sm:$0xff] %vm1530, %v1514
      %1538 = vst.msk [vmem:[%s211 + $0x38] sm:$0xff] %vm1530, %v1521
      %s1539 = smul.u32 8, %s19
      %p1540 = scmp.lt.s32.totalorder %s18, 1
      %s1541 = scalar_select %p1540, %s18, 1
      %p1542 = scmp.lt.s32.totalorder %s1539, 7
      %s1543 = scalar_select %p1542, %s1539, 7
      %s1544 = smul.addr %s1541, 8
      %s1545 = sadd.s32 %s1543, %s1544
      %s1546 = smul.addr %s1545, 8
      %s1547 = scalar_lea.vmem %s3, %s1546
      // Predicated region
      $region33: #{discriminator_block_forward.3} parent=31 // pred_check
        %p1548 = pneg %p116
      $region34: #{discriminator_block_forward.3} parent=31 // pred_check_branch
        %1550 = sbr.rel (%p1548) target = $region36
      $region35: #{discriminator_block_forward.3} parent=31 // pred_region
        %s1551 = smul.u32 8, %s19
      $region36: #{discriminator_block_forward.3} parent=31 // pred_fallthru
        _
    $region32: #{discriminator_block_forward.3} parent=5 // pred_fallthru
      _
    %p1552 = scmp.le.s32.totalorder 2, %s9
    // Predicated region
    $region37: #{discriminator_block_forward.3} parent=5 // pred_check
      %p1553 = pneg %p1552
    $region38: #{discriminator_block_forward.3} parent=5 // pred_check_branch
      %1555 = sbr.rel (%p1553) target = $region40
    $region39: #{discriminator_block_forward.3} parent=5 // pred_region
      %s1556 = ssub.s32 %s9, 2
      // Predicated region
      $region41: #{discriminator_block_forward.3} parent=39 // pred_check
        %p1557 = pneg %p122
      $region42: #{discriminator_block_forward.3} parent=39 // pred_check_branch
        %1559 = sbr.rel (%p1557) target = $region44
      $region43: #{discriminator_block_forward.3} parent=39 // pred_region
        %s1560 = smul.u32 8, %s21
        %p1561 = scmp.lt.s32.totalorder %s20, 1
        %s1562 = scalar_select %p1561, %s20, 1
        %p1563 = scmp.lt.s32.totalorder %s1560, 7
        %s1564 = scalar_select %p1563, %s1560, 7
        %s1565 = smul.addr %s1562, 8
        %s1566 = sadd.s32 %s1564, %s1565
        %s1567 = smul.addr %s1566, 8
        %s1568 = scalar_lea.vmem %s3, %s1567
      $region44: #{discriminator_block_forward.3} parent=39 // pred_fallthru
        _
    $region40: #{discriminator_block_forward.3} parent=5 // pred_fallthru
      _
  $region6: #{discriminator_block_forward.3} parent=0 // loop_footer
    %s13 = sadd.s32 1, %s9
  $region7: #{discriminator_block_forward.3} parent=0 // loop_footer_branch
    %8 = sbr.rel target = $region3
  $region8: #{discriminator_block_forward.3} parent=0 // loop_exit
    _

// kernel: discriminator_block_forward.2
$region0: #{discriminator_block_forward.2}
  #allocation0 [shape = 'u32[]', space=smem, size = 0x4, offset = 0x4, fixed_abs, tag = 'smem constant byte address 0x4 - core index']
  #allocation1 [shape = 'u32[144,128]{1,0:T(1,128)}', space=vmem, size = 0x12000, scoped, tag = 'internal scratch']
  %s0 = inlined_call_operand.vmem [shape: bf16[2,18,32,4], index: 0, kind: input, shape index: {}]
  %s1 = inlined_call_operand.vmem [shape: bf16[9,4,8], index: 1, kind: input, shape index: {}]
  %s2 = inlined_call_operand.vmem [shape: bf16[2,16,16,8], index: 2, kind: output, shape index: {0}]
  %s3 = inlined_call_operand.vmem [shape: f32[2,1,8], index: 3, kind: output, shape index: {1}]
  %s4 = inlined_call_operand.vmem [shape: f32[2,1,8], index: 4, kind: output, shape index: {2}]
  %5 = xla_tuple %s2, %s3, %s4
  %s6 = sld [smem:[#allocation0]]
  $region57: #{discriminator_block_forward.2} parent=0
    _
  %s8 = ssub.s32 1, %s6
  %s9 = scalar_select 0, %s8, %s6
  loop: start=0, step=1, limit=4
  $region2: #{discriminator_block_forward.2} parent=0 // loop_pre_header
    _
  $region3: #{discriminator_block_forward.2} parent=0 // loop_header
    %s11 = sphi 0, %s15
    %p12 = scmp.ge.s32.totalorder %s11, 4
    %s18 = sphi 0, %s30
    %s19 = sphi 0, %s26
    %s20 = sphi 0, %s18
    %s21 = sphi 0, %s19
    %s22 = sphi 0, %s20
    %s23 = sphi 0, %s21
    %s35 = sphi 0, %s37
    %s38 = sphi 0, %s35
    %s39 = sphi 0, %s38
    %s55 = sphi 0, %s39
    %s59 = sphi 0, %s59
    %s61 = sphi 0, %s59
    %s62 = sphi 0, %s61
    %s76 = sphi 0, %s62
    %s84 = sphi 0, %s86
    %s87 = sphi 0, %s84
    %s88 = sphi 0, %s87
    %s104 = sphi 0, %s88
    %s112 = sphi 0, %s114
    %s115 = sphi 0, %s112
    %s116 = sphi 0, %s115
    %s132 = sphi 0, %s116
    %s140 = sphi 0, %s142
    %s143 = sphi 0, %s140
    %s144 = sphi 0, %s143
    %s160 = sphi 0, %s144
  $region4: #{discriminator_block_forward.2} parent=0 // loop_header_branch
    %14 = sbr.rel (%p12) target = $region8
  $region5: #{discriminator_block_forward.2} parent=0 // loop_body
    %s16 = ssub.s32 %s11, 1
    %s17 = ssub.s32 %s11, 2
    %s24 = sadd.s32 1, %s19
    %p25 = scmp.ge.s32.totalorder %s24, 1
    %s26 = scalar_select %p25, 0, %s24
    %s27 = sadd.s32 1, %s18
    %s28 = scalar_select %p25, %s27, %s18
    %p29 = scmp.ge.s32.totalorder %s28, 2
    %s30 = scalar_select %p29, 0, %s28
    %s31 = sadd.s32 %s18, %s19
    %s32 = sadd.s32 %s30, %s26
    %s33 = ssub.s32 %s31, %s32
    %p34 = scmp.eq.s32.totalorder %s33, 0
    %s36 = sadd.s32 %s35, 1
    %s37 = scalar_select %p34, %s35, %s36
    %p40 = pneg %p34
    %p41 = scmp.eq.s32.totalorder %s11, 1
    %p42 = por %p40, %p41
    %p43 = scmp.ne.s32.totalorder %s35, %s38
    %p44 = scmp.eq.s32.totalorder %s11, 0
    %p45 = por %p43, %p44
    %p46 = scmp.ne.s32.totalorder %s35, %s38
    %p47 = scmp.eq.s32.totalorder %s16, 1
    %p48 = por %p46, %p47
    %p49 = scmp.ne.s32.totalorder %s38, %s39
    %p50 = scmp.eq.s32.totalorder %s16, 0
    %p51 = por %p49, %p50
    %p52 = scmp.ne.s32.totalorder %s38, %s39
    %p53 = scmp.eq.s32.totalorder %s17, 1
    %p54 = por %p52, %p53
    %p56 = scmp.ne.s32.totalorder %s39, %s55
    %p57 = scmp.eq.s32.totalorder %s17, 0
    %p58 = por %p56, %p57
    %s60 = sadd.s32 %s59, 1
    %p63 = scmp.eq.s32.totalorder %s11, 1
    %p64 = scmp.ne.s32.totalorder %s59, %s61
    %p65 = scmp.eq.s32.totalorder %s11, 0
    %p66 = por %p64, %p65
    %p67 = scmp.ne.s32.totalorder %s59, %s61
    %p68 = scmp.eq.s32.totalorder %s16, 1
    %p69 = por %p67, %p68
    %p70 = scmp.ne.s32.totalorder %s61, %s62
    %p71 = scmp.eq.s32.totalorder %s16, 0
    %p72 = por %p70, %p71
    %p73 = scmp.ne.s32.totalorder %s61, %s62
    %p74 = scmp.eq.s32.totalorder %s17, 1
    %p75 = por %p73, %p74
    %p77 = scmp.ne.s32.totalorder %s62, %s76
    %p78 = scmp.eq.s32.totalorder %s17, 0
    %p79 = por %p77, %p78
    %s80 = ssub.s32 %s18, %s30
    %s81 = ssub.s32 %s19, %s26
    %s82 = sor.u32 %s80, %s81
    %p83 = scmp.eq.s32.totalorder %s82, 0
    %s85 = sadd.s32 %s84, 1
    %s86 = scalar_select %p83, %s84, %s85
    %p89 = pneg %p83
    %p90 = scmp.eq.s32.totalorder %s11, 1
    %p91 = por %p89, %p90
    %p92 = scmp.ne.s32.totalorder %s84, %s87
    %p93 = scmp.eq.s32.totalorder %s11, 0
    %p94 = por %p92, %p93
    %p95 = scmp.ne.s32.totalorder %s84, %s87
    %p96 = scmp.eq.s32.totalorder %s16, 1
    %p97 = por %p95, %p96
    %p98 = scmp.ne.s32.totalorder %s87, %s88
    %p99 = scmp.eq.s32.totalorder %s16, 0
    %p100 = por %p98, %p99
    %p101 = scmp.ne.s32.totalorder %s87, %s88
    %p102 = scmp.eq.s32.totalorder %s17, 1
    %p103 = por %p101, %p102
    %p105 = scmp.ne.s32.totalorder %s88, %s104
    %p106 = scmp.eq.s32.totalorder %s17, 0
    %p107 = por %p105, %p106
    %s108 = sadd.s32 %s18, %s19
    %s109 = sadd.s32 %s30, %s26
    %s110 = ssub.s32 %s108, %s109
    %p111 = scmp.eq.s32.totalorder %s110, 0
    %s113 = sadd.s32 %s112, 1
    %s114 = scalar_select %p111, %s112, %s113
    %p117 = pneg %p111
    %p118 = scmp.eq.s32.totalorder %s11, 1
    %p119 = por %p117, %p118
    %p120 = scmp.ne.s32.totalorder %s112, %s115
    %p121 = scmp.eq.s32.totalorder %s11, 0
    %p122 = por %p120, %p121
    %p123 = scmp.ne.s32.totalorder %s112, %s115
    %p124 = scmp.eq.s32.totalorder %s16, 1
    %p125 = por %p123, %p124
    %p126 = scmp.ne.s32.totalorder %s115, %s116
    %p127 = scmp.eq.s32.totalorder %s16, 0
    %p128 = por %p126, %p127
    %p129 = scmp.ne.s32.totalorder %s115, %s116
    %p130 = scmp.eq.s32.totalorder %s17, 1
    %p131 = por %p129, %p130
    %p133 = scmp.ne.s32.totalorder %s116, %s132
    %p134 = scmp.eq.s32.totalorder %s17, 0
    %p135 = por %p133, %p134
    %s136 = sadd.s32 %s18, %s19
    %s137 = sadd.s32 %s30, %s26
    %s138 = ssub.s32 %s136, %s137
    %p139 = scmp.eq.s32.totalorder %s138, 0
    %s141 = sadd.s32 %s140, 1
    %s142 = scalar_select %p139, %s140, %s141
    %p145 = pneg %p139
    %p146 = scmp.eq.s32.totalorder %s11, 1
    %p147 = por %p145, %p146
    %p148 = scmp.ne.s32.totalorder %s140, %s143
    %p149 = scmp.eq.s32.totalorder %s11, 0
    %p150 = por %p148, %p149
    %p151 = scmp.ne.s32.totalorder %s140, %s143
    %p152 = scmp.eq.s32.totalorder %s16, 1
    %p153 = por %p151, %p152
    %p154 = scmp.ne.s32.totalorder %s143, %s144
    %p155 = scmp.eq.s32.totalorder %s16, 0
    %p156 = por %p154, %p155
    %p157 = scmp.ne.s32.totalorder %s143, %s144
    %p158 = scmp.eq.s32.totalorder %s17, 1
    %p159 = por %p157, %p158
    %p161 = scmp.ne.s32.totalorder %s144, %s160
    %p162 = scmp.eq.s32.totalorder %s17, 0
    %p163 = por %p161, %p162
    %p164 = scmp.le.s32.totalorder 1, %s11
    %p165 = scmp.lt.s32.totalorder %s11, 3
    %p166 = pnand %p164, %p165
    %p167 = pneg %p166
    // Predicated region
    $region9: #{discriminator_block_forward.2} parent=5 // pred_check
      _
    $region10: #{discriminator_block_forward.2} parent=5 // pred_check_branch
      %169 = sbr.rel (%p166) target = $region12
    $region11: #{discriminator_block_forward.2} parent=5 // pred_region
      %s170 = ssub.s32 %s11, 1
      // Predicated region
      $region13: #{discriminator_block_forward.2} parent=11 // pred_check
        %p171 = pneg %p72
      $region14: #{discriminator_block_forward.2} parent=11 // pred_check_branch
        %173 = sbr.rel (%p171) target = $region16
      $region15: #{discriminator_block_forward.2} parent=11 // pred_region
        _
      $region16: #{discriminator_block_forward.2} parent=11 // pred_fallthru
        _
    $region12: #{discriminator_block_forward.2} parent=5 // pred_fallthru
      _
    %p174 = scmp.lt.s32.totalorder %s11, 2
    // Predicated region
    $region17: #{discriminator_block_forward.2} parent=5 // pred_check
      %p175 = pneg %p174
    $region18: #{discriminator_block_forward.2} parent=5 // pred_check_branch
      %177 = sbr.rel (%p175) target = $region20
    $region19: #{discriminator_block_forward.2} parent=5 // pred_region
      // Predicated region
      $region21: #{discriminator_block_forward.2} parent=19 // pred_check
        %p178 = pneg %p45
      $region22: #{discriminator_block_forward.2} parent=19 // pred_check_branch
        %180 = sbr.rel (%p178) target = $region24
      $region23: #{discriminator_block_forward.2} parent=19 // pred_region
        %s181 = sadd.s32 %s18, %s19
        %p182 = scmp.lt.s32.totalorder %s181, 1
        %s183 = scalar_select %p182, %s181, 1
        %s184 = smul.addr %s183, 72
        %s185 = smul.addr %s184, 4
        %s186 = scalar_lea.vmem %s0, %s185
        %s187 = sadd.s32 %s18, %s19
      $region24: #{discriminator_block_forward.2} parent=19 // pred_fallthru
        _
    $region20: #{discriminator_block_forward.2} parent=5 // pred_fallthru
      _
    %p188 = scmp.le.s32.totalorder 1, %s11
    %p189 = scmp.lt.s32.totalorder %s11, 3
    %p190 = pnand %p188, %p189
    %p191 = pneg %p190
    // Predicated region
    $region25: #{discriminator_block_forward.2} parent=5 // pred_check
      _
    $region26: #{discriminator_block_forward.2} parent=5 // pred_check_branch
      %193 = sbr.rel (%p190) target = $region28
    $region27: #{discriminator_block_forward.2} parent=5 // pred_region
      %s194 = ssub.s32 %s11, 1
      %s195 = sadd.s32 %s20, %s21
      %p196 = scmp.lt.s32.totalorder %s195, 1
      %s197 = scalar_select %p196, %s195, 1
      %s198 = smul.addr %s197, 72
      %s199 = smul.addr %s198, 4
      %s200 = scalar_lea.vmem %s0, %s199
      %p201 = pneg %p51
      %p202 = pneg %p48
      %p203 = pneg %p72
      %p204 = pneg %p69
      %p205 = pneg %p100
      %p206 = pneg %p97
      %s207 = smul.u32 16, %s21
      %p208 = scmp.lt.s32.totalorder %s20, 1
      %s209 = scalar_select %p208, %s20, 1
      %p210 = scmp.lt.s32.totalorder %s207, 15
      %s211 = scalar_select %p210, %s207, 15
      %s212 = smul.addr %s211, 2
      %s213 = smul.addr %s209, 32
      %s214 = sadd.s32 %s212, %s213
      %s215 = smul.addr %s214, 4
      %s216 = scalar_lea.vmem %s2, %s215
      %p217 = pneg %p128
      %p218 = pneg %p125
      %s219 = sadd.s32 %s20, %s21
      %p220 = scmp.lt.s32.totalorder %s219, 1
      %s221 = scalar_select %p220, %s219, 1
      %s222 = scalar_lea.vmem %s3, %s221
      %p223 = pneg %p156
      %p224 = pneg %p153
      %s225 = sadd.s32 %s20, %s21
      %p226 = scmp.lt.s32.totalorder %s225, 1
      %s227 = scalar_select %p226, %s225, 1
      %s228 = scalar_lea.vmem %s4, %s227
      %s229 = sadd.s32 %s20, %s21
      %p230 = scmp.lt.s32.totalorder %s229, 1
      %s231 = scalar_select %p230, %s229, 1
      %s232 = smul.addr %s231, 72
      %s233 = smul.addr %s232, 4
      %s234 = scalar_lea.vmem %s0, %s233
      %s235 = sadd.s32 %s20, %s21
      %s236 = smul.u32 16, %s21
      %p237 = scmp.lt.s32.totalorder %s20, 1
      %s238 = scalar_select %p237, %s20, 1
      %p239 = scmp.lt.s32.totalorder %s236, 15
      %s240 = scalar_select %p239, %s236, 15
      %s241 = smul.addr %s240, 2
      %s242 = smul.addr %s238, 32
      %s243 = sadd.s32 %s241, %s242
      %s244 = smul.addr %s243, 4
      %s245 = scalar_lea.vmem %s2, %s244
      %s246 = smul.u32 16, %s21
      %s247 = sadd.s32 %s20, %s21
      %p248 = scmp.lt.s32.totalorder %s247, 1
      %s249 = scalar_select %p248, %s247, 1
      %s250 = scalar_lea.vmem %s3, %s249
      %s251 = sadd.s32 %s20, %s21
      %s252 = sadd.s32 %s20, %s21
      %p253 = scmp.lt.s32.totalorder %s252, 1
      %s254 = scalar_select %p253, %s252, 1
      %s255 = scalar_lea.vmem %s4, %s254
      %s256 = sadd.s32 %s20, %s21
      %v258 = vld [vmem:[%s234] sm:$0xf]
      %v259 = vld [vmem:[%s234 + $0x4] sm:$0xf]
      %v260 = vld [vmem:[%s234 + $0x8] sm:$0xf]
      %v261 = vld [vmem:[%s234 + $0xc] sm:$0xf]
      %v262 = vld [vmem:[%s234 + $0x10] sm:$0xf]
      %v263 = vld [vmem:[%s234 + $0x14] sm:$0xf]
      %v264 = vld [vmem:[%s234 + $0x18] sm:$0xf]
      %v265 = vld [vmem:[%s234 + $0x1c] sm:$0xf]
      %v266 = vld [vmem:[%s234 + $0x20] sm:$0xf]
      %v267 = vld [vmem:[%s234 + $0x24] sm:$0xf]
      %v268 = vld [vmem:[%s234 + $0x28] sm:$0xf]
      %v269 = vld [vmem:[%s234 + $0x2c] sm:$0xf]
      %v270 = vld [vmem:[%s234 + $0x30] sm:$0xf]
      %v271 = vld [vmem:[%s234 + $0x34] sm:$0xf]
      %v272 = vld [vmem:[%s234 + $0x38] sm:$0xf]
      %v273 = vld [vmem:[%s234 + $0x3c] sm:$0xf]
      %v274 = vld [vmem:[%s234 + $0x40] sm:$0xf]
      %v275 = vld [vmem:[%s234 + $0x44] sm:$0xf]
      %v276 = vld [vmem:[%s234 + $0x48] sm:$0xf]
      %v277 = vld [vmem:[%s234 + $0x4c] sm:$0xf]
      %v278 = vld [vmem:[%s234 + $0x50] sm:$0xf]
      %v279 = vld [vmem:[%s234 + $0x54] sm:$0xf]
      %v280 = vld [vmem:[%s234 + $0x58] sm:$0xf]
      %v281 = vld [vmem:[%s234 + $0x5c] sm:$0xf]
      %v282 = vld [vmem:[%s234 + $0x60] sm:$0xf]
      %v283 = vld [vmem:[%s234 + $0x64] sm:$0xf]
      %v284 = vld [vmem:[%s234 + $0x68] sm:$0xf]
      %v285 = vld [vmem:[%s234 + $0x6c] sm:$0xf]
      %v286 = vld [vmem:[%s234 + $0x70] sm:$0xf]
      %v287 = vld [vmem:[%s234 + $0x74] sm:$0xf]
      %v288 = vld [vmem:[%s234 + $0x78] sm:$0xf]
      %v289 = vld [vmem:[%s234 + $0x7c] sm:$0xf]
      %v290 = vld [vmem:[%s234 + $0x80] sm:$0xf]
      %v291 = vld [vmem:[%s234 + $0x84] sm:$0xf]
      %v292 = vld [vmem:[%s234 + $0x88] sm:$0xf]
      %v293 = vld [vmem:[%s234 + $0x8c] sm:$0xf]
      %v294 = vld [vmem:[%s234 + $0x90] sm:$0xf]
      %v295 = vld [vmem:[%s234 + $0x94] sm:$0xf]
      %v296 = vld [vmem:[%s234 + $0x98] sm:$0xf]
      %v297 = vld [vmem:[%s234 + $0x9c] sm:$0xf]
      %v298 = vld [vmem:[%s234 + $0xa0] sm:$0xf]
      %v299 = vld [vmem:[%s234 + $0xa4] sm:$0xf]
      %v300 = vld [vmem:[%s234 + $0xa8] sm:$0xf]
      %v301 = vld [vmem:[%s234 + $0xac] sm:$0xf]
      %v302 = vld [vmem:[%s234 + $0xb0] sm:$0xf]
      %v303 = vld [vmem:[%s234 + $0xb4] sm:$0xf]
      %v304 = vld [vmem:[%s234 + $0xb8] sm:$0xf]
      %v305 = vld [vmem:[%s234 + $0xbc] sm:$0xf]
      %v306 = vld [vmem:[%s234 + $0xc0] sm:$0xf]
      %v307 = vld [vmem:[%s234 + $0xc4] sm:$0xf]
      %v308 = vld [vmem:[%s234 + $0xc8] sm:$0xf]
      %v309 = vld [vmem:[%s234 + $0xcc] sm:$0xf]
      %v310 = vld [vmem:[%s234 + $0xd0] sm:$0xf]
      %v311 = vld [vmem:[%s234 + $0xd4] sm:$0xf]
      %v312 = vld [vmem:[%s234 + $0xd8] sm:$0xf]
      %v313 = vld [vmem:[%s234 + $0xdc] sm:$0xf]
      %v314 = vld [vmem:[%s234 + $0xe0] sm:$0xf]
      %v315 = vld [vmem:[%s234 + $0xe4] sm:$0xf]
      %v316 = vld [vmem:[%s234 + $0xe8] sm:$0xf]
      %v317 = vld [vmem:[%s234 + $0xec] sm:$0xf]
      %v318 = vld [vmem:[%s234 + $0xf0] sm:$0xf]
      %v319 = vld [vmem:[%s234 + $0xf4] sm:$0xf]
      %v320 = vld [vmem:[%s234 + $0xf8] sm:$0xf]
      %v321 = vld [vmem:[%s234 + $0xfc] sm:$0xf]
      %v322 = vld [vmem:[%s234 + $0x100] sm:$0xf]
      %v323 = vld [vmem:[%s234 + $0x104] sm:$0xf]
      %v324 = vld [vmem:[%s234 + $0x108] sm:$0xf]
      %v325 = vld [vmem:[%s234 + $0x10c] sm:$0xf]
      %v326 = vld [vmem:[%s234 + $0x110] sm:$0xf]
      %v327 = vld [vmem:[%s234 + $0x114] sm:$0xf]
      %v328 = vld [vmem:[%s234 + $0x118] sm:$0xf]
      %v329 = vld [vmem:[%s234 + $0x11c] sm:$0xf]
      %v330 = vld [vmem:[%s1] sm:$0x3]
      %s331 = scalar_lea.vmem %s1, 2
      %v332 = vld [vmem:[%s331] sm:$0x3]
      %v397 = vunpack.c.l.b16 %v258
      %v398 = vunpack.c.l.b16 %v259
      %v399 = vunpack.c.l.b16 %v260
      %v400 = vunpack.c.l.b16 %v261
      %v401 = vunpack.c.l.b16 %v262
      %v402 = vunpack.c.l.b16 %v263
      %v403 = vunpack.c.l.b16 %v264
      %v404 = vunpack.c.l.b16 %v265
      %v405 = vunpack.c.l.b16 %v266
      %v406 = vunpack.c.l.b16 %v267
      %v407 = vunpack.c.l.b16 %v268
      %v408 = vunpack.c.l.b16 %v269
      %v409 = vunpack.c.l.b16 %v270
      %v410 = vunpack.c.l.b16 %v271
      %v411 = vunpack.c.l.b16 %v272
      %v412 = vunpack.c.l.b16 %v273
      %v413 = vunpack.c.l.b16 %v274
      %v414 = vunpack.c.l.b16 %v275
      %v415 = vunpack.c.l.b16 %v276
      %v416 = vunpack.c.l.b16 %v277
      %v417 = vunpack.c.l.b16 %v278
      %v418 = vunpack.c.l.b16 %v279
      %v419 = vunpack.c.l.b16 %v280
      %v420 = vunpack.c.l.b16 %v281
      %v421 = vunpack.c.l.b16 %v282
      %v422 = vunpack.c.l.b16 %v283
      %v423 = vunpack.c.l.b16 %v284
      %v424 = vunpack.c.l.b16 %v285
      %v425 = vunpack.c.l.b16 %v286
      %v426 = vunpack.c.l.b16 %v287
      %v427 = vunpack.c.l.b16 %v288
      %v428 = vunpack.c.l.b16 %v289
      %v429 = vunpack.c.l.b16 %v290
      %v430 = vunpack.c.l.b16 %v291
      %v431 = vunpack.c.l.b16 %v292
      %v432 = vunpack.c.l.b16 %v293
      %v433 = vunpack.c.l.b16 %v294
      %v434 = vunpack.c.l.b16 %v295
      %v435 = vunpack.c.l.b16 %v296
      %v436 = vunpack.c.l.b16 %v297
      %v437 = vunpack.c.l.b16 %v298
      %v438 = vunpack.c.l.b16 %v299
      %v439 = vunpack.c.l.b16 %v300
      %v440 = vunpack.c.l.b16 %v301
      %v441 = vunpack.c.l.b16 %v302
      %v442 = vunpack.c.l.b16 %v303
      %v443 = vunpack.c.l.b16 %v304
      %v444 = vunpack.c.l.b16 %v305
      %v445 = vunpack.c.l.b16 %v306
      %v446 = vunpack.c.l.b16 %v307
      %v447 = vunpack.c.l.b16 %v308
      %v448 = vunpack.c.l.b16 %v309
      %v449 = vunpack.c.l.b16 %v310
      %v450 = vunpack.c.l.b16 %v311
      %v451 = vunpack.c.l.b16 %v312
      %v452 = vunpack.c.l.b16 %v313
      %v453 = vunpack.c.l.b16 %v314
      %v454 = vunpack.c.l.b16 %v315
      %v455 = vunpack.c.l.b16 %v316
      %v456 = vunpack.c.l.b16 %v317
      %v457 = vunpack.c.l.b16 %v318
      %v458 = vunpack.c.l.b16 %v319
      %v459 = vunpack.c.l.b16 %v320
      %v460 = vunpack.c.l.b16 %v321
      %v461 = vpack.c.b16 %v398, %v397
      %v462 = vpack.c.b16 %v400, %v399
      %v463 = vpack.c.b16 %v402, %v401
      %v464 = vpack.c.b16 %v404, %v403
      %v465 = vpack.c.b16 %v406, %v405
      %v466 = vpack.c.b16 %v408, %v407
      %v467 = vpack.c.b16 %v410, %v409
      %v468 = vpack.c.b16 %v412, %v411
      %v469 = vpack.c.b16 %v414, %v413
      %v470 = vpack.c.b16 %v416, %v415
      %v471 = vpack.c.b16 %v418, %v417
      %v472 = vpack.c.b16 %v420, %v419
      %v473 = vpack.c.b16 %v422, %v421
      %v474 = vpack.c.b16 %v424, %v423
      %v475 = vpack.c.b16 %v426, %v425
      %v476 = vpack.c.b16 %v428, %v427
      %v477 = vpack.c.b16 %v430, %v429
      %v478 = vpack.c.b16 %v432, %v431
      %v479 = vpack.c.b16 %v434, %v433
      %v480 = vpack.c.b16 %v436, %v435
      %v481 = vpack.c.b16 %v438, %v437
      %v482 = vpack.c.b16 %v440, %v439
      %v483 = vpack.c.b16 %v442, %v441
      %v484 = vpack.c.b16 %v444, %v443
      %v485 = vpack.c.b16 %v446, %v445
      %v486 = vpack.c.b16 %v448, %v447
      %v487 = vpack.c.b16 %v450, %v449
      %v488 = vpack.c.b16 %v452, %v451
      %v489 = vpack.c.b16 %v454, %v453
      %v490 = vpack.c.b16 %v456, %v455
      %v491 = vpack.c.b16 %v458, %v457
      %v492 = vpack.c.b16 %v460, %v459
      %vm493 = vcmask 31744
      %v495 = vsel %vm493, %v461, 0
      %v498 = vsel %vm493, %v462, 0
      %v501 = vsel %vm493, %v463, 0
      %v504 = vsel %vm493, %v464, 0
      %v507 = vsel %vm493, %v465, 0
      %v510 = vsel %vm493, %v466, 0
      %v513 = vsel %vm493, %v467, 0
      %v516 = vsel %vm493, %v468, 0
      %v519 = vsel %vm493, %v469, 0
      %v522 = vsel %vm493, %v470, 0
      %v525 = vsel %vm493, %v471, 0
      %v528 = vsel %vm493, %v472, 0
      %v531 = vsel %vm493, %v473, 0
      %v534 = vsel %vm493, %v474, 0
      %v537 = vsel %vm493, %v475, 0
      %v540 = vsel %vm493, %v476, 0
      %v543 = vsel %vm493, %v477, 0
      %v546 = vsel %vm493, %v478, 0
      %v549 = vsel %vm493, %v479, 0
      %v552 = vsel %vm493, %v480, 0
      %v555 = vsel %vm493, %v481, 0
      %v558 = vsel %vm493, %v482, 0
      %v561 = vsel %vm493, %v483, 0
      %v564 = vsel %vm493, %v484, 0
      %v567 = vsel %vm493, %v485, 0
      %v570 = vsel %vm493, %v486, 0
      %v573 = vsel %vm493, %v487, 0
      %v576 = vsel %vm493, %v488, 0
      %v579 = vsel %vm493, %v489, 0
      %v582 = vsel %vm493, %v490, 0
      %v585 = vsel %vm493, %v491, 0
      %v588 = vsel %vm493, %v492, 0
      %vm590 = vcmask 1041408
      %v592 = vsel %vm590, %v332, 0
      %594 = vmatprep.subr.bf16.mxu0 0
      %595 = vmatpush1.bf16.msra.mxu0 %v592
      %596 = vmatprep.subr.bf16.mxu0 0
      %597 = vmatpush1.bf16.msra.mxu0 0
      %598 = vmatprep.subr.bf16.mxu0 0
      %599 = vmatpush1.bf16.msra.mxu0 0
      %600 = vmatprep.subr.bf16.mxu0 0
      %601 = vmatpush1.bf16.msra.mxu0 0
      %602 = vmatprep.subr.bf16.mxu0 0
      %603 = vmatpush1.bf16.msra.mxu0 0
      %604 = vmatprep.subr.bf16.mxu0 0
      %605 = vmatpush1.bf16.msra.mxu0 0
      %606 = vmatprep.subr.bf16.mxu0 0
      %607 = vmatpush1.bf16.msra.mxu0 0
      %608 = vmatprep.subr.bf16.mxu0 0
      %609 = vmatpush1.bf16.msra.mxu0 0
      %610 = vmatprep.subr.bf16.mxu0 0
      %611 = vmatpush1.bf16.msra.mxu0 0
      %612 = vmatprep.subr.bf16.mxu0 0
      %613 = vmatpush1.bf16.msra.mxu0 0
      %614 = vmatprep.subr.bf16.mxu0 0
      %615 = vmatpush1.bf16.msra.mxu0 0
      %616 = vmatprep.subr.bf16.mxu0 0
      %617 = vmatpush1.bf16.msra.mxu0 0
      %618 = vmatprep.subr.bf16.mxu0 0
      %619 = vmatpush1.bf16.msra.mxu0 0
      %620 = vmatprep.subr.bf16.mxu0 0
      %621 = vmatpush1.bf16.msra.mxu0 0
      %622 = vmatprep.subr.bf16.mxu0 0
      %623 = vmatpush1.bf16.msra.mxu0 0
      %624 = vmatprep.subr.bf16.mxu0 0
      %625 = vmatpush1.bf16.msra.mxu0 0
      %626 = vmatprep.mubr.bf16.mxu0 0
      %627 = vmatmul.mubr.bf16.gmra.mrb[0].mxu0 %v495
      %v628 = vpop.f32.mrb[0].mxu0
      %v629 = vadd.f32 0.0, %v628
      %v630 = vpop.f32.mrb[0].mxu0
      %v631 = vpop.f32.mrb[0].mxu0
      %v632 = vadd.f32 0.0, %v631
      %v633 = vpop.f32.mrb[0].mxu0
      %634 = vmatprep.mubr.bf16.mxu0 0
      %635 = vmatmul.mubr.bf16.gmra.mrb[0].mxu0 %v498
      %v636 = vpop.f32.mrb[0].mxu0
      %v637 = vadd.f32 0.0, %v636
      %v638 = vpop.f32.mrb[0].mxu0
      %v639 = vpop.f32.mrb[0].mxu0
      %v640 = vpop.f32.mrb[0].mxu0
      %641 = vmatprep.mubr.bf16.mxu0 0
      %642 = vmatmul.mubr.bf16.gmra.mrb[0].mxu0 %v501
      %v643 = vpop.f32.mrb[0].mxu0
      %v644 = vadd.f32 0.0, %v643
      %v645 = vpop.f32.mrb[0].mxu0
      %v646 = vpop.f32.mrb[0].mxu0
      %v647 = vadd.f32 0.0, %v646
      %v648 = vpop.f32.mrb[0].mxu0
      %649 = vmatprep.mubr.bf16.mxu0 0
      %650 = vmatmul.mubr.bf16.gmra.mrb[0].mxu0 %v504
      %v651 = vpop.f32.mrb[0].mxu0
      %v652 = vadd.f32 0.0, %v651
      %v653 = vpop.f32.mrb[0].mxu0
      %v654 = vpop.f32.mrb[0].mxu0
      %v655 = vpop.f32.mrb[0].mxu0
      %656 = vmatprep.mubr.bf16.mxu0 0
      %657 = vmatmul.mubr.bf16.gmra.mrb[0].mxu0 %v507
      %v658 = vpop.f32.mrb[0].mxu0
      %v659 = vadd.f32 0.0, %v658
      %v660 = vpop.f32.mrb[0].mxu0
      %v661 = vpop.f32.mrb[0].mxu0
      %v662 = vadd.f32 0.0, %v661
      %v663 = vpop.f32.mrb[0].mxu0
      %664 = vmatprep.mubr.bf16.mxu0 0
      %665 = vmatmul.mubr.bf16.gmra.mrb[0].mxu0 %v510
      %v666 = vpop.f32.mrb[0].mxu0
      %v667 = vadd.f32 0.0, %v666
      %v668 = vpop.f32.mrb[0].mxu0
      %v669 = vpop.f32.mrb[0].mxu0
      %v670 = vpop.f32.mrb[0].mxu0
      %671 = vmatprep.mubr.bf16.mxu0 0
      %672 = vmatmul.mubr.bf16.gmra.mrb[0].mxu0 %v513
      %v673 = vpop.f32.mrb[0].mxu0
      %v674 = vadd.f32 0.0, %v673
      %v675 = vpop.f32.mrb[0].mxu0
      %v676 = vpop.f32.mrb[0].mxu0
      %v677 = vadd.f32 0.0, %v676
      %v678 = vpop.f32.mrb[0].mxu0
      %679 = vmatprep.mubr.bf16.mxu0 0
      %680 = vmatmul.mubr.bf16.gmra.mrb[0].mxu0 %v516
      %v681 = vpop.f32.mrb[0].mxu0
      %v682 = vadd.f32 0.0, %v681
      %v683 = vpop.f32.mrb[0].mxu0
      %v684 = vpop.f32.mrb[0].mxu0
      %v685 = vpop.f32.mrb[0].mxu0
      %686 = vmatprep.mubr.bf16.mxu0 0
      %687 = vmatmul.mubr.bf16.gmra.mrb[0].mxu0 %v519
      %v688 = vpop.f32.mrb[0].mxu0
      %v689 = vadd.f32 0.0, %v688
      %v690 = vpop.f32.mrb[0].mxu0
      %v691 = vpop.f32.mrb[0].mxu0
      %v692 = vadd.f32 0.0, %v691
      %v693 = vpop.f32.mrb[0].mxu0
      %694 = vmatprep.mubr.bf16.mxu0 0
      %695 = vmatmul.mubr.bf16.gmra.mrb[0].mxu0 %v522
      %v696 = vpop.f32.mrb[0].mxu0
      %v697 = vadd.f32 0.0, %v696
      %v698 = vpop.f32.mrb[0].mxu0
      %v699 = vpop.f32.mrb[0].mxu0
      %v700 = vpop.f32.mrb[0].mxu0
      %701 = vmatprep.mubr.bf16.mxu0 0
      %702 = vmatmul.mubr.bf16.gmra.mrb[0].mxu0 %v525
      %v703 = vpop.f32.mrb[0].mxu0
      %v704 = vadd.f32 0.0, %v703
      %v705 = vpop.f32.mrb[0].mxu0
      %v706 = vpop.f32.mrb[0].mxu0
      %v707 = vadd.f32 0.0, %v706
      %v708 = vpop.f32.mrb[0].mxu0
      %709 = vmatprep.mubr.bf16.mxu0 0
      %710 = vmatmul.mubr.bf16.gmra.mrb[0].mxu0 %v528
      %v711 = vpop.f32.mrb[0].mxu0
      %v712 = vadd.f32 0.0, %v711
      %v713 = vpop.f32.mrb[0].mxu0
      %v714 = vpop.f32.mrb[0].mxu0
      %v715 = vpop.f32.mrb[0].mxu0
      %716 = vmatprep.mubr.bf16.mxu0 0
      %717 = vmatmul.mubr.bf16.gmra.mrb[0].mxu0 %v531
      %v718 = vpop.f32.mrb[0].mxu0
      %v719 = vadd.f32 0.0, %v718
      %v720 = vpop.f32.mrb[0].mxu0
      %v721 = vpop.f32.mrb[0].mxu0
      %v722 = vadd.f32 0.0, %v721
      %v723 = vpop.f32.mrb[0].mxu0
      %724 = vmatprep.mubr.bf16.mxu0 0
      %725 = vmatmul.mubr.bf16.gmra.mrb[0].mxu0 %v534
      %v726 = vpop.f32.mrb[0].mxu0
      %v727 = vadd.f32 0.0, %v726
      %v728 = vpop.f32.mrb[0].mxu0
      %v729 = vpop.f32.mrb[0].mxu0
      %v730 = vpop.f32.mrb[0].mxu0
      %731 = vmatprep.mubr.bf16.mxu0 0
      %732 = vmatmul.mubr.bf16.gmra.mrb[0].mxu0 %v537
      %v733 = vpop.f32.mrb[0].mxu0
      %v734 = vadd.f32 0.0, %v733
      %v735 = vpop.f32.mrb[0].mxu0
      %v736 = vpop.f32.mrb[0].mxu0
      %v737 = vadd.f32 0.0, %v736
      %v738 = vpop.f32.mrb[0].mxu0
      %739 = vmatprep.mubr.bf16.mxu0 0
      %740 = vmatmul.mubr.bf16.gmra.mrb[0].mxu0 %v540
      %v741 = vpop.f32.mrb[0].mxu0
      %v742 = vadd.f32 0.0, %v741
      %v743 = vpop.f32.mrb[0].mxu0
      %v744 = vpop.f32.mrb[0].mxu0
      %v745 = vpop.f32.mrb[0].mxu0
      %746 = vmatprep.mubr.bf16.mxu0 0
      %747 = vmatmul.mubr.bf16.gmra.mrb[0].mxu0 %v543
      %v748 = vpop.f32.mrb[0].mxu0
      %v749 = vadd.f32 0.0, %v748
      %v750 = vpop.f32.mrb[0].mxu0
      %v751 = vpop.f32.mrb[0].mxu0
      %v752 = vadd.f32 0.0, %v751
      %v753 = vpop.f32.mrb[0].mxu0
      %754 = vmatprep.mubr.bf16.mxu0 0
      %755 = vmatmul.mubr.bf16.gmra.mrb[0].mxu0 %v546
      %v756 = vpop.f32.mrb[0].mxu0
      %v757 = vadd.f32 0.0, %v756
      %v758 = vpop.f32.mrb[0].mxu0
      %v759 = vpop.f32.mrb[0].mxu0
      %v760 = vpop.f32.mrb[0].mxu0
      %761 = vmatprep.mubr.bf16.mxu0 0
      %762 = vmatmul.mubr.bf16.gmra.mrb[0].mxu0 %v549
      %v763 = vpop.f32.mrb[0].mxu0
      %v764 = vadd.f32 0.0, %v763
      %v765 = vpop.f32.mrb[0].mxu0
      %v766 = vpop.f32.mrb[0].mxu0
      %v767 = vadd.f32 0.0, %v766
      %v768 = vpop.f32.mrb[0].mxu0
      %769 = vmatprep.mubr.bf16.mxu0 0
      %770 = vmatmul.mubr.bf16.gmra.mrb[0].mxu0 %v552
      %v771 = vpop.f32.mrb[0].mxu0
      %v772 = vadd.f32 0.0, %v771
      %v773 = vpop.f32.mrb[0].mxu0
      %v774 = vpop.f32.mrb[0].mxu0
      %v775 = vpop.f32.mrb[0].mxu0
      %776 = vmatprep.mubr.bf16.mxu0 0
      %777 = vmatmul.mubr.bf16.gmra.mrb[0].mxu0 %v555
      %v778 = vpop.f32.mrb[0].mxu0
      %v779 = vadd.f32 0.0, %v778
      %v780 = vpop.f32.mrb[0].mxu0
      %v781 = vpop.f32.mrb[0].mxu0
      %v782 = vadd.f32 0.0, %v781
      %v783 = vpop.f32.mrb[0].mxu0
      %784 = vmatprep.mubr.bf16.mxu0 0
      %785 = vmatmul.mubr.bf16.gmra.mrb[0].mxu0 %v558
      %v786 = vpop.f32.mrb[0].mxu0
      %v787 = vadd.f32 0.0, %v786
      %v788 = vpop.f32.mrb[0].mxu0
      %v789 = vpop.f32.mrb[0].mxu0
      %v790 = vpop.f32.mrb[0].mxu0
      %791 = vmatprep.mubr.bf16.mxu0 0
      %792 = vmatmul.mubr.bf16.gmra.mrb[0].mxu0 %v561
      %v793 = vpop.f32.mrb[0].mxu0
      %v794 = vadd.f32 0.0, %v793
      %v795 = vpop.f32.mrb[0].mxu0
      %v796 = vpop.f32.mrb[0].mxu0
      %v797 = vadd.f32 0.0, %v796
      %v798 = vpop.f32.mrb[0].mxu0
      %799 = vmatprep.mubr.bf16.mxu0 0
      %800 = vmatmul.mubr.bf16.gmra.mrb[0].mxu0 %v564
      %v801 = vpop.f32.mrb[0].mxu0
      %v802 = vadd.f32 0.0, %v801
      %v803 = vpop.f32.mrb[0].mxu0
      %v804 = vpop.f32.mrb[0].mxu0
      %v805 = vpop.f32.mrb[0].mxu0
      %806 = vmatprep.mubr.bf16.mxu0 0
      %807 = vmatmul.mubr.bf16.gmra.mrb[0].mxu0 %v567
      %v808 = vpop.f32.mrb[0].mxu0
      %v809 = vadd.f32 0.0, %v808
      %v810 = vpop.f32.mrb[0].mxu0
      %v811 = vpop.f32.mrb[0].mxu0
      %v812 = vadd.f32 0.0, %v811
      %v813 = vpop.f32.mrb[0].mxu0
      %814 = vmatprep.mubr.bf16.mxu0 0
      %815 = vmatmul.mubr.bf16.gmra.mrb[0].mxu0 %v570
      %v816 = vpop.f32.mrb[0].mxu0
      %v817 = vadd.f32 0.0, %v816
      %v818 = vpop.f32.mrb[0].mxu0
      %v819 = vpop.f32.mrb[0].mxu0
      %v820 = vpop.f32.mrb[0].mxu0
      %821 = vmatprep.mubr.bf16.mxu0 0
      %822 = vmatmul.mubr.bf16.gmra.mrb[0].mxu0 %v573
      %v823 = vpop.f32.mrb[0].mxu0
      %v824 = vadd.f32 0.0, %v823
      %v825 = vpop.f32.mrb[0].mxu0
      %v826 = vpop.f32.mrb[0].mxu0
      %v827 = vadd.f32 0.0, %v826
      %v828 = vpop.f32.mrb[0].mxu0
      %829 = vmatprep.mubr.bf16.mxu0 0
      %830 = vmatmul.mubr.bf16.gmra.mrb[0].mxu0 %v576
      %v831 = vpop.f32.mrb[0].mxu0
      %v832 = vadd.f32 0.0, %v831
      %v833 = vpop.f32.mrb[0].mxu0
      %v834 = vpop.f32.mrb[0].mxu0
      %v835 = vpop.f32.mrb[0].mxu0
      %836 = vmatprep.mubr.bf16.mxu0 0
      %837 = vmatmul.mubr.bf16.gmra.mrb[0].mxu0 %v579
      %v838 = vpop.f32.mrb[0].mxu0
      %v839 = vadd.f32 0.0, %v838
      %v840 = vpop.f32.mrb[0].mxu0
      %v841 = vpop.f32.mrb[0].mxu0
      %v842 = vadd.f32 0.0, %v841
      %v843 = vpop.f32.mrb[0].mxu0
      %844 = vmatprep.mubr.bf16.mxu0 0
      %845 = vmatmul.mubr.bf16.gmra.mrb[0].mxu0 %v582
      %v846 = vpop.f32.mrb[0].mxu0
      %v847 = vadd.f32 0.0, %v846
      %v848 = vpop.f32.mrb[0].mxu0
      %v849 = vpop.f32.mrb[0].mxu0
      %v850 = vpop.f32.mrb[0].mxu0
      %851 = vmatprep.mubr.bf16.mxu0 0
      %852 = vmatmul.mubr.bf16.gmra.mrb[0].mxu0 %v585
      %v853 = vpop.f32.mrb[0].mxu0
      %v854 = vadd.f32 0.0, %v853
      %v855 = vpop.f32.mrb[0].mxu0
      %v856 = vpop.f32.mrb[0].mxu0
      %v857 = vadd.f32 0.0, %v856
      %v858 = vpop.f32.mrb[0].mxu0
      %859 = vmatprep.mubr.bf16.mxu0 0
      %860 = vmatmul.mubr.bf16.gmra.mrb[0].mxu0 %v588
      %v861 = vpop.f32.mrb[0].mxu0
      %v862 = vadd.f32 0.0, %v861
      %v863 = vpop.f32.mrb[0].mxu0
      %v864 = vpop.f32.mrb[0].mxu0
      %v865 = vpop.f32.mrb[0].mxu0
      %866 = vdwg.mxu0
      %v867 = vrot.slane %v629, 1
      %v868 = vrot.slane %v632, 1
      %v869 = vrot.slane %v637, 1
      %v870 = vrot.slane %v644, 1
      %v871 = vrot.slane %v647, 1
      %v872 = vrot.slane %v652, 1
      %v873 = vrot.slane %v659, 1
      %v874 = vrot.slane %v662, 1
      %v875 = vrot.slane %v667, 1
      %v876 = vrot.slane %v674, 1
      %v877 = vrot.slane %v677, 1
      %v878 = vrot.slane %v682, 1
      %v879 = vrot.slane %v689, 1
      %v880 = vrot.slane %v692, 1
      %v881 = vrot.slane %v697, 1
      %v882 = vrot.slane %v704, 1
      %v883 = vrot.slane %v707, 1
      %v884 = vrot.slane %v712, 1
      %v885 = vrot.slane %v719, 1
      %v886 = vrot.slane %v722, 1
      %v887 = vrot.slane %v727, 1
      %v888 = vrot.slane %v734, 1
      %v889 = vrot.slane %v737, 1
      %v890 = vrot.slane %v742, 1
      %v891 = vrot.slane %v749, 1
      %v892 = vrot.slane %v752, 1
      %v893 = vrot.slane %v757, 1
      %v894 = vrot.slane %v764, 1
      %v895 = vrot.slane %v767, 1
      %v896 = vrot.slane %v772, 1
      %v897 = vrot.slane %v779, 1
      %v898 = vrot.slane %v782, 1
      %v899 = vrot.slane %v787, 1
      %v900 = vrot.slane %v794, 1
      %v901 = vrot.slane %v797, 1
      %v902 = vrot.slane %v802, 1
      %v903 = vrot.slane %v809, 1
      %v904 = vrot.slane %v812, 1
      %v905 = vrot.slane %v817, 1
      %v906 = vrot.slane %v824, 1
      %v907 = vrot.slane %v827, 1
      %v908 = vrot.slane %v832, 1
      %v909 = vrot.slane %v839, 1
      %v910 = vrot.slane %v842, 1
      %v911 = vrot.slane %v847, 1
      %v912 = vrot.slane %v854, 1
      %v913 = vrot.slane %v857, 1
      %v914 = vrot.slane %v862, 1
      %v915 = vlaneseq
      %v916 = vshrl.u32 %v915, 7
      %vm917 = vcmp.lt.s32.totalorder %v916, 7
      %v918 = vsel %vm917, %v913, %v914
      %v919 = vsel %vm917, %v912, %v913
      %v920 = vsel %vm917, %v910, %v911
      %v921 = vsel %vm917, %v909, %v910
      %v922 = vsel %vm917, %v907, %v908
      %v923 = vsel %vm917, %v906, %v907
      %v924 = vsel %vm917, %v904, %v905
      %v925 = vsel %vm917, %v903, %v904
      %v926 = vsel %vm917, %v901, %v902
      %v927 = vsel %vm917, %v900, %v901
      %v928 = vsel %vm917, %v898, %v899
      %v929 = vsel %vm917, %v897, %v898
      %v930 = vsel %vm917, %v895, %v896
      %v931 = vsel %vm917, %v894, %v895
      %v932 = vsel %vm917, %v892, %v893
      %v933 = vsel %vm917, %v891, %v892
      %v934 = vsel %vm917, %v889, %v890
      %v935 = vsel %vm917, %v888, %v889
      %v936 = vsel %vm917, %v886, %v887
      %v937 = vsel %vm917, %v885, %v886
      %v938 = vsel %vm917, %v883, %v884
      %v939 = vsel %vm917, %v882, %v883
      %v940 = vsel %vm917, %v880, %v881
      %v941 = vsel %vm917, %v879, %v880
      %v942 = vsel %vm917, %v877, %v878
      %v943 = vsel %vm917, %v876, %v877
      %v944 = vsel %vm917, %v874, %v875
      %v945 = vsel %vm917, %v873, %v874
      %v946 = vsel %vm917, %v871, %v872
      %v947 = vsel %vm917, %v870, %v871
      %v948 = vsel %vm917, %v868, %v869
      %v949 = vsel %vm917, %v867, %v868
      %v951 = vsel %vm590, %v330, 0
      %953 = vmatprep.subr.bf16.mxu0 0
      %954 = vmatpush1.bf16.msra.mxu0 %v951
      %955 = vmatprep.subr.bf16.mxu0 0
      %956 = vmatpush1.bf16.msra.mxu0 0
      %957 = vmatprep.subr.bf16.mxu0 0
      %958 = vmatpush1.bf16.msra.mxu0 0
      %959 = vmatprep.subr.bf16.mxu0 0
      %960 = vmatpush1.bf16.msra.mxu0 0
      %961 = vmatprep.subr.bf16.mxu0 0
      %962 = vmatpush1.bf16.msra.mxu0 0
      %963 = vmatprep.subr.bf16.mxu0 0
      %964 = vmatpush1.bf16.msra.mxu0 0
      %965 = vmatprep.subr.bf16.mxu0 0
      %966 = vmatpush1.bf16.msra.mxu0 0
      %967 = vmatprep.subr.bf16.mxu0 0
      %968 = vmatpush1.bf16.msra.mxu0 0
      %969 = vmatprep.subr.bf16.mxu0 0
      %970 = vmatpush1.bf16.msra.mxu0 0
      %971 = vmatprep.subr.bf16.mxu0 0
      %972 = vmatpush1.bf16.msra.mxu0 0
      %973 = vmatprep.subr.bf16.mxu0 0
      %974 = vmatpush1.bf16.msra.mxu0 0
      %975 = vmatprep.subr.bf16.mxu0 0
      %976 = vmatpush1.bf16.msra.mxu0 0
      %977 = vmatprep.subr.bf16.mxu0 0
      %978 = vmatpush1.bf16.msra.mxu0 0
      %979 = vmatprep.subr.bf16.mxu0 0
      %980 = vmatpush1.bf16.msra.mxu0 0
      %981 = vmatprep.subr.bf16.mxu0 0
      %982 = vmatpush1.bf16.msra.mxu0 0
      %983 = vmatprep.subr.bf16.mxu0 0
      %984 = vmatpush1.bf16.msra.mxu0 0
      %985 = vmatprep.mubr.bf16.mxu0 0
      %986 = vmatmul.mubr.bf16.gmra.mrb[0].mxu0 %v495
      %v987 = vpop.f32.mrb[0].mxu0
      %v988 = vadd.f32 %v949, %v987
      %v989 = vpop.f32.mrb[0].mxu0
      %v990 = vpop.f32.mrb[0].mxu0
      %v991 = vadd.f32 %v948, %v990
      %v992 = vpop.f32.mrb[0].mxu0
      %993 = vmatprep.mubr.bf16.mxu0 0
      %994 = vmatmul.mubr.bf16.gmra.mrb[0].mxu0 %v498
      %v995 = vpop.f32.mrb[0].mxu0
      %v996 = vpop.f32.mrb[0].mxu0
      %v997 = vpop.f32.mrb[0].mxu0
      %v998 = vpop.f32.mrb[0].mxu0
      %999 = vmatprep.mubr.bf16.mxu0 0
      %1000 = vmatmul.mubr.bf16.gmra.mrb[0].mxu0 %v501
      %v1001 = vpop.f32.mrb[0].mxu0
      %v1002 = vadd.f32 %v947, %v1001
      %v1003 = vpop.f32.mrb[0].mxu0
      %v1004 = vpop.f32.mrb[0].mxu0
      %v1005 = vadd.f32 %v946, %v1004
      %v1006 = vpop.f32.mrb[0].mxu0
      %1007 = vmatprep.mubr.bf16.mxu0 0
      %1008 = vmatmul.mubr.bf16.gmra.mrb[0].mxu0 %v504
      %v1009 = vpop.f32.mrb[0].mxu0
      %v1010 = vpop.f32.mrb[0].mxu0
      %v1011 = vpop.f32.mrb[0].mxu0
      %v1012 = vpop.f32.mrb[0].mxu0
      %1013 = vmatprep.mubr.bf16.mxu0 0
      %1014 = vmatmul.mubr.bf16.gmra.mrb[0].mxu0 %v507
      %v1015 = vpop.f32.mrb[0].mxu0
      %v1016 = vadd.f32 %v945, %v1015
      %v1017 = vpop.f32.mrb[0].mxu0
      %v1018 = vpop.f32.mrb[0].mxu0
      %v1019 = vadd.f32 %v944, %v1018
      %v1020 = vpop.f32.mrb[0].mxu0
      %1021 = vmatprep.mubr.bf16.mxu0 0
      %1022 = vmatmul.mubr.bf16.gmra.mrb[0].mxu0 %v510
      %v1023 = vpop.f32.mrb[0].mxu0
      %v1024 = vpop.f32.mrb[0].mxu0
      %v1025 = vpop.f32.mrb[0].mxu0
      %v1026 = vpop.f32.mrb[0].mxu0
      %1027 = vmatprep.mubr.bf16.mxu0 0
      %1028 = vmatmul.mubr.bf16.gmra.mrb[0].mxu0 %v513
      %v1029 = vpop.f32.mrb[0].mxu0
      %v1030 = vadd.f32 %v943, %v1029
      %v1031 = vpop.f32.mrb[0].mxu0
      %v1032 = vpop.f32.mrb[0].mxu0
      %v1033 = vadd.f32 %v942, %v1032
      %v1034 = vpop.f32.mrb[0].mxu0
      %1035 = vmatprep.mubr.bf16.mxu0 0
      %1036 = vmatmul.mubr.bf16.gmra.mrb[0].mxu0 %v516
      %v1037 = vpop.f32.mrb[0].mxu0
      %v1038 = vpop.f32.mrb[0].mxu0
      %v1039 = vpop.f32.mrb[0].mxu0
      %v1040 = vpop.f32.mrb[0].mxu0
      %1041 = vmatprep.mubr.bf16.mxu0 0
      %1042 = vmatmul.mubr.bf16.gmra.mrb[0].mxu0 %v519
      %v1043 = vpop.f32.mrb[0].mxu0
      %v1044 = vadd.f32 %v941, %v1043
      %v1045 = vpop.f32.mrb[0].mxu0
      %v1046 = vpop.f32.mrb[0].mxu0
      %v1047 = vadd.f32 %v940, %v1046
      %v1048 = vpop.f32.mrb[0].mxu0
      %1049 = vmatprep.mubr.bf16.mxu0 0
      %1050 = vmatmul.mubr.bf16.gmra.mrb[0].mxu0 %v522
      %v1051 = vpop.f32.mrb[0].mxu0
      %v1052 = vpop.f32.mrb[0].mxu0
      %v1053 = vpop.f32.mrb[0].mxu0
      %v1054 = vpop.f32.mrb[0].mxu0
      %1055 = vmatprep.mubr.bf16.mxu0 0
      %1056 = vmatmul.mubr.bf16.gmra.mrb[0].mxu0 %v525
      %v1057 = vpop.f32.mrb[0].mxu0
      %v1058 = vadd.f32 %v939, %v1057
      %v1059 = vpop.f32.mrb[0].mxu0
      %v1060 = vpop.f32.mrb[0].mxu0
      %v1061 = vadd.f32 %v938, %v1060
      %v1062 = vpop.f32.mrb[0].mxu0
      %1063 = vmatprep.mubr.bf16.mxu0 0
      %1064 = vmatmul.mubr.bf16.gmra.mrb[0].mxu0 %v528
      %v1065 = vpop.f32.mrb[0].mxu0
      %v1066 = vpop.f32.mrb[0].mxu0
      %v1067 = vpop.f32.mrb[0].mxu0
      %v1068 = vpop.f32.mrb[0].mxu0
      %1069 = vmatprep.mubr.bf16.mxu0 0
      %1070 = vmatmul.mubr.bf16.gmra.mrb[0].mxu0 %v531
      %v1071 = vpop.f32.mrb[0].mxu0
      %v1072 = vadd.f32 %v937, %v1071
      %v1073 = vpop.f32.mrb[0].mxu0
      %v1074 = vpop.f32.mrb[0].mxu0
      %v1075 = vadd.f32 %v936, %v1074
      %v1076 = vpop.f32.mrb[0].mxu0
      %1077 = vmatprep.mubr.bf16.mxu0 0
      %1078 = vmatmul.mubr.bf16.gmra.mrb[0].mxu0 %v534
      %v1079 = vpop.f32.mrb[0].mxu0
      %v1080 = vpop.f32.mrb[0].mxu0
      %v1081 = vpop.f32.mrb[0].mxu0
      %v1082 = vpop.f32.mrb[0].mxu0
      %1083 = vmatprep.mubr.bf16.mxu0 0
      %1084 = vmatmul.mubr.bf16.gmra.mrb[0].mxu0 %v537
      %v1085 = vpop.f32.mrb[0].mxu0
      %v1086 = vadd.f32 %v935, %v1085
      %v1087 = vpop.f32.mrb[0].mxu0
      %v1088 = vpop.f32.mrb[0].mxu0
      %v1089 = vadd.f32 %v934, %v1088
      %v1090 = vpop.f32.mrb[0].mxu0
      %1091 = vmatprep.mubr.bf16.mxu0 0
      %1092 = vmatmul.mubr.bf16.gmra.mrb[0].mxu0 %v540
      %v1093 = vpop.f32.mrb[0].mxu0
      %v1094 = vpop.f32.mrb[0].mxu0
      %v1095 = vpop.f32.mrb[0].mxu0
      %v1096 = vpop.f32.mrb[0].mxu0
      %1097 = vmatprep.mubr.bf16.mxu0 0
      %1098 = vmatmul.mubr.bf16.gmra.mrb[0].mxu0 %v543
      %v1099 = vpop.f32.mrb[0].mxu0
      %v1100 = vadd.f32 %v933, %v1099
      %v1101 = vpop.f32.mrb[0].mxu0
      %v1102 = vpop.f32.mrb[0].mxu0
      %v1103 = vadd.f32 %v932, %v1102
      %v1104 = vpop.f32.mrb[0].mxu0
      %1105 = vmatprep.mubr.bf16.mxu0 0
      %1106 = vmatmul.mubr.bf16.gmra.mrb[0].mxu0 %v546
      %v1107 = vpop.f32.mrb[0].mxu0
      %v1108 = vpop.f32.mrb[0].mxu0
      %v1109 = vpop.f32.mrb[0].mxu0
      %v1110 = vpop.f32.mrb[0].mxu0
      %1111 = vmatprep.mubr.bf16.mxu0 0
      %1112 = vmatmul.mubr.bf16.gmra.mrb[0].mxu0 %v549
      %v1113 = vpop.f32.mrb[0].mxu0
      %v1114 = vadd.f32 %v931, %v1113
      %v1115 = vpop.f32.mrb[0].mxu0
      %v1116 = vpop.f32.mrb[0].mxu0
      %v1117 = vadd.f32 %v930, %v1116
      %v1118 = vpop.f32.mrb[0].mxu0
      %1119 = vmatprep.mubr.bf16.mxu0 0
      %1120 = vmatmul.mubr.bf16.gmra.mrb[0].mxu0 %v552
      %v1121 = vpop.f32.mrb[0].mxu0
      %v1122 = vpop.f32.mrb[0].mxu0
      %v1123 = vpop.f32.mrb[0].mxu0
      %v1124 = vpop.f32.mrb[0].mxu0
      %1125 = vmatprep.mubr.bf16.mxu0 0
      %1126 = vmatmul.mubr.bf16.gmra.mrb[0].mxu0 %v555
      %v1127 = vpop.f32.mrb[0].mxu0
      %v1128 = vadd.f32 %v929, %v1127
      %v1129 = vpop.f32.mrb[0].mxu0
      %v1130 = vpop.f32.mrb[0].mxu0
      %v1131 = vadd.f32 %v928, %v1130
      %v1132 = vpop.f32.mrb[0].mxu0
      %1133 = vmatprep.mubr.bf16.mxu0 0
      %1134 = vmatmul.mubr.bf16.gmra.mrb[0].mxu0 %v558
      %v1135 = vpop.f32.mrb[0].mxu0
      %v1136 = vpop.f32.mrb[0].mxu0
      %v1137 = vpop.f32.mrb[0].mxu0
      %v1138 = vpop.f32.mrb[0].mxu0
      %1139 = vmatprep.mubr.bf16.mxu0 0
      %1140 = vmatmul.mubr.bf16.gmra.mrb[0].mxu0 %v561
      %v1141 = vpop.f32.mrb[0].mxu0
      %v1142 = vadd.f32 %v927, %v1141
      %v1143 = vpop.f32.mrb[0].mxu0
      %v1144 = vpop.f32.mrb[0].mxu0
      %v1145 = vadd.f32 %v926, %v1144
      %v1146 = vpop.f32.mrb[0].mxu0
      %1147 = vmatprep.mubr.bf16.mxu0 0
      %1148 = vmatmul.mubr.bf16.gmra.mrb[0].mxu0 %v564
      %v1149 = vpop.f32.mrb[0].mxu0
      %v1150 = vpop.f32.mrb[0].mxu0
      %v1151 = vpop.f32.mrb[0].mxu0
      %v1152 = vpop.f32.mrb[0].mxu0
      %1153 = vmatprep.mubr.bf16.mxu0 0
      %1154 = vmatmul.mubr.bf16.gmra.mrb[0].mxu0 %v567
      %v1155 = vpop.f32.mrb[0].mxu0
      %v1156 = vadd.f32 %v925, %v1155
      %v1157 = vpop.f32.mrb[0].mxu0
      %v1158 = vpop.f32.mrb[0].mxu0
      %v1159 = vadd.f32 %v924, %v1158
      %v1160 = vpop.f32.mrb[0].mxu0
      %1161 = vmatprep.mubr.bf16.mxu0 0
      %1162 = vmatmul.mubr.bf16.gmra.mrb[0].mxu0 %v570
      %v1163 = vpop.f32.mrb[0].mxu0
      %v1164 = vpop.f32.mrb[0].mxu0
      %v1165 = vpop.f32.mrb[0].mxu0
      %v1166 = vpop.f32.mrb[0].mxu0
      %1167 = vmatprep.mubr.bf16.mxu0 0
      %1168 = vmatmul.mubr.bf16.gmra.mrb[0].mxu0 %v573
      %v1169 = vpop.f32.mrb[0].mxu0
      %v1170 = vadd.f32 %v923, %v1169
      %v1171 = vpop.f32.mrb[0].mxu0
      %v1172 = vpop.f32.mrb[0].mxu0
      %v1173 = vadd.f32 %v922, %v1172
      %v1174 = vpop.f32.mrb[0].mxu0
      %1175 = vmatprep.mubr.bf16.mxu0 0
      %1176 = vmatmul.mubr.bf16.gmra.mrb[0].mxu0 %v576
      %v1177 = vpop.f32.mrb[0].mxu0
      %v1178 = vpop.f32.mrb[0].mxu0
      %v1179 = vpop.f32.mrb[0].mxu0
      %v1180 = vpop.f32.mrb[0].mxu0
      %1181 = vmatprep.mubr.bf16.mxu0 0
      %1182 = vmatmul.mubr.bf16.gmra.mrb[0].mxu0 %v579
      %v1183 = vpop.f32.mrb[0].mxu0
      %v1184 = vadd.f32 %v921, %v1183
      %v1185 = vpop.f32.mrb[0].mxu0
      %v1186 = vpop.f32.mrb[0].mxu0
      %v1187 = vadd.f32 %v920, %v1186
      %v1188 = vpop.f32.mrb[0].mxu0
      %1189 = vmatprep.mubr.bf16.mxu0 0
      %1190 = vmatmul.mubr.bf16.gmra.mrb[0].mxu0 %v582
      %v1191 = vpop.f32.mrb[0].mxu0
      %v1192 = vpop.f32.mrb[0].mxu0
      %v1193 = vpop.f32.mrb[0].mxu0
      %v1194 = vpop.f32.mrb[0].mxu0
      %1195 = vmatprep.mubr.bf16.mxu0 0
      %1196 = vmatmul.mubr.bf16.gmra.mrb[0].mxu0 %v585
      %v1197 = vpop.f32.mrb[0].mxu0
      %v1198 = vadd.f32 %v919, %v1197
      %v1199 = vpop.f32.mrb[0].mxu0
      %v1200 = vpop.f32.mrb[0].mxu0
      %v1201 = vadd.f32 %v918, %v1200
      %v1202 = vpop.f32.mrb[0].mxu0
      %1203 = vmatprep.mubr.bf16.mxu0 0
      %1204 = vmatmul.mubr.bf16.gmra.mrb[0].mxu0 %v588
      %v1205 = vpop.f32.mrb[0].mxu0
      %v1206 = vpop.f32.mrb[0].mxu0
      %v1207 = vpop.f32.mrb[0].mxu0
      %v1208 = vpop.f32.mrb[0].mxu0
      %1209 = vdwg.mxu0
      %s1210 = scalar_lea.vmem %s1, 4
      %v1211 = vld [vmem:[%s1210] sm:$0x3]
      %v1213 = vsel %vm590, %v1211, 0
      %1215 = vmatprep.subr.bf16.mxu0 0
      %1216 = vmatpush1.bf16.msra.mxu0 %v1213
      %1217 = vmatprep.subr.bf16.mxu0 0
      %1218 = vmatpush1.bf16.msra.mxu0 0
      %1219 = vmatprep.subr.bf16.mxu0 0
      %1220 = vmatpush1.bf16.msra.mxu0 0
      %1221 = vmatprep.subr.bf16.mxu0 0
      %1222 = vmatpush1.bf16.msra.mxu0 0
      %1223 = vmatprep.subr.bf16.mxu0 0
      %1224 = vmatpush1.bf16.msra.mxu0 0
      %1225 = vmatprep.subr.bf16.mxu0 0
      %1226 = vmatpush1.bf16.msra.mxu0 0
      %1227 = vmatprep.subr.bf16.mxu0 0
      %1228 = vmatpush1.bf16.msra.mxu0 0
      %1229 = vmatprep.subr.bf16.mxu0 0
      %1230 = vmatpush1.bf16.msra.mxu0 0
      %1231 = vmatprep.subr.bf16.mxu0 0
      %1232 = vmatpush1.bf16.msra.mxu0 0
      %1233 = vmatprep.subr.bf16.mxu0 0
      %1234 = vmatpush1.bf16.msra.mxu0 0
      %1235 = vmatprep.subr.bf16.mxu0 0
      %1236 = vmatpush1.bf16.msra.mxu0 0
      %1237 = vmatprep.subr.bf16.mxu0 0
      %1238 = vmatpush1.bf16.msra.mxu0 0
      %1239 = vmatprep.subr.bf16.mxu0 0
      %1240 = vmatpush1.bf16.msra.mxu0 0
      %1241 = vmatprep.subr.bf16.mxu0 0
      %1242 = vmatpush1.bf16.msra.mxu0 0
      %1243 = vmatprep.subr.bf16.mxu0 0
      %1244 = vmatpush1.bf16.msra.mxu0 0
      %1245 = vmatprep.subr.bf16.mxu0 0
      %1246 = vmatpush1.bf16.msra.mxu0 0
      %1247 = vmatprep.mubr.bf16.mxu0 0
      %1248 = vmatmul.mubr.bf16.gmra.mrb[0].mxu0 %v495
      %v1249 = vpop.f32.mrb[0].mxu0
      %v1250 = vadd.f32 0.0, %v1249
      %v1251 = vpop.f32.mrb[0].mxu0
      %v1252 = vpop.f32.mrb[0].mxu0
      %v1253 = vadd.f32 0.0, %v1252
      %v1254 = vpop.f32.mrb[0].mxu0
      %1255 = vmatprep.mubr.bf16.mxu0 0
      %1256 = vmatmul.mubr.bf16.gmra.mrb[0].mxu0 %v498
      %v1257 = vpop.f32.mrb[0].mxu0
      %v1258 = vadd.f32 0.0, %v1257
      %v1259 = vpop.f32.mrb[0].mxu0
      %v1260 = vpop.f32.mrb[0].mxu0
      %v1261 = vpop.f32.mrb[0].mxu0
      %1262 = vmatprep.mubr.bf16.mxu0 0
      %1263 = vmatmul.mubr.bf16.gmra.mrb[0].mxu0 %v501
      %v1264 = vpop.f32.mrb[0].mxu0
      %v1265 = vadd.f32 0.0, %v1264
      %v1266 = vpop.f32.mrb[0].mxu0
      %v1267 = vpop.f32.mrb[0].mxu0
      %v1268 = vadd.f32 0.0, %v1267
      %v1269 = vpop.f32.mrb[0].mxu0
      %1270 = vmatprep.mubr.bf16.mxu0 0
      %1271 = vmatmul.mubr.bf16.gmra.mrb[0].mxu0 %v504
      %v1272 = vpop.f32.mrb[0].mxu0
      %v1273 = vadd.f32 0.0, %v1272
      %v1274 = vpop.f32.mrb[0].mxu0
      %v1275 = vpop.f32.mrb[0].mxu0
      %v1276 = vpop.f32.mrb[0].mxu0
      %1277 = vmatprep.mubr.bf16.mxu0 0
      %1278 = vmatmul.mubr.bf16.gmra.mrb[0].mxu0 %v507
      %v1279 = vpop.f32.mrb[0].mxu0
      %v1280 = vadd.f32 0.0, %v1279
      %v1281 = vpop.f32.mrb[0].mxu0
      %v1282 = vpop.f32.mrb[0].mxu0
      %v1283 = vadd.f32 0.0, %v1282
      %v1284 = vpop.f32.mrb[0].mxu0
      %1285 = vmatprep.mubr.bf16.mxu0 0
      %1286 = vmatmul.mubr.bf16.gmra.mrb[0].mxu0 %v510
      %v1287 = vpop.f32.mrb[0].mxu0
      %v1288 = vadd.f32 0.0, %v1287
      %v1289 = vpop.f32.mrb[0].mxu0
      %v1290 = vpop.f32.mrb[0].mxu0
      %v1291 = vpop.f32.mrb[0].mxu0
      %1292 = vmatprep.mubr.bf16.mxu0 0
      %1293 = vmatmul.mubr.bf16.gmra.mrb[0].mxu0 %v513
      %v1294 = vpop.f32.mrb[0].mxu0
      %v1295 = vadd.f32 0.0, %v1294
      %v1296 = vpop.f32.mrb[0].mxu0
      %v1297 = vpop.f32.mrb[0].mxu0
      %v1298 = vadd.f32 0.0, %v1297
      %v1299 = vpop.f32.mrb[0].mxu0
      %1300 = vmatprep.mubr.bf16.mxu0 0
      %1301 = vmatmul.mubr.bf16.gmra.mrb[0].mxu0 %v516
      %v1302 = vpop.f32.mrb[0].mxu0
      %v1303 = vadd.f32 0.0, %v1302
      %v1304 = vpop.f32.mrb[0].mxu0
      %v1305 = vpop.f32.mrb[0].mxu0
      %v1306 = vpop.f32.mrb[0].mxu0
      %1307 = vmatprep.mubr.bf16.mxu0 0
      %1308 = vmatmul.mubr.bf16.gmra.mrb[0].mxu0 %v519
      %v1309 = vpop.f32.mrb[0].mxu0
      %v1310 = vadd.f32 0.0, %v1309
      %v1311 = vpop.f32.mrb[0].mxu0
      %v1312 = vpop.f32.mrb[0].mxu0
      %v1313 = vadd.f32 0.0, %v1312
      %v1314 = vpop.f32.mrb[0].mxu0
      %1315 = vmatprep.mubr.bf16.mxu0 0
      %1316 = vmatmul.mubr.bf16.gmra.mrb[0].mxu0 %v522
      %v1317 = vpop.f32.mrb[0].mxu0
      %v1318 = vadd.f32 0.0, %v1317
      %v1319 = vpop.f32.mrb[0].mxu0
      %v1320 = vpop.f32.mrb[0].mxu0
      %v1321 = vpop.f32.mrb[0].mxu0
      %1322 = vmatprep.mubr.bf16.mxu0 0
      %1323 = vmatmul.mubr.bf16.gmra.mrb[0].mxu0 %v525
      %v1324 = vpop.f32.mrb[0].mxu0
      %v1325 = vadd.f32 0.0, %v1324
      %v1326 = vpop.f32.mrb[0].mxu0
      %v1327 = vpop.f32.mrb[0].mxu0
      %v1328 = vadd.f32 0.0, %v1327
      %v1329 = vpop.f32.mrb[0].mxu0
      %1330 = vmatprep.mubr.bf16.mxu0 0
      %1331 = vmatmul.mubr.bf16.gmra.mrb[0].mxu0 %v528
      %v1332 = vpop.f32.mrb[0].mxu0
      %v1333 = vadd.f32 0.0, %v1332
      %v1334 = vpop.f32.mrb[0].mxu0
      %v1335 = vpop.f32.mrb[0].mxu0
      %v1336 = vpop.f32.mrb[0].mxu0
      %1337 = vmatprep.mubr.bf16.mxu0 0
      %1338 = vmatmul.mubr.bf16.gmra.mrb[0].mxu0 %v531
      %v1339 = vpop.f32.mrb[0].mxu0
      %v1340 = vadd.f32 0.0, %v1339
      %v1341 = vpop.f32.mrb[0].mxu0
      %v1342 = vpop.f32.mrb[0].mxu0
      %v1343 = vadd.f32 0.0, %v1342
      %v1344 = vpop.f32.mrb[0].mxu0
      %1345 = vmatprep.mubr.bf16.mxu0 0
      %1346 = vmatmul.mubr.bf16.gmra.mrb[0].mxu0 %v534
      %v1347 = vpop.f32.mrb[0].mxu0
      %v1348 = vadd.f32 0.0, %v1347
      %v1349 = vpop.f32.mrb[0].mxu0
      %v1350 = vpop.f32.mrb[0].mxu0
      %v1351 = vpop.f32.mrb[0].mxu0
      %1352 = vmatprep.mubr.bf16.mxu0 0
      %1353 = vmatmul.mubr.bf16.gmra.mrb[0].mxu0 %v537
      %v1354 = vpop.f32.mrb[0].mxu0
      %v1355 = vadd.f32 0.0, %v1354
      %v1356 = vpop.f32.mrb[0].mxu0
      %v1357 = vpop.f32.mrb[0].mxu0
      %v1358 = vadd.f32 0.0, %v1357
      %v1359 = vpop.f32.mrb[0].mxu0
      %1360 = vmatprep.mubr.bf16.mxu0 0
      %1361 = vmatmul.mubr.bf16.gmra.mrb[0].mxu0 %v540
      %v1362 = vpop.f32.mrb[0].mxu0
      %v1363 = vadd.f32 0.0, %v1362
      %v1364 = vpop.f32.mrb[0].mxu0
      %v1365 = vpop.f32.mrb[0].mxu0
      %v1366 = vpop.f32.mrb[0].mxu0
      %1367 = vmatprep.mubr.bf16.mxu0 0
      %1368 = vmatmul.mubr.bf16.gmra.mrb[0].mxu0 %v543
      %v1369 = vpop.f32.mrb[0].mxu0
      %v1370 = vadd.f32 0.0, %v1369
      %v1371 = vpop.f32.mrb[0].mxu0
      %v1372 = vpop.f32.mrb[0].mxu0
      %v1373 = vadd.f32 0.0, %v1372
      %v1374 = vpop.f32.mrb[0].mxu0
      %1375 = vmatprep.mubr.bf16.mxu0 0
      %1376 = vmatmul.mubr.bf16.gmra.mrb[0].mxu0 %v546
      %v1377 = vpop.f32.mrb[0].mxu0
      %v1378 = vadd.f32 0.0, %v1377
      %v1379 = vpop.f32.mrb[0].mxu0
      %v1380 = vpop.f32.mrb[0].mxu0
      %v1381 = vpop.f32.mrb[0].mxu0
      %1382 = vmatprep.mubr.bf16.mxu0 0
      %1383 = vmatmul.mubr.bf16.gmra.mrb[0].mxu0 %v549
      %v1384 = vpop.f32.mrb[0].mxu0
      %v1385 = vadd.f32 0.0, %v1384
      %v1386 = vpop.f32.mrb[0].mxu0
      %v1387 = vpop.f32.mrb[0].mxu0
      %v1388 = vadd.f32 0.0, %v1387
      %v1389 = vpop.f32.mrb[0].mxu0
      %1390 = vmatprep.mubr.bf16.mxu0 0
      %1391 = vmatmul.mubr.bf16.gmra.mrb[0].mxu0 %v552
      %v1392 = vpop.f32.mrb[0].mxu0
      %v1393 = vadd.f32 0.0, %v1392
      %v1394 = vpop.f32.mrb[0].mxu0
      %v1395 = vpop.f32.mrb[0].mxu0
      %v1396 = vpop.f32.mrb[0].mxu0
      %1397 = vmatprep.mubr.bf16.mxu0 0
      %1398 = vmatmul.mubr.bf16.gmra.mrb[0].mxu0 %v555
      %v1399 = vpop.f32.mrb[0].mxu0
      %v1400 = vadd.f32 0.0, %v1399
      %v1401 = vpop.f32.mrb[0].mxu0
      %v1402 = vpop.f32.mrb[0].mxu0
      %v1403 = vadd.f32 0.0, %v1402
      %v1404 = vpop.f32.mrb[0].mxu0
      %1405 = vmatprep.mubr.bf16.mxu0 0
      %1406 = vmatmul.mubr.bf16.gmra.mrb[0].mxu0 %v558
      %v1407 = vpop.f32.mrb[0].mxu0
      %v1408 = vadd.f32 0.0, %v1407
      %v1409 = vpop.f32.mrb[0].mxu0
      %v1410 = vpop.f32.mrb[0].mxu0
      %v1411 = vpop.f32.mrb[0].mxu0
      %1412 = vmatprep.mubr.bf16.mxu0 0
      %1413 = vmatmul.mubr.bf16.gmra.mrb[0].mxu0 %v561
      %v1414 = vpop.f32.mrb[0].mxu0
      %v1415 = vadd.f32 0.0, %v1414
      %v1416 = vpop.f32.mrb[0].mxu0
      %v1417 = vpop.f32.mrb[0].mxu0
      %v1418 = vadd.f32 0.0, %v1417
      %v1419 = vpop.f32.mrb[0].mxu0
      %1420 = vmatprep.mubr.bf16.mxu0 0
      %1421 = vmatmul.mubr.bf16.gmra.mrb[0].mxu0 %v564
      %v1422 = vpop.f32.mrb[0].mxu0
      %v1423 = vadd.f32 0.0, %v1422
      %v1424 = vpop.f32.mrb[0].mxu0
      %v1425 = vpop.f32.mrb[0].mxu0
      %v1426 = vpop.f32.mrb[0].mxu0
      %1427 = vmatprep.mubr.bf16.mxu0 0
      %1428 = vmatmul.mubr.bf16.gmra.mrb[0].mxu0 %v567
      %v1429 = vpop.f32.mrb[0].mxu0
      %v1430 = vadd.f32 0.0, %v1429
      %v1431 = vpop.f32.mrb[0].mxu0
      %v1432 = vpop.f32.mrb[0].mxu0
      %v1433 = vadd.f32 0.0, %v1432
      %v1434 = vpop.f32.mrb[0].mxu0
      %1435 = vmatprep.mubr.bf16.mxu0 0
      %1436 = vmatmul.mubr.bf16.gmra.mrb[0].mxu0 %v570
      %v1437 = vpop.f32.mrb[0].mxu0
      %v1438 = vadd.f32 0.0, %v1437
      %v1439 = vpop.f32.mrb[0].mxu0
      %v1440 = vpop.f32.mrb[0].mxu0
      %v1441 = vpop.f32.mrb[0].mxu0
      %1442 = vmatprep.mubr.bf16.mxu0 0
      %1443 = vmatmul.mubr.bf16.gmra.mrb[0].mxu0 %v573
      %v1444 = vpop.f32.mrb[0].mxu0
      %v1445 = vadd.f32 0.0, %v1444
      %v1446 = vpop.f32.mrb[0].mxu0
      %v1447 = vpop.f32.mrb[0].mxu0
      %v1448 = vadd.f32 0.0, %v1447
      %v1449 = vpop.f32.mrb[0].mxu0
      %1450 = vmatprep.mubr.bf16.mxu0 0
      %1451 = vmatmul.mubr.bf16.gmra.mrb[0].mxu0 %v576
      %v1452 = vpop.f32.mrb[0].mxu0
      %v1453 = vadd.f32 0.0, %v1452
      %v1454 = vpop.f32.mrb[0].mxu0
      %v1455 = vpop.f32.mrb[0].mxu0
      %v1456 = vpop.f32.mrb[0].mxu0
      %1457 = vmatprep.mubr.bf16.mxu0 0
      %1458 = vmatmul.mubr.bf16.gmra.mrb[0].mxu0 %v579
      %v1459 = vpop.f32.mrb[0].mxu0
      %v1460 = vadd.f32 0.0, %v1459
      %v1461 = vpop.f32.mrb[0].mxu0
      %v1462 = vpop.f32.mrb[0].mxu0
      %v1463 = vadd.f32 0.0, %v1462
      %v1464 = vpop.f32.mrb[0].mxu0
      %1465 = vmatprep.mubr.bf16.mxu0 0
      %1466 = vmatmul.mubr.bf16.gmra.mrb[0].mxu0 %v582
      %v1467 = vpop.f32.mrb[0].mxu0
      %v1468 = vadd.f32 0.0, %v1467
      %v1469 = vpop.f32.mrb[0].mxu0
      %v1470 = vpop.f32.mrb[0].mxu0
      %v1471 = vpop.f32.mrb[0].mxu0
      %1472 = vmatprep.mubr.bf16.mxu0 0
      %1473 = vmatmul.mubr.bf16.gmra.mrb[0].mxu0 %v585
      %v1474 = vpop.f32.mrb[0].mxu0
      %v1475 = vadd.f32 0.0, %v1474
      %v1476 = vpop.f32.mrb[0].mxu0
      %v1477 = vpop.f32.mrb[0].mxu0
      %v1478 = vadd.f32 0.0, %v1477
      %v1479 = vpop.f32.mrb[0].mxu0
      %1480 = vmatprep.mubr.bf16.mxu0 0
      %1481 = vmatmul.mubr.bf16.gmra.mrb[0].mxu0 %v588
      %v1482 = vpop.f32.mrb[0].mxu0
      %v1483 = vadd.f32 0.0, %v1482
      %v1484 = vpop.f32.mrb[0].mxu0
      %v1485 = vpop.f32.mrb[0].mxu0
      %v1486 = vpop.f32.mrb[0].mxu0
      %1487 = vdwg.mxu0
      %v1488 = vrot.slane %v1250, 2
      %v1489 = vrot.slane %v1253, 2
      %v1490 = vrot.slane %v1258, 2
      %v1491 = vrot.slane %v1265, 2
      %v1492 = vrot.slane %v1268, 2
      %v1493 = vrot.slane %v1273, 2
      %v1494 = vrot.slane %v1280, 2
      %v1495 = vrot.slane %v1283, 2
      %v1496 = vrot.slane %v1288, 2
      %v1497 = vrot.slane %v1295, 2
      %v1498 = vrot.slane %v1298, 2
      %v1499 = vrot.slane %v1303, 2
      %v1500 = vrot.slane %v1310, 2
      %v1501 = vrot.slane %v1313, 2
      %v1502 = vrot.slane %v1318, 2
      %v1503 = vrot.slane %v1325, 2
      %v1504 = vrot.slane %v1328, 2
      %v1505 = vrot.slane %v1333, 2
      %v1506 = vrot.slane %v1340, 2
      %v1507 = vrot.slane %v1343, 2
      %v1508 = vrot.slane %v1348, 2
      %v1509 = vrot.slane %v1355, 2
      %v1510 = vrot.slane %v1358, 2
      %v1511 = vrot.slane %v1363, 2
      %v1512 = vrot.slane %v1370, 2
      %v1513 = vrot.slane %v1373, 2
      %v1514 = vrot.slane %v1378, 2
      %v1515 = vrot.slane %v1385, 2
      %v1516 = vrot.slane %v1388, 2
      %v1517 = vrot.slane %v1393, 2
      %v1518 = vrot.slane %v1400, 2
      %v1519 = vrot.slane %v1403, 2
      %v1520 = vrot.slane %v1408, 2
      %v1521 = vrot.slane %v1415, 2
      %v1522 = vrot.slane %v1418, 2
      %v1523 = vrot.slane %v1423, 2
      %v1524 = vrot.slane %v1430, 2
      %v1525 = vrot.slane %v1433, 2
      %v1526 = vrot.slane %v1438, 2
      %v1527 = vrot.slane %v1445, 2
      %v1528 = vrot.slane %v1448, 2
      %v1529 = vrot.slane %v1453, 2
      %v1530 = vrot.slane %v1460, 2
      %v1531 = vrot.slane %v1463, 2
      %v1532 = vrot.slane %v1468, 2
      %v1533 = vrot.slane %v1475, 2
      %v1534 = vrot.slane %v1478, 2
      %v1535 = vrot.slane %v1483, 2
      %vm1536 = vcmp.lt.s32.totalorder %v916, 6
      %v1537 = vsel %vm1536, %v1534, %v1535
      %v1538 = vsel %vm1536, %v1533, %v1534
      %v1539 = vsel %vm1536, %v1531, %v1532
      %v1540 = vsel %vm1536, %v1530, %v1531
      %v1541 = vsel %vm1536, %v1528, %v1529
      %v1542 = vsel %vm1536, %v1527, %v1528
      %v1543 = vsel %vm1536, %v1525, %v1526
      %v1544 = vsel %vm1536, %v1524, %v1525
      %v1545 = vsel %vm1536, %v1522, %v1523
      %v1546 = vsel %vm1536, %v1521, %v1522
      %v1547 = vsel %vm1536, %v1519, %v1520
      %v1548 = vsel %vm1536, %v1518, %v1519
      %v1549 = vsel %vm1536, %v1516, %v1517
      %v1550 = vsel %vm1536, %v1515, %v1516
      %v1551 = vsel %vm1536, %v1513, %v1514
      %v1552 = vsel %vm1536, %v1512, %v1513
      %v1553 = vsel %vm1536, %v1510, %v1511
      %v1554 = vsel %vm1536, %v1509, %v1510
      %v1555 = vsel %vm1536, %v1507, %v1508
      %v1556 = vsel %vm1536, %v1506, %v1507
      %v1557 = vsel %vm1536, %v1504, %v1505
      %v1558 = vsel %vm1536, %v1503, %v1504
      %v1559 = vsel %vm1536, %v1501, %v1502
      %v1560 = vsel %vm1536, %v1500, %v1501
      %v1561 = vsel %vm1536, %v1498, %v1499
      %v1562 = vsel %vm1536, %v1497, %v1498
      %v1563 = vsel %vm1536, %v1495, %v1496
      %v1564 = vsel %vm1536, %v1494, %v1495
      %v1565 = vsel %vm1536, %v1492, %v1493
      %v1566 = vsel %vm1536, %v1491, %v1492
      %v1567 = vsel %vm1536, %v1489, %v1490
      %v1568 = vsel %vm1536, %v1488, %v1489
      %v1569 = vadd.f32 %v988, %v1568
      %v1570 = vadd.f32 %v991, %v1567
      %v1571 = vadd.f32 %v1002, %v1566
      %v1572 = vadd.f32 %v1005, %v1565
      %v1573 = vadd.f32 %v1016, %v1564
      %v1574 = vadd.f32 %v1019, %v1563
      %v1575 = vadd.f32 %v1030, %v1562
      %v1576 = vadd.f32 %v1033, %v1561
      %v1577 = vadd.f32 %v1044, %v1560
      %v1578 = vadd.f32 %v1047, %v1559
      %v1579 = vadd.f32 %v1058, %v1558
      %v1580 = vadd.f32 %v1061, %v1557
      %v1581 = vadd.f32 %v1072, %v1556
      %v1582 = vadd.f32 %v1075, %v1555
      %v1583 = vadd.f32 %v1086, %v1554
      %v1584 = vadd.f32 %v1089, %v1553
      %v1585 = vadd.f32 %v1100, %v1552
      %v1586 = vadd.f32 %v1103, %v1551
      %v1587 = vadd.f32 %v1114, %v1550
      %v1588 = vadd.f32 %v1117, %v1549
      %v1589 = vadd.f32 %v1128, %v1548
      %v1590 = vadd.f32 %v1131, %v1547
      %v1591 = vadd.f32 %v1142, %v1546
      %v1592 = vadd.f32 %v1145, %v1545
      %v1593 = vadd.f32 %v1156, %v1544
      %v1594 = vadd.f32 %v1159, %v1543
      %v1595 = vadd.f32 %v1170, %v1542
      %v1596 = vadd.f32 %v1173, %v1541
      %v1597 = vadd.f32 %v1184, %v1540
      %v1598 = vadd.f32 %v1187, %v1539
      %v1599 = vadd.f32 %v1198, %v1538
      %v1600 = vadd.f32 %v1201, %v1537
      %s1601 = scalar_lea.vmem %s1, 6
      %v1602 = vld [vmem:[%s1601] sm:$0x3]
      %v1607 = vunpack.c.l.b16 %v322
      %v1608 = vunpack.c.l.b16 %v323
      %v1609 = vunpack.c.l.b16 %v324
      %v1610 = vunpack.c.l.b16 %v325
      %v1611 = vpack.c.b16 %v1608, %v1607
      %v1612 = vpack.c.b16 %v1610, %v1609
      %v1614 = vsel %vm493, %v1611, 0
      %v1617 = vsel %vm493, %v1612, 0
      %v1620 = vsel %vm590, %v1602, 0
      %1622 = vmatprep.subr.bf16.mxu0 0
      %1623 = vmatpush1.bf16.msra.mxu0 %v1620
      %1624 = vmatprep.subr.bf16.mxu0 0
      %1625 = vmatpush1.bf16.msra.mxu0 0
      %1626 = vmatprep.subr.bf16.mxu0 0
      %1627 = vmatpush1.bf16.msra.mxu0 0
      %1628 = vmatprep.subr.bf16.mxu0 0
      %1629 = vmatpush1.bf16.msra.mxu0 0
      %1630 = vmatprep.subr.bf16.mxu0 0
      %1631 = vmatpush1.bf16.msra.mxu0 0
      %1632 = vmatprep.subr.bf16.mxu0 0
      %1633 = vmatpush1.bf16.msra.mxu0 0
      %1634 = vmatprep.subr.bf16.mxu0 0
      %1635 = vmatpush1.bf16.msra.mxu0 0
      %1636 = vmatprep.subr.bf16.mxu0 0
      %1637 = vmatpush1.bf16.msra.mxu0 0
      %1638 = vmatprep.subr.bf16.mxu0 0
      %1639 = vmatpush1.bf16.msra.mxu0 0
      %1640 = vmatprep.subr.bf16.mxu0 0
      %1641 = vmatpush1.bf16.msra.mxu0 0
      %1642 = vmatprep.subr.bf16.mxu0 0
      %1643 = vmatpush1.bf16.msra.mxu0 0
      %1644 = vmatprep.subr.bf16.mxu0 0
      %1645 = vmatpush1.bf16.msra.mxu0 0
      %1646 = vmatprep.subr.bf16.mxu0 0
      %1647 = vmatpush1.bf16.msra.mxu0 0
      %1648 = vmatprep.subr.bf16.mxu0 0
      %1649 = vmatpush1.bf16.msra.mxu0 0
      %1650 = vmatprep.subr.bf16.mxu0 0
      %1651 = vmatpush1.bf16.msra.mxu0 0
      %1652 = vmatprep.subr.bf16.mxu0 0
      %1653 = vmatpush1.bf16.msra.mxu0 0
      %1654 = vmatprep.mubr.bf16.mxu0 0
      %1655 = vmatmul.mubr.bf16.gmra.mrb[0].mxu0 %v501
      %v1656 = vpop.f32.mrb[0].mxu0
      %v1657 = vadd.f32 0.0, %v1656
      %v1658 = vpop.f32.mrb[0].mxu0
      %v1659 = vpop.f32.mrb[0].mxu0
      %v1660 = vadd.f32 0.0, %v1659
      %v1661 = vpop.f32.mrb[0].mxu0
      %1662 = vmatprep.mubr.bf16.mxu0 0
      %1663 = vmatmul.mubr.bf16.gmra.mrb[0].mxu0 %v504
      %v1664 = vpop.f32.mrb[0].mxu0
      %v1665 = vpop.f32.mrb[0].mxu0
      %v1666 = vpop.f32.mrb[0].mxu0
      %v1667 = vpop.f32.mrb[0].mxu0
      %1668 = vmatprep.mubr.bf16.mxu0 0
      %1669 = vmatmul.mubr.bf16.gmra.mrb[0].mxu0 %v507
      %v1670 = vpop.f32.mrb[0].mxu0
      %v1671 = vadd.f32 0.0, %v1670
      %v1672 = vpop.f32.mrb[0].mxu0
      %v1673 = vpop.f32.mrb[0].mxu0
      %v1674 = vadd.f32 0.0, %v1673
      %v1675 = vpop.f32.mrb[0].mxu0
      %1676 = vmatprep.mubr.bf16.mxu0 0
      %1677 = vmatmul.mubr.bf16.gmra.mrb[0].mxu0 %v510
      %v1678 = vpop.f32.mrb[0].mxu0
      %v1679 = vpop.f32.mrb[0].mxu0
      %v1680 = vpop.f32.mrb[0].mxu0
      %v1681 = vpop.f32.mrb[0].mxu0
      %1682 = vmatprep.mubr.bf16.mxu0 0
      %1683 = vmatmul.mubr.bf16.gmra.mrb[0].mxu0 %v513
      %v1684 = vpop.f32.mrb[0].mxu0
      %v1685 = vadd.f32 0.0, %v1684
      %v1686 = vpop.f32.mrb[0].mxu0
      %v1687 = vpop.f32.mrb[0].mxu0
      %v1688 = vadd.f32 0.0, %v1687
      %v1689 = vpop.f32.mrb[0].mxu0
      %1690 = vmatprep.mubr.bf16.mxu0 0
      %1691 = vmatmul.mubr.bf16.gmra.mrb[0].mxu0 %v516
      %v1692 = vpop.f32.mrb[0].mxu0
      %v1693 = vpop.f32.mrb[0].mxu0
      %v1694 = vpop.f32.mrb[0].mxu0
      %v1695 = vpop.f32.mrb[0].mxu0
      %1696 = vmatprep.mubr.bf16.mxu0 0
      %1697 = vmatmul.mubr.bf16.gmra.mrb[0].mxu0 %v519
      %v1698 = vpop.f32.mrb[0].mxu0
      %v1699 = vadd.f32 0.0, %v1698
      %v1700 = vpop.f32.mrb[0].mxu0
      %v1701 = vpop.f32.mrb[0].mxu0
      %v1702 = vadd.f32 0.0, %v1701
      %v1703 = vpop.f32.mrb[0].mxu0
      %1704 = vmatprep.mubr.bf16.mxu0 0
      %1705 = vmatmul.mubr.bf16.gmra.mrb[0].mxu0 %v522
      %v1706 = vpop.f32.mrb[0].mxu0
      %v1707 = vpop.f32.mrb[0].mxu0
      %v1708 = vpop.f32.mrb[0].mxu0
      %v1709 = vpop.f32.mrb[0].mxu0
      %1710 = vmatprep.mubr.bf16.mxu0 0
      %1711 = vmatmul.mubr.bf16.gmra.mrb[0].mxu0 %v525
      %v1712 = vpop.f32.mrb[0].mxu0
      %v1713 = vadd.f32 0.0, %v1712
      %v1714 = vpop.f32.mrb[0].mxu0
      %v1715 = vpop.f32.mrb[0].mxu0
      %v1716 = vadd.f32 0.0, %v1715
      %v1717 = vpop.f32.mrb[0].mxu0
      %1718 = vmatprep.mubr.bf16.mxu0 0
      %1719 = vmatmul.mubr.bf16.gmra.mrb[0].mxu0 %v528
      %v1720 = vpop.f32.mrb[0].mxu0
      %v1721 = vpop.f32.mrb[0].mxu0
      %v1722 = vpop.f32.mrb[0].mxu0
      %v1723 = vpop.f32.mrb[0].mxu0
      %1724 = vmatprep.mubr.bf16.mxu0 0
      %1725 = vmatmul.mubr.bf16.gmra.mrb[0].mxu0 %v531
      %v1726 = vpop.f32.mrb[0].mxu0
      %v1727 = vadd.f32 0.0, %v1726
      %v1728 = vpop.f32.mrb[0].mxu0
      %v1729 = vpop.f32.mrb[0].mxu0
      %v1730 = vadd.f32 0.0, %v1729
      %v1731 = vpop.f32.mrb[0].mxu0
      %1732 = vmatprep.mubr.bf16.mxu0 0
      %1733 = vmatmul.mubr.bf16.gmra.mrb[0].mxu0 %v534
      %v1734 = vpop.f32.mrb[0].mxu0
      %v1735 = vpop.f32.mrb[0].mxu0
      %v1736 = vpop.f32.mrb[0].mxu0
      %v1737 = vpop.f32.mrb[0].mxu0
      %1738 = vmatprep.mubr.bf16.mxu0 0
      %1739 = vmatmul.mubr.bf16.gmra.mrb[0].mxu0 %v537
      %v1740 = vpop.f32.mrb[0].mxu0
      %v1741 = vadd.f32 0.0, %v1740
      %v1742 = vpop.f32.mrb[0].mxu0
      %v1743 = vpop.f32.mrb[0].mxu0
      %v1744 = vadd.f32 0.0, %v1743
      %v1745 = vpop.f32.mrb[0].mxu0
      %1746 = vmatprep.mubr.bf16.mxu0 0
      %1747 = vmatmul.mubr.bf16.gmra.mrb[0].mxu0 %v540
      %v1748 = vpop.f32.mrb[0].mxu0
      %v1749 = vpop.f32.mrb[0].mxu0
      %v1750 = vpop.f32.mrb[0].mxu0
      %v1751 = vpop.f32.mrb[0].mxu0
      %1752 = vmatprep.mubr.bf16.mxu0 0
      %1753 = vmatmul.mubr.bf16.gmra.mrb[0].mxu0 %v543
      %v1754 = vpop.f32.mrb[0].mxu0
      %v1755 = vadd.f32 0.0, %v1754
      %v1756 = vpop.f32.mrb[0].mxu0
      %v1757 = vpop.f32.mrb[0].mxu0
      %v1758 = vadd.f32 0.0, %v1757
      %v1759 = vpop.f32.mrb[0].mxu0
      %1760 = vmatprep.mubr.bf16.mxu0 0
      %1761 = vmatmul.mubr.bf16.gmra.mrb[0].mxu0 %v546
      %v1762 = vpop.f32.mrb[0].mxu0
      %v1763 = vpop.f32.mrb[0].mxu0
      %v1764 = vpop.f32.mrb[0].mxu0
      %v1765 = vpop.f32.mrb[0].mxu0
      %1766 = vmatprep.mubr.bf16.mxu0 0
      %1767 = vmatmul.mubr.bf16.gmra.mrb[0].mxu0 %v549
      %v1768 = vpop.f32.mrb[0].mxu0
      %v1769 = vadd.f32 0.0, %v1768
      %v1770 = vpop.f32.mrb[0].mxu0
      %v1771 = vpop.f32.mrb[0].mxu0
      %v1772 = vadd.f32 0.0, %v1771
      %v1773 = vpop.f32.mrb[0].mxu0
      %1774 = vmatprep.mubr.bf16.mxu0 0
      %1775 = vmatmul.mubr.bf16.gmra.mrb[0].mxu0 %v552
      %v1776 = vpop.f32.mrb[0].mxu0
      %v1777 = vpop.f32.mrb[0].mxu0
      %v1778 = vpop.f32.mrb[0].mxu0
      %v1779 = vpop.f32.mrb[0].mxu0
      %1780 = vmatprep.mubr.bf16.mxu0 0
      %1781 = vmatmul.mubr.bf16.gmra.mrb[0].mxu0 %v555
      %v1782 = vpop.f32.mrb[0].mxu0
      %v1783 = vadd.f32 0.0, %v1782
      %v1784 = vpop.f32.mrb[0].mxu0
      %v1785 = vpop.f32.mrb[0].mxu0
      %v1786 = vadd.f32 0.0, %v1785
      %v1787 = vpop.f32.mrb[0].mxu0
      %1788 = vmatprep.mubr.bf16.mxu0 0
      %1789 = vmatmul.mubr.bf16.gmra.mrb[0].mxu0 %v558
      %v1790 = vpop.f32.mrb[0].mxu0
      %v1791 = vpop.f32.mrb[0].mxu0
      %v1792 = vpop.f32.mrb[0].mxu0
      %v1793 = vpop.f32.mrb[0].mxu0
      %1794 = vmatprep.mubr.bf16.mxu0 0
      %1795 = vmatmul.mubr.bf16.gmra.mrb[0].mxu0 %v561
      %v1796 = vpop.f32.mrb[0].mxu0
      %v1797 = vadd.f32 0.0, %v1796
      %v1798 = vpop.f32.mrb[0].mxu0
      %v1799 = vpop.f32.mrb[0].mxu0
      %v1800 = vadd.f32 0.0, %v1799
      %v1801 = vpop.f32.mrb[0].mxu0
      %1802 = vmatprep.mubr.bf16.mxu0 0
      %1803 = vmatmul.mubr.bf16.gmra.mrb[0].mxu0 %v564
      %v1804 = vpop.f32.mrb[0].mxu0
      %v1805 = vpop.f32.mrb[0].mxu0
      %v1806 = vpop.f32.mrb[0].mxu0
      %v1807 = vpop.f32.mrb[0].mxu0
      %1808 = vmatprep.mubr.bf16.mxu0 0
      %1809 = vmatmul.mubr.bf16.gmra.mrb[0].mxu0 %v567
      %v1810 = vpop.f32.mrb[0].mxu0
      %v1811 = vadd.f32 0.0, %v1810
      %v1812 = vpop.f32.mrb[0].mxu0
      %v1813 = vpop.f32.mrb[0].mxu0
      %v1814 = vadd.f32 0.0, %v1813
      %v1815 = vpop.f32.mrb[0].mxu0
      %1816 = vmatprep.mubr.bf16.mxu0 0
      %1817 = vmatmul.mubr.bf16.gmra.mrb[0].mxu0 %v570
      %v1818 = vpop.f32.mrb[0].mxu0
      %v1819 = vpop.f32.mrb[0].mxu0
      %v1820 = vpop.f32.mrb[0].mxu0
      %v1821 = vpop.f32.mrb[0].mxu0
      %1822 = vmatprep.mubr.bf16.mxu0 0
      %1823 = vmatmul.mubr.bf16.gmra.mrb[0].mxu0 %v573
      %v1824 = vpop.f32.mrb[0].mxu0
      %v1825 = vadd.f32 0.0, %v1824
      %v1826 = vpop.f32.mrb[0].mxu0
      %v1827 = vpop.f32.mrb[0].mxu0
      %v1828 = vadd.f32 0.0, %v1827
      %v1829 = vpop.f32.mrb[0].mxu0
      %1830 = vmatprep.mubr.bf16.mxu0 0
      %1831 = vmatmul.mubr.bf16.gmra.mrb[0].mxu0 %v576
      %v1832 = vpop.f32.mrb[0].mxu0
      %v1833 = vpop.f32.mrb[0].mxu0
      %v1834 = vpop.f32.mrb[0].mxu0
      %v1835 = vpop.f32.mrb[0].mxu0
      %1836 = vmatprep.mubr.bf16.mxu0 0
      %1837 = vmatmul.mubr.bf16.gmra.mrb[0].mxu0 %v579
      %v1838 = vpop.f32.mrb[0].mxu0
      %v1839 = vadd.f32 0.0, %v1838
      %v1840 = vpop.f32.mrb[0].mxu0
      %v1841 = vpop.f32.mrb[0].mxu0
      %v1842 = vadd.f32 0.0, %v1841
      %v1843 = vpop.f32.mrb[0].mxu0
      %1844 = vmatprep.mubr.bf16.mxu0 0
      %1845 = vmatmul.mubr.bf16.gmra.mrb[0].mxu0 %v582
      %v1846 = vpop.f32.mrb[0].mxu0
      %v1847 = vpop.f32.mrb[0].mxu0
      %v1848 = vpop.f32.mrb[0].mxu0
      %v1849 = vpop.f32.mrb[0].mxu0
      %1850 = vmatprep.mubr.bf16.mxu0 0
      %1851 = vmatmul.mubr.bf16.gmra.mrb[0].mxu0 %v585
      %v1852 = vpop.f32.mrb[0].mxu0
      %v1853 = vadd.f32 0.0, %v1852
      %v1854 = vpop.f32.mrb[0].mxu0
      %v1855 = vpop.f32.mrb[0].mxu0
      %v1856 = vadd.f32 0.0, %v1855
      %v1857 = vpop.f32.mrb[0].mxu0
      %1858 = vmatprep.mubr.bf16.mxu0 0
      %1859 = vmatmul.mubr.bf16.gmra.mrb[0].mxu0 %v588
      %v1860 = vpop.f32.mrb[0].mxu0
      %v1861 = vpop.f32.mrb[0].mxu0
      %v1862 = vpop.f32.mrb[0].mxu0
      %v1863 = vpop.f32.mrb[0].mxu0
      %1864 = vmatprep.mubr.bf16.mxu0 0
      %1865 = vmatmul.mubr.bf16.gmra.mrb[0].mxu0 %v1614
      %v1866 = vpop.f32.mrb[0].mxu0
      %v1867 = vadd.f32 0.0, %v1866
      %v1868 = vpop.f32.mrb[0].mxu0
      %v1869 = vpop.f32.mrb[0].mxu0
      %v1870 = vadd.f32 0.0, %v1869
      %v1871 = vpop.f32.mrb[0].mxu0
      %1872 = vmatprep.mubr.bf16.mxu0 0
      %1873 = vmatmul.mubr.bf16.gmra.mrb[0].mxu0 %v1617
      %v1874 = vpop.f32.mrb[0].mxu0
      %v1875 = vpop.f32.mrb[0].mxu0
      %v1876 = vpop.f32.mrb[0].mxu0
      %v1877 = vpop.f32.mrb[0].mxu0
      %1878 = vdwg.mxu0
      %v1879 = vadd.f32 %v1569, %v1657
      %v1880 = vadd.f32 %v1570, %v1660
      %v1881 = vadd.f32 %v1571, %v1671
      %v1882 = vadd.f32 %v1572, %v1674
      %v1883 = vadd.f32 %v1573, %v1685
      %v1884 = vadd.f32 %v1574, %v1688
      %v1885 = vadd.f32 %v1575, %v1699
      %v1886 = vadd.f32 %v1576, %v1702
      %v1887 = vadd.f32 %v1577, %v1713
      %v1888 = vadd.f32 %v1578, %v1716
      %v1889 = vadd.f32 %v1579, %v1727
      %v1890 = vadd.f32 %v1580, %v1730
      %v1891 = vadd.f32 %v1581, %v1741
      %v1892 = vadd.f32 %v1582, %v1744
      %v1893 = vadd.f32 %v1583, %v1755
      %v1894 = vadd.f32 %v1584, %v1758
      %v1895 = vadd.f32 %v1585, %v1769
      %v1896 = vadd.f32 %v1586, %v1772
      %v1897 = vadd.f32 %v1587, %v1783
      %v1898 = vadd.f32 %v1588, %v1786
      %v1899 = vadd.f32 %v1589, %v1797
      %v1900 = vadd.f32 %v1590, %v1800
      %v1901 = vadd.f32 %v1591, %v1811
      %v1902 = vadd.f32 %v1592, %v1814
      %v1903 = vadd.f32 %v1593, %v1825
      %v1904 = vadd.f32 %v1594, %v1828
      %v1905 = vadd.f32 %v1595, %v1839
      %v1906 = vadd.f32 %v1596, %v1842
      %v1907 = vadd.f32 %v1597, %v1853
      %v1908 = vadd.f32 %v1598, %v1856
      %v1909 = vadd.f32 %v1599, %v1867
      %v1910 = vadd.f32 %v1600, %v1870
      %s1911 = scalar_lea.vmem %s1, 8
      %v1912 = vld [vmem:[%s1911] sm:$0x3]
      %v1914 = vsel %vm590, %v1912, 0
      %1916 = vmatprep.subr.bf16.mxu0 0
      %1917 = vmatpush1.bf16.msra.mxu0 %v1914
      %1918 = vmatprep.subr.bf16.mxu0 0
      %1919 = vmatpush1.bf16.msra.mxu0 0
      %1920 = vmatprep.subr.bf16.mxu0 0
      %1921 = vmatpush1.bf16.msra.mxu0 0
      %1922 = vmatprep.subr.bf16.mxu0 0
      %1923 = vmatpush1.bf16.msra.mxu0 0
      %1924 = vmatprep.subr.bf16.mxu0 0
      %1925 = vmatpush1.bf16.msra.mxu0 0
      %1926 = vmatprep.subr.bf16.mxu0 0
      %1927 = vmatpush1.bf16.msra.mxu0 0
      %1928 = vmatprep.subr.bf16.mxu0 0
      %1929 = vmatpush1.bf16.msra.mxu0 0
      %1930 = vmatprep.subr.bf16.mxu0 0
      %1931 = vmatpush1.bf16.msra.mxu0 0
      %1932 = vmatprep.subr.bf16.mxu0 0
      %1933 = vmatpush1.bf16.msra.mxu0 0
      %1934 = vmatprep.subr.bf16.mxu0 0
      %1935 = vmatpush1.bf16.msra.mxu0 0
      %1936 = vmatprep.subr.bf16.mxu0 0
      %1937 = vmatpush1.bf16.msra.mxu0 0
      %1938 = vmatprep.subr.bf16.mxu0 0
      %1939 = vmatpush1.bf16.msra.mxu0 0
      %1940 = vmatprep.subr.bf16.mxu0 0
      %1941 = vmatpush1.bf16.msra.mxu0 0
      %1942 = vmatprep.subr.bf16.mxu0 0
      %1943 = vmatpush1.bf16.msra.mxu0 0
      %1944 = vmatprep.subr.bf16.mxu0 0
      %1945 = vmatpush1.bf16.msra.mxu0 0
      %1946 = vmatprep.subr.bf16.mxu0 0
      %1947 = vmatpush1.bf16.msra.mxu0 0
      %1948 = vmatprep.mubr.bf16.mxu0 0
      %1949 = vmatmul.mubr.bf16.gmra.mrb[0].mxu0 %v501
      %v1950 = vpop.f32.mrb[0].mxu0
      %v1951 = vadd.f32 0.0, %v1950
      %v1952 = vpop.f32.mrb[0].mxu0
      %v1953 = vpop.f32.mrb[0].mxu0
      %v1954 = vadd.f32 0.0, %v1953
      %v1955 = vpop.f32.mrb[0].mxu0
      %1956 = vmatprep.mubr.bf16.mxu0 0
      %1957 = vmatmul.mubr.bf16.gmra.mrb[0].mxu0 %v504
      %v1958 = vpop.f32.mrb[0].mxu0
      %v1959 = vadd.f32 0.0, %v1958
      %v1960 = vpop.f32.mrb[0].mxu0
      %v1961 = vpop.f32.mrb[0].mxu0
      %v1962 = vpop.f32.mrb[0].mxu0
      %1963 = vmatprep.mubr.bf16.mxu0 0
      %1964 = vmatmul.mubr.bf16.gmra.mrb[0].mxu0 %v507
      %v1965 = vpop.f32.mrb[0].mxu0
      %v1966 = vadd.f32 0.0, %v1965
      %v1967 = vpop.f32.mrb[0].mxu0
      %v1968 = vpop.f32.mrb[0].mxu0
      %v1969 = vadd.f32 0.0, %v1968
      %v1970 = vpop.f32.mrb[0].mxu0
      %1971 = vmatprep.mubr.bf16.mxu0 0
      %1972 = vmatmul.mubr.bf16.gmra.mrb[0].mxu0 %v510
      %v1973 = vpop.f32.mrb[0].mxu0
      %v1974 = vadd.f32 0.0, %v1973
      %v1975 = vpop.f32.mrb[0].mxu0
      %v1976 = vpop.f32.mrb[0].mxu0
      %v1977 = vpop.f32.mrb[0].mxu0
      %1978 = vmatprep.mubr.bf16.mxu0 0
      %1979 = vmatmul.mubr.bf16.gmra.mrb[0].mxu0 %v513
      %v1980 = vpop.f32.mrb[0].mxu0
      %v1981 = vadd.f32 0.0, %v1980
      %v1982 = vpop.f32.mrb[0].mxu0
      %v1983 = vpop.f32.mrb[0].mxu0
      %v1984 = vadd.f32 0.0, %v1983
      %v1985 = vpop.f32.mrb[0].mxu0
      %1986 = vmatprep.mubr.bf16.mxu0 0
      %1987 = vmatmul.mubr.bf16.gmra.mrb[0].mxu0 %v516
      %v1988 = vpop.f32.mrb[0].mxu0
      %v1989 = vadd.f32 0.0, %v1988
      %v1990 = vpop.f32.mrb[0].mxu0
      %v1991 = vpop.f32.mrb[0].mxu0
      %v1992 = vpop.f32.mrb[0].mxu0
      %1993 = vmatprep.mubr.bf16.mxu0 0
      %1994 = vmatmul.mubr.bf16.gmra.mrb[0].mxu0 %v519
      %v1995 = vpop.f32.mrb[0].mxu0
      %v1996 = vadd.f32 0.0, %v1995
      %v1997 = vpop.f32.mrb[0].mxu0
      %v1998 = vpop.f32.mrb[0].mxu0
      %v1999 = vadd.f32 0.0, %v1998
      %v2000 = vpop.f32.mrb[0].mxu0
      %2001 = vmatprep.mubr.bf16.mxu0 0
      %2002 = vmatmul.mubr.bf16.gmra.mrb[0].mxu0 %v522
      %v2003 = vpop.f32.mrb[0].mxu0
      %v2004 = vadd.f32 0.0, %v2003
      %v2005 = vpop.f32.mrb[0].mxu0
      %v2006 = vpop.f32.mrb[0].mxu0
      %v2007 = vpop.f32.mrb[0].mxu0
      %2008 = vmatprep.mubr.bf16.mxu0 0
      %2009 = vmatmul.mubr.bf16.gmra.mrb[0].mxu0 %v525
      %v2010 = vpop.f32.mrb[0].mxu0
      %v2011 = vadd.f32 0.0, %v2010
      %v2012 = vpop.f32.mrb[0].mxu0
      %v2013 = vpop.f32.mrb[0].mxu0
      %v2014 = vadd.f32 0.0, %v2013
      %v2015 = vpop.f32.mrb[0].mxu0
      %2016 = vmatprep.mubr.bf16.mxu0 0
      %2017 = vmatmul.mubr.bf16.gmra.mrb[0].mxu0 %v528
      %v2018 = vpop.f32.mrb[0].mxu0
      %v2019 = vadd.f32 0.0, %v2018
      %v2020 = vpop.f32.mrb[0].mxu0
      %v2021 = vpop.f32.mrb[0].mxu0
      %v2022 = vpop.f32.mrb[0].mxu0
      %2023 = vmatprep.mubr.bf16.mxu0 0
      %2024 = vmatmul.mubr.bf16.gmra.mrb[0].mxu0 %v531
      %v2025 = vpop.f32.mrb[0].mxu0
      %v2026 = vadd.f32 0.0, %v2025
      %v2027 = vpop.f32.mrb[0].mxu0
      %v2028 = vpop.f32.mrb[0].mxu0
      %v2029 = vadd.f32 0.0, %v2028
      %v2030 = vpop.f32.mrb[0].mxu0
      %2031 = vmatprep.mubr.bf16.mxu0 0
      %2032 = vmatmul.mubr.bf16.gmra.mrb[0].mxu0 %v534
      %v2033 = vpop.f32.mrb[0].mxu0
      %v2034 = vadd.f32 0.0, %v2033
      %v2035 = vpop.f32.mrb[0].mxu0
      %v2036 = vpop.f32.mrb[0].mxu0
      %v2037 = vpop.f32.mrb[0].mxu0
      %2038 = vmatprep.mubr.bf16.mxu0 0
      %2039 = vmatmul.mubr.bf16.gmra.mrb[0].mxu0 %v537
      %v2040 = vpop.f32.mrb[0].mxu0
      %v2041 = vadd.f32 0.0, %v2040
      %v2042 = vpop.f32.mrb[0].mxu0
      %v2043 = vpop.f32.mrb[0].mxu0
      %v2044 = vadd.f32 0.0, %v2043
      %v2045 = vpop.f32.mrb[0].mxu0
      %2046 = vmatprep.mubr.bf16.mxu0 0
      %2047 = vmatmul.mubr.bf16.gmra.mrb[0].mxu0 %v540
      %v2048 = vpop.f32.mrb[0].mxu0
      %v2049 = vadd.f32 0.0, %v2048
      %v2050 = vpop.f32.mrb[0].mxu0
      %v2051 = vpop.f32.mrb[0].mxu0
      %v2052 = vpop.f32.mrb[0].mxu0
      %2053 = vmatprep.mubr.bf16.mxu0 0
      %2054 = vmatmul.mubr.bf16.gmra.mrb[0].mxu0 %v543
      %v2055 = vpop.f32.mrb[0].mxu0
      %v2056 = vadd.f32 0.0, %v2055
      %v2057 = vpop.f32.mrb[0].mxu0
      %v2058 = vpop.f32.mrb[0].mxu0
      %v2059 = vadd.f32 0.0, %v2058
      %v2060 = vpop.f32.mrb[0].mxu0
      %2061 = vmatprep.mubr.bf16.mxu0 0
      %2062 = vmatmul.mubr.bf16.gmra.mrb[0].mxu0 %v546
      %v2063 = vpop.f32.mrb[0].mxu0
      %v2064 = vadd.f32 0.0, %v2063
      %v2065 = vpop.f32.mrb[0].mxu0
      %v2066 = vpop.f32.mrb[0].mxu0
      %v2067 = vpop.f32.mrb[0].mxu0
      %2068 = vmatprep.mubr.bf16.mxu0 0
      %2069 = vmatmul.mubr.bf16.gmra.mrb[0].mxu0 %v549
      %v2070 = vpop.f32.mrb[0].mxu0
      %v2071 = vadd.f32 0.0, %v2070
      %v2072 = vpop.f32.mrb[0].mxu0
      %v2073 = vpop.f32.mrb[0].mxu0
      %v2074 = vadd.f32 0.0, %v2073
      %v2075 = vpop.f32.mrb[0].mxu0
      %2076 = vmatprep.mubr.bf16.mxu0 0
      %2077 = vmatmul.mubr.bf16.gmra.mrb[0].mxu0 %v552
      %v2078 = vpop.f32.mrb[0].mxu0
      %v2079 = vadd.f32 0.0, %v2078
      %v2080 = vpop.f32.mrb[0].mxu0
      %v2081 = vpop.f32.mrb[0].mxu0
      %v2082 = vpop.f32.mrb[0].mxu0
      %2083 = vmatprep.mubr.bf16.mxu0 0
      %2084 = vmatmul.mubr.bf16.gmra.mrb[0].mxu0 %v555
      %v2085 = vpop.f32.mrb[0].mxu0
      %v2086 = vadd.f32 0.0, %v2085
      %v2087 = vpop.f32.mrb[0].mxu0
      %v2088 = vpop.f32.mrb[0].mxu0
      %v2089 = vadd.f32 0.0, %v2088
      %v2090 = vpop.f32.mrb[0].mxu0
      %2091 = vmatprep.mubr.bf16.mxu0 0
      %2092 = vmatmul.mubr.bf16.gmra.mrb[0].mxu0 %v558
      %v2093 = vpop.f32.mrb[0].mxu0
      %v2094 = vadd.f32 0.0, %v2093
      %v2095 = vpop.f32.mrb[0].mxu0
      %v2096 = vpop.f32.mrb[0].mxu0
      %v2097 = vpop.f32.mrb[0].mxu0
      %2098 = vmatprep.mubr.bf16.mxu0 0
      %2099 = vmatmul.mubr.bf16.gmra.mrb[0].mxu0 %v561
      %v2100 = vpop.f32.mrb[0].mxu0
      %v2101 = vadd.f32 0.0, %v2100
      %v2102 = vpop.f32.mrb[0].mxu0
      %v2103 = vpop.f32.mrb[0].mxu0
      %v2104 = vadd.f32 0.0, %v2103
      %v2105 = vpop.f32.mrb[0].mxu0
      %2106 = vmatprep.mubr.bf16.mxu0 0
      %2107 = vmatmul.mubr.bf16.gmra.mrb[0].mxu0 %v564
      %v2108 = vpop.f32.mrb[0].mxu0
      %v2109 = vadd.f32 0.0, %v2108
      %v2110 = vpop.f32.mrb[0].mxu0
      %v2111 = vpop.f32.mrb[0].mxu0
      %v2112 = vpop.f32.mrb[0].mxu0
      %2113 = vmatprep.mubr.bf16.mxu0 0
      %2114 = vmatmul.mubr.bf16.gmra.mrb[0].mxu0 %v567
      %v2115 = vpop.f32.mrb[0].mxu0
      %v2116 = vadd.f32 0.0, %v2115
      %v2117 = vpop.f32.mrb[0].mxu0
      %v2118 = vpop.f32.mrb[0].mxu0
      %v2119 = vadd.f32 0.0, %v2118
      %v2120 = vpop.f32.mrb[0].mxu0
      %2121 = vmatprep.mubr.bf16.mxu0 0
      %2122 = vmatmul.mubr.bf16.gmra.mrb[0].mxu0 %v570
      %v2123 = vpop.f32.mrb[0].mxu0
      %v2124 = vadd.f32 0.0, %v2123
      %v2125 = vpop.f32.mrb[0].mxu0
      %v2126 = vpop.f32.mrb[0].mxu0
      %v2127 = vpop.f32.mrb[0].mxu0
      %2128 = vmatprep.mubr.bf16.mxu0 0
      %2129 = vmatmul.mubr.bf16.gmra.mrb[0].mxu0 %v573
      %v2130 = vpop.f32.mrb[0].mxu0
      %v2131 = vadd.f32 0.0, %v2130
      %v2132 = vpop.f32.mrb[0].mxu0
      %v2133 = vpop.f32.mrb[0].mxu0
      %v2134 = vadd.f32 0.0, %v2133
      %v2135 = vpop.f32.mrb[0].mxu0
      %2136 = vmatprep.mubr.bf16.mxu0 0
      %2137 = vmatmul.mubr.bf16.gmra.mrb[0].mxu0 %v576
      %v2138 = vpop.f32.mrb[0].mxu0
      %v2139 = vadd.f32 0.0, %v2138
      %v2140 = vpop.f32.mrb[0].mxu0
      %v2141 = vpop.f32.mrb[0].mxu0
      %v2142 = vpop.f32.mrb[0].mxu0
      %2143 = vmatprep.mubr.bf16.mxu0 0
      %2144 = vmatmul.mubr.bf16.gmra.mrb[0].mxu0 %v579
      %v2145 = vpop.f32.mrb[0].mxu0
      %v2146 = vadd.f32 0.0, %v2145
      %v2147 = vpop.f32.mrb[0].mxu0
      %v2148 = vpop.f32.mrb[0].mxu0
      %v2149 = vadd.f32 0.0, %v2148
      %v2150 = vpop.f32.mrb[0].mxu0
      %2151 = vmatprep.mubr.bf16.mxu0 0
      %2152 = vmatmul.mubr.bf16.gmra.mrb[0].mxu0 %v582
      %v2153 = vpop.f32.mrb[0].mxu0
      %v2154 = vadd.f32 0.0, %v2153
      %v2155 = vpop.f32.mrb[0].mxu0
      %v2156 = vpop.f32.mrb[0].mxu0
      %v2157 = vpop.f32.mrb[0].mxu0
      %2158 = vmatprep.mubr.bf16.mxu0 0
      %2159 = vmatmul.mubr.bf16.gmra.mrb[0].mxu0 %v585
      %v2160 = vpop.f32.mrb[0].mxu0
      %v2161 = vadd.f32 0.0, %v2160
      %v2162 = vpop.f32.mrb[0].mxu0
      %v2163 = vpop.f32.mrb[0].mxu0
      %v2164 = vadd.f32 0.0, %v2163
      %v2165 = vpop.f32.mrb[0].mxu0
      %2166 = vmatprep.mubr.bf16.mxu0 0
      %2167 = vmatmul.mubr.bf16.gmra.mrb[0].mxu0 %v588
      %v2168 = vpop.f32.mrb[0].mxu0
      %v2169 = vadd.f32 0.0, %v2168
      %v2170 = vpop.f32.mrb[0].mxu0
      %v2171 = vpop.f32.mrb[0].mxu0
      %v2172 = vpop.f32.mrb[0].mxu0
      %2173 = vmatprep.mubr.bf16.mxu0 0
      %2174 = vmatmul.mubr.bf16.gmra.mrb[0].mxu0 %v1614
      %v2175 = vpop.f32.mrb[0].mxu0
      %v2176 = vadd.f32 0.0, %v2175
      %v2177 = vpop.f32.mrb[0].mxu0
      %v2178 = vpop.f32.mrb[0].mxu0
      %v2179 = vadd.f32 0.0, %v2178
      %v2180 = vpop.f32.mrb[0].mxu0
      %2181 = vmatprep.mubr.bf16.mxu0 0
      %2182 = vmatmul.mubr.bf16.gmra.mrb[0].mxu0 %v1617
      %v2183 = vpop.f32.mrb[0].mxu0
      %v2184 = vadd.f32 0.0, %v2183
      %v2185 = vpop.f32.mrb[0].mxu0
      %v2186 = vpop.f32.mrb[0].mxu0
      %v2187 = vpop.f32.mrb[0].mxu0
      %2188 = vdwg.mxu0
      %v2189 = vrot.slane %v1951, 1
      %v2190 = vrot.slane %v1954, 1
      %v2191 = vrot.slane %v1959, 1
      %v2192 = vrot.slane %v1966, 1
      %v2193 = vrot.slane %v1969, 1
      %v2194 = vrot.slane %v1974, 1
      %v2195 = vrot.slane %v1981, 1
      %v2196 = vrot.slane %v1984, 1
      %v2197 = vrot.slane %v1989, 1
      %v2198 = vrot.slane %v1996, 1
      %v2199 = vrot.slane %v1999, 1
      %v2200 = vrot.slane %v2004, 1
      %v2201 = vrot.slane %v2011, 1
      %v2202 = vrot.slane %v2014, 1
      %v2203 = vrot.slane %v2019, 1
      %v2204 = vrot.slane %v2026, 1
      %v2205 = vrot.slane %v2029, 1
      %v2206 = vrot.slane %v2034, 1
      %v2207 = vrot.slane %v2041, 1
      %v2208 = vrot.slane %v2044, 1
      %v2209 = vrot.slane %v2049, 1
      %v2210 = vrot.slane %v2056, 1
      %v2211 = vrot.slane %v2059, 1
      %v2212 = vrot.slane %v2064, 1
      %v2213 = vrot.slane %v2071, 1
      %v2214 = vrot.slane %v2074, 1
      %v2215 = vrot.slane %v2079, 1
      %v2216 = vrot.slane %v2086, 1
      %v2217 = vrot.slane %v2089, 1
      %v2218 = vrot.slane %v2094, 1
      %v2219 = vrot.slane %v2101, 1
      %v2220 = vrot.slane %v2104, 1
      %v2221 = vrot.slane %v2109, 1
      %v2222 = vrot.slane %v2116, 1
      %v2223 = vrot.slane %v2119, 1
      %v2224 = vrot.slane %v2124, 1
      %v2225 = vrot.slane %v2131, 1
      %v2226 = vrot.slane %v2134, 1
      %v2227 = vrot.slane %v2139, 1
      %v2228 = vrot.slane %v2146, 1
      %v2229 = vrot.slane %v2149, 1
      %v2230 = vrot.slane %v2154, 1
      %v2231 = vrot.slane %v2161, 1
      %v2232 = vrot.slane %v2164, 1
      %v2233 = vrot.slane %v2169, 1
      %v2234 = vrot.slane %v2176, 1
      %v2235 = vrot.slane %v2179, 1
      %v2236 = vrot.slane %v2184, 1
      %v2237 = vsel %vm917, %v2235, %v2236
      %v2238 = vsel %vm917, %v2234, %v2235
      %v2239 = vsel %vm917, %v2232, %v2233
      %v2240 = vsel %vm917, %v2231, %v2232
      %v2241 = vsel %vm917, %v2229, %v2230
      %v2242 = vsel %vm917, %v2228, %v2229
      %v2243 = vsel %vm917, %v2226, %v2227
      %v2244 = vsel %vm917, %v2225, %v2226
      %v2245 = vsel %vm917, %v2223, %v2224
      %v2246 = vsel %vm917, %v2222, %v2223
      %v2247 = vsel %vm917, %v2220, %v2221
      %v2248 = vsel %vm917, %v2219, %v2220
      %v2249 = vsel %vm917, %v2217, %v2218
      %v2250 = vsel %vm917, %v2216, %v2217
      %v2251 = vsel %vm917, %v2214, %v2215
      %v2252 = vsel %vm917, %v2213, %v2214
      %v2253 = vsel %vm917, %v2211, %v2212
      %v2254 = vsel %vm917, %v2210, %v2211
      %v2255 = vsel %vm917, %v2208, %v2209
      %v2256 = vsel %vm917, %v2207, %v2208
      %v2257 = vsel %vm917, %v2205, %v2206
      %v2258 = vsel %vm917, %v2204, %v2205
      %v2259 = vsel %vm917, %v2202, %v2203
      %v2260 = vsel %vm917, %v2201, %v2202
      %v2261 = vsel %vm917, %v2199, %v2200
      %v2262 = vsel %vm917, %v2198, %v2199
      %v2263 = vsel %vm917, %v2196, %v2197
      %v2264 = vsel %vm917, %v2195, %v2196
      %v2265 = vsel %vm917, %v2193, %v2194
      %v2266 = vsel %vm917, %v2192, %v2193
      %v2267 = vsel %vm917, %v2190, %v2191
      %v2268 = vsel %vm917, %v2189, %v2190
      %v2269 = vadd.f32 %v1879, %v2268
      %v2270 = vadd.f32 %v1880, %v2267
      %v2271 = vadd.f32 %v1881, %v2266
      %v2272 = vadd.f32 %v1882, %v2265
      %v2273 = vadd.f32 %v1883, %v2264
      %v2274 = vadd.f32 %v1884, %v2263
      %v2275 = vadd.f32 %v1885, %v2262
      %v2276 = vadd.f32 %v1886, %v2261
      %v2277 = vadd.f32 %v1887, %v2260
      %v2278 = vadd.f32 %v1888, %v2259
      %v2279 = vadd.f32 %v1889, %v2258
      %v2280 = vadd.f32 %v1890, %v2257
      %v2281 = vadd.f32 %v1891, %v2256
      %v2282 = vadd.f32 %v1892, %v2255
      %v2283 = vadd.f32 %v1893, %v2254
      %v2284 = vadd.f32 %v1894, %v2253
      %v2285 = vadd.f32 %v1895, %v2252
      %v2286 = vadd.f32 %v1896, %v2251
      %v2287 = vadd.f32 %v1897, %v2250
      %v2288 = vadd.f32 %v1898, %v2249
      %v2289 = vadd.f32 %v1899, %v2248
      %v2290 = vadd.f32 %v1900, %v2247
      %v2291 = vadd.f32 %v1901, %v2246
      %v2292 = vadd.f32 %v1902, %v2245
      %v2293 = vadd.f32 %v1903, %v2244
      %v2294 = vadd.f32 %v1904, %v2243
      %v2295 = vadd.f32 %v1905, %v2242
      %v2296 = vadd.f32 %v1906, %v2241
      %v2297 = vadd.f32 %v1907, %v2240
      %v2298 = vadd.f32 %v1908, %v2239
      %v2299 = vadd.f32 %v1909, %v2238
      %v2300 = vadd.f32 %v1910, %v2237
      %s2301 = scalar_lea.vmem %s1, 10
      %v2302 = vld [vmem:[%s2301] sm:$0x3]
      %v2304 = vsel %vm590, %v2302, 0
      %2306 = vmatprep.subr.bf16.mxu0 0
      %2307 = vmatpush1.bf16.msra.mxu0 %v2304
      %2308 = vmatprep.subr.bf16.mxu0 0
      %2309 = vmatpush1.bf16.msra.mxu0 0
      %2310 = vmatprep.subr.bf16.mxu0 0
      %2311 = vmatpush1.bf16.msra.mxu0 0
      %2312 = vmatprep.subr.bf16.mxu0 0
      %2313 = vmatpush1.bf16.msra.mxu0 0
      %2314 = vmatprep.subr.bf16.mxu0 0
      %2315 = vmatpush1.bf16.msra.mxu0 0
      %2316 = vmatprep.subr.bf16.mxu0 0
      %2317 = vmatpush1.bf16.msra.mxu0 0
      %2318 = vmatprep.subr.bf16.mxu0 0
      %2319 = vmatpush1.bf16.msra.mxu0 0
      %2320 = vmatprep.subr.bf16.mxu0 0
      %2321 = vmatpush1.bf16.msra.mxu0 0
      %2322 = vmatprep.subr.bf16.mxu0 0
      %2323 = vmatpush1.bf16.msra.mxu0 0
      %2324 = vmatprep.subr.bf16.mxu0 0
      %2325 = vmatpush1.bf16.msra.mxu0 0
      %2326 = vmatprep.subr.bf16.mxu0 0
      %2327 = vmatpush1.bf16.msra.mxu0 0
      %2328 = vmatprep.subr.bf16.mxu0 0
      %2329 = vmatpush1.bf16.msra.mxu0 0
      %2330 = vmatprep.subr.bf16.mxu0 0
      %2331 = vmatpush1.bf16.msra.mxu0 0
      %2332 = vmatprep.subr.bf16.mxu0 0
      %2333 = vmatpush1.bf16.msra.mxu0 0
      %2334 = vmatprep.subr.bf16.mxu0 0
      %2335 = vmatpush1.bf16.msra.mxu0 0
      %2336 = vmatprep.subr.bf16.mxu0 0
      %2337 = vmatpush1.bf16.msra.mxu0 0
      %2338 = vmatprep.mubr.bf16.mxu0 0
      %2339 = vmatmul.mubr.bf16.gmra.mrb[0].mxu0 %v501
      %v2340 = vpop.f32.mrb[0].mxu0
      %v2341 = vadd.f32 0.0, %v2340
      %v2342 = vpop.f32.mrb[0].mxu0
      %v2343 = vpop.f32.mrb[0].mxu0
      %v2344 = vadd.f32 0.0, %v2343
      %v2345 = vpop.f32.mrb[0].mxu0
      %2346 = vmatprep.mubr.bf16.mxu0 0
      %2347 = vmatmul.mubr.bf16.gmra.mrb[0].mxu0 %v504
      %v2348 = vpop.f32.mrb[0].mxu0
      %v2349 = vadd.f32 0.0, %v2348
      %v2350 = vpop.f32.mrb[0].mxu0
      %v2351 = vpop.f32.mrb[0].mxu0
      %v2352 = vpop.f32.mrb[0].mxu0
      %2353 = vmatprep.mubr.bf16.mxu0 0
      %2354 = vmatmul.mubr.bf16.gmra.mrb[0].mxu0 %v507
      %v2355 = vpop.f32.mrb[0].mxu0
      %v2356 = vadd.f32 0.0, %v2355
      %v2357 = vpop.f32.mrb[0].mxu0
      %v2358 = vpop.f32.mrb[0].mxu0
      %v2359 = vadd.f32 0.0, %v2358
      %v2360 = vpop.f32.mrb[0].mxu0
      %2361 = vmatprep.mubr.bf16.mxu0 0
      %2362 = vmatmul.mubr.bf16.gmra.mrb[0].mxu0 %v510
      %v2363 = vpop.f32.mrb[0].mxu0
      %v2364 = vadd.f32 0.0, %v2363
      %v2365 = vpop.f32.mrb[0].mxu0
      %v2366 = vpop.f32.mrb[0].mxu0
      %v2367 = vpop.f32.mrb[0].mxu0
      %2368 = vmatprep.mubr.bf16.mxu0 0
      %2369 = vmatmul.mubr.bf16.gmra.mrb[0].mxu0 %v513
      %v2370 = vpop.f32.mrb[0].mxu0
      %v2371 = vadd.f32 0.0, %v2370
      %v2372 = vpop.f32.mrb[0].mxu0
      %v2373 = vpop.f32.mrb[0].mxu0
      %v2374 = vadd.f32 0.0, %v2373
      %v2375 = vpop.f32.mrb[0].mxu0
      %2376 = vmatprep.mubr.bf16.mxu0 0
      %2377 = vmatmul.mubr.bf16.gmra.mrb[0].mxu0 %v516
      %v2378 = vpop.f32.mrb[0].mxu0
      %v2379 = vadd.f32 0.0, %v2378
      %v2380 = vpop.f32.mrb[0].mxu0
      %v2381 = vpop.f32.mrb[0].mxu0
      %v2382 = vpop.f32.mrb[0].mxu0
      %2383 = vmatprep.mubr.bf16.mxu0 0
      %2384 = vmatmul.mubr.bf16.gmra.mrb[0].mxu0 %v519
      %v2385 = vpop.f32.mrb[0].mxu0
      %v2386 = vadd.f32 0.0, %v2385
      %v2387 = vpop.f32.mrb[0].mxu0
      %v2388 = vpop.f32.mrb[0].mxu0
      %v2389 = vadd.f32 0.0, %v2388
      %v2390 = vpop.f32.mrb[0].mxu0
      %2391 = vmatprep.mubr.bf16.mxu0 0
      %2392 = vmatmul.mubr.bf16.gmra.mrb[0].mxu0 %v522
      %v2393 = vpop.f32.mrb[0].mxu0
      %v2394 = vadd.f32 0.0, %v2393
      %v2395 = vpop.f32.mrb[0].mxu0
      %v2396 = vpop.f32.mrb[0].mxu0
      %v2397 = vpop.f32.mrb[0].mxu0
      %2398 = vmatprep.mubr.bf16.mxu0 0
      %2399 = vmatmul.mubr.bf16.gmra.mrb[0].mxu0 %v525
      %v2400 = vpop.f32.mrb[0].mxu0
      %v2401 = vadd.f32 0.0, %v2400
      %v2402 = vpop.f32.mrb[0].mxu0
      %v2403 = vpop.f32.mrb[0].mxu0
      %v2404 = vadd.f32 0.0, %v2403
      %v2405 = vpop.f32.mrb[0].mxu0
      %2406 = vmatprep.mubr.bf16.mxu0 0
      %2407 = vmatmul.mubr.bf16.gmra.mrb[0].mxu0 %v528
      %v2408 = vpop.f32.mrb[0].mxu0
      %v2409 = vadd.f32 0.0, %v2408
      %v2410 = vpop.f32.mrb[0].mxu0
      %v2411 = vpop.f32.mrb[0].mxu0
      %v2412 = vpop.f32.mrb[0].mxu0
      %2413 = vmatprep.mubr.bf16.mxu0 0
      %2414 = vmatmul.mubr.bf16.gmra.mrb[0].mxu0 %v531
      %v2415 = vpop.f32.mrb[0].mxu0
      %v2416 = vadd.f32 0.0, %v2415
      %v2417 = vpop.f32.mrb[0].mxu0
      %v2418 = vpop.f32.mrb[0].mxu0
      %v2419 = vadd.f32 0.0, %v2418
      %v2420 = vpop.f32.mrb[0].mxu0
      %2421 = vmatprep.mubr.bf16.mxu0 0
      %2422 = vmatmul.mubr.bf16.gmra.mrb[0].mxu0 %v534
      %v2423 = vpop.f32.mrb[0].mxu0
      %v2424 = vadd.f32 0.0, %v2423
      %v2425 = vpop.f32.mrb[0].mxu0
      %v2426 = vpop.f32.mrb[0].mxu0
      %v2427 = vpop.f32.mrb[0].mxu0
      %2428 = vmatprep.mubr.bf16.mxu0 0
      %2429 = vmatmul.mubr.bf16.gmra.mrb[0].mxu0 %v537
      %v2430 = vpop.f32.mrb[0].mxu0
      %v2431 = vadd.f32 0.0, %v2430
      %v2432 = vpop.f32.mrb[0].mxu0
      %v2433 = vpop.f32.mrb[0].mxu0
      %v2434 = vadd.f32 0.0, %v2433
      %v2435 = vpop.f32.mrb[0].mxu0
      %2436 = vmatprep.mubr.bf16.mxu0 0
      %2437 = vmatmul.mubr.bf16.gmra.mrb[0].mxu0 %v540
      %v2438 = vpop.f32.mrb[0].mxu0
      %v2439 = vadd.f32 0.0, %v2438
      %v2440 = vpop.f32.mrb[0].mxu0
      %v2441 = vpop.f32.mrb[0].mxu0
      %v2442 = vpop.f32.mrb[0].mxu0
      %2443 = vmatprep.mubr.bf16.mxu0 0
      %2444 = vmatmul.mubr.bf16.gmra.mrb[0].mxu0 %v543
      %v2445 = vpop.f32.mrb[0].mxu0
      %v2446 = vadd.f32 0.0, %v2445
      %v2447 = vpop.f32.mrb[0].mxu0
      %v2448 = vpop.f32.mrb[0].mxu0
      %v2449 = vadd.f32 0.0, %v2448
      %v2450 = vpop.f32.mrb[0].mxu0
      %2451 = vmatprep.mubr.bf16.mxu0 0
      %2452 = vmatmul.mubr.bf16.gmra.mrb[0].mxu0 %v546
      %v2453 = vpop.f32.mrb[0].mxu0
      %v2454 = vadd.f32 0.0, %v2453
      %v2455 = vpop.f32.mrb[0].mxu0
      %v2456 = vpop.f32.mrb[0].mxu0
      %v2457 = vpop.f32.mrb[0].mxu0
      %2458 = vmatprep.mubr.bf16.mxu0 0
      %2459 = vmatmul.mubr.bf16.gmra.mrb[0].mxu0 %v549
      %v2460 = vpop.f32.mrb[0].mxu0
      %v2461 = vadd.f32 0.0, %v2460
      %v2462 = vpop.f32.mrb[0].mxu0
      %v2463 = vpop.f32.mrb[0].mxu0
      %v2464 = vadd.f32 0.0, %v2463
      %v2465 = vpop.f32.mrb[0].mxu0
      %2466 = vmatprep.mubr.bf16.mxu0 0
      %2467 = vmatmul.mubr.bf16.gmra.mrb[0].mxu0 %v552
      %v2468 = vpop.f32.mrb[0].mxu0
      %v2469 = vadd.f32 0.0, %v2468
      %v2470 = vpop.f32.mrb[0].mxu0
      %v2471 = vpop.f32.mrb[0].mxu0
      %v2472 = vpop.f32.mrb[0].mxu0
      %2473 = vmatprep.mubr.bf16.mxu0 0
      %2474 = vmatmul.mubr.bf16.gmra.mrb[0].mxu0 %v555
      %v2475 = vpop.f32.mrb[0].mxu0
      %v2476 = vadd.f32 0.0, %v2475
      %v2477 = vpop.f32.mrb[0].mxu0
      %v2478 = vpop.f32.mrb[0].mxu0
      %v2479 = vadd.f32 0.0, %v2478
      %v2480 = vpop.f32.mrb[0].mxu0
      %2481 = vmatprep.mubr.bf16.mxu0 0
      %2482 = vmatmul.mubr.bf16.gmra.mrb[0].mxu0 %v558
      %v2483 = vpop.f32.mrb[0].mxu0
      %v2484 = vadd.f32 0.0, %v2483
      %v2485 = vpop.f32.mrb[0].mxu0
      %v2486 = vpop.f32.mrb[0].mxu0
      %v2487 = vpop.f32.mrb[0].mxu0
      %2488 = vmatprep.mubr.bf16.mxu0 0
      %2489 = vmatmul.mubr.bf16.gmra.mrb[0].mxu0 %v561
      %v2490 = vpop.f32.mrb[0].mxu0
      %v2491 = vadd.f32 0.0, %v2490
      %v2492 = vpop.f32.mrb[0].mxu0
      %v2493 = vpop.f32.mrb[0].mxu0
      %v2494 = vadd.f32 0.0, %v2493
      %v2495 = vpop.f32.mrb[0].mxu0
      %2496 = vmatprep.mubr.bf16.mxu0 0
      %2497 = vmatmul.mubr.bf16.gmra.mrb[0].mxu0 %v564
      %v2498 = vpop.f32.mrb[0].mxu0
      %v2499 = vadd.f32 0.0, %v2498
      %v2500 = vpop.f32.mrb[0].mxu0
      %v2501 = vpop.f32.mrb[0].mxu0
      %v2502 = vpop.f32.mrb[0].mxu0
      %2503 = vmatprep.mubr.bf16.mxu0 0
      %2504 = vmatmul.mubr.bf16.gmra.mrb[0].mxu0 %v567
      %v2505 = vpop.f32.mrb[0].mxu0
      %v2506 = vadd.f32 0.0, %v2505
      %v2507 = vpop.f32.mrb[0].mxu0
      %v2508 = vpop.f32.mrb[0].mxu0
      %v2509 = vadd.f32 0.0, %v2508
      %v2510 = vpop.f32.mrb[0].mxu0
      %2511 = vmatprep.mubr.bf16.mxu0 0
      %2512 = vmatmul.mubr.bf16.gmra.mrb[0].mxu0 %v570
      %v2513 = vpop.f32.mrb[0].mxu0
      %v2514 = vadd.f32 0.0, %v2513
      %v2515 = vpop.f32.mrb[0].mxu0
      %v2516 = vpop.f32.mrb[0].mxu0
      %v2517 = vpop.f32.mrb[0].mxu0
      %2518 = vmatprep.mubr.bf16.mxu0 0
      %2519 = vmatmul.mubr.bf16.gmra.mrb[0].mxu0 %v573
      %v2520 = vpop.f32.mrb[0].mxu0
      %v2521 = vadd.f32 0.0, %v2520
      %v2522 = vpop.f32.mrb[0].mxu0
      %v2523 = vpop.f32.mrb[0].mxu0
      %v2524 = vadd.f32 0.0, %v2523
      %v2525 = vpop.f32.mrb[0].mxu0
      %2526 = vmatprep.mubr.bf16.mxu0 0
      %2527 = vmatmul.mubr.bf16.gmra.mrb[0].mxu0 %v576
      %v2528 = vpop.f32.mrb[0].mxu0
      %v2529 = vadd.f32 0.0, %v2528
      %v2530 = vpop.f32.mrb[0].mxu0
      %v2531 = vpop.f32.mrb[0].mxu0
      %v2532 = vpop.f32.mrb[0].mxu0
      %2533 = vmatprep.mubr.bf16.mxu0 0
      %2534 = vmatmul.mubr.bf16.gmra.mrb[0].mxu0 %v579
      %v2535 = vpop.f32.mrb[0].mxu0
      %v2536 = vadd.f32 0.0, %v2535
      %v2537 = vpop.f32.mrb[0].mxu0
      %v2538 = vpop.f32.mrb[0].mxu0
      %v2539 = vadd.f32 0.0, %v2538
      %v2540 = vpop.f32.mrb[0].mxu0
      %2541 = vmatprep.mubr.bf16.mxu0 0
      %2542 = vmatmul.mubr.bf16.gmra.mrb[0].mxu0 %v582
      %v2543 = vpop.f32.mrb[0].mxu0
      %v2544 = vadd.f32 0.0, %v2543
      %v2545 = vpop.f32.mrb[0].mxu0
      %v2546 = vpop.f32.mrb[0].mxu0
      %v2547 = vpop.f32.mrb[0].mxu0
      %2548 = vmatprep.mubr.bf16.mxu0 0
      %2549 = vmatmul.mubr.bf16.gmra.mrb[0].mxu0 %v585
      %v2550 = vpop.f32.mrb[0].mxu0
      %v2551 = vadd.f32 0.0, %v2550
      %v2552 = vpop.f32.mrb[0].mxu0
      %v2553 = vpop.f32.mrb[0].mxu0
      %v2554 = vadd.f32 0.0, %v2553
      %v2555 = vpop.f32.mrb[0].mxu0
      %2556 = vmatprep.mubr.bf16.mxu0 0
      %2557 = vmatmul.mubr.bf16.gmra.mrb[0].mxu0 %v588
      %v2558 = vpop.f32.mrb[0].mxu0
      %v2559 = vadd.f32 0.0, %v2558
      %v2560 = vpop.f32.mrb[0].mxu0
      %v2561 = vpop.f32.mrb[0].mxu0
      %v2562 = vpop.f32.mrb[0].mxu0
      %2563 = vmatprep.mubr.bf16.mxu0 0
      %2564 = vmatmul.mubr.bf16.gmra.mrb[0].mxu0 %v1614
      %v2565 = vpop.f32.mrb[0].mxu0
      %v2566 = vadd.f32 0.0, %v2565
      %v2567 = vpop.f32.mrb[0].mxu0
      %v2568 = vpop.f32.mrb[0].mxu0
      %v2569 = vadd.f32 0.0, %v2568
      %v2570 = vpop.f32.mrb[0].mxu0
      %2571 = vmatprep.mubr.bf16.mxu0 0
      %2572 = vmatmul.mubr.bf16.gmra.mrb[0].mxu0 %v1617
      %v2573 = vpop.f32.mrb[0].mxu0
      %v2574 = vadd.f32 0.0, %v2573
      %v2575 = vpop.f32.mrb[0].mxu0
      %v2576 = vpop.f32.mrb[0].mxu0
      %v2577 = vpop.f32.mrb[0].mxu0
      %2578 = vdwg.mxu0
      %v2579 = vrot.slane %v2341, 2
      %v2580 = vrot.slane %v2344, 2
      %v2581 = vrot.slane %v2349, 2
      %v2582 = vrot.slane %v2356, 2
      %v2583 = vrot.slane %v2359, 2
      %v2584 = vrot.slane %v2364, 2
      %v2585 = vrot.slane %v2371, 2
      %v2586 = vrot.slane %v2374, 2
      %v2587 = vrot.slane %v2379, 2
      %v2588 = vrot.slane %v2386, 2
      %v2589 = vrot.slane %v2389, 2
      %v2590 = vrot.slane %v2394, 2
      %v2591 = vrot.slane %v2401, 2
      %v2592 = vrot.slane %v2404, 2
      %v2593 = vrot.slane %v2409, 2
      %v2594 = vrot.slane %v2416, 2
      %v2595 = vrot.slane %v2419, 2
      %v2596 = vrot.slane %v2424, 2
      %v2597 = vrot.slane %v2431, 2
      %v2598 = vrot.slane %v2434, 2
      %v2599 = vrot.slane %v2439, 2
      %v2600 = vrot.slane %v2446, 2
      %v2601 = vrot.slane %v2449, 2
      %v2602 = vrot.slane %v2454, 2
      %v2603 = vrot.slane %v2461, 2
      %v2604 = vrot.slane %v2464, 2
      %v2605 = vrot.slane %v2469, 2
      %v2606 = vrot.slane %v2476, 2
      %v2607 = vrot.slane %v2479, 2
      %v2608 = vrot.slane %v2484, 2
      %v2609 = vrot.slane %v2491, 2
      %v2610 = vrot.slane %v2494, 2
      %v2611 = vrot.slane %v2499, 2
      %v2612 = vrot.slane %v2506, 2
      %v2613 = vrot.slane %v2509, 2
      %v2614 = vrot.slane %v2514, 2
      %v2615 = vrot.slane %v2521, 2
      %v2616 = vrot.slane %v2524, 2
      %v2617 = vrot.slane %v2529, 2
      %v2618 = vrot.slane %v2536, 2
      %v2619 = vrot.slane %v2539, 2
      %v2620 = vrot.slane %v2544, 2
      %v2621 = vrot.slane %v2551, 2
      %v2622 = vrot.slane %v2554, 2
      %v2623 = vrot.slane %v2559, 2
      %v2624 = vrot.slane %v2566, 2
      %v2625 = vrot.slane %v2569, 2
      %v2626 = vrot.slane %v2574, 2
      %v2627 = vsel %vm1536, %v2625, %v2626
      %v2628 = vsel %vm1536, %v2624, %v2625
      %v2629 = vsel %vm1536, %v2622, %v2623
      %v2630 = vsel %vm1536, %v2621, %v2622
      %v2631 = vsel %vm1536, %v2619, %v2620
      %v2632 = vsel %vm1536, %v2618, %v2619
      %v2633 = vsel %vm1536, %v2616, %v2617
      %v2634 = vsel %vm1536, %v2615, %v2616
      %v2635 = vsel %vm1536, %v2613, %v2614
      %v2636 = vsel %vm1536, %v2612, %v2613
      %v2637 = vsel %vm1536, %v2610, %v2611
      %v2638 = vsel %vm1536, %v2609, %v2610
      %v2639 = vsel %vm1536, %v2607, %v2608
      %v2640 = vsel %vm1536, %v2606, %v2607
      %v2641 = vsel %vm1536, %v2604, %v2605
      %v2642 = vsel %vm1536, %v2603, %v2604
      %v2643 = vsel %vm1536, %v2601, %v2602
      %v2644 = vsel %vm1536, %v2600, %v2601
      %v2645 = vsel %vm1536, %v2598, %v2599
      %v2646 = vsel %vm1536, %v2597, %v2598
      %v2647 = vsel %vm1536, %v2595, %v2596
      %v2648 = vsel %vm1536, %v2594, %v2595
      %v2649 = vsel %vm1536, %v2592, %v2593
      %v2650 = vsel %vm1536, %v2591, %v2592
      %v2651 = vsel %vm1536, %v2589, %v2590
      %v2652 = vsel %vm1536, %v2588, %v2589
      %v2653 = vsel %vm1536, %v2586, %v2587
      %v2654 = vsel %vm1536, %v2585, %v2586
      %v2655 = vsel %vm1536, %v2583, %v2584
      %v2656 = vsel %vm1536, %v2582, %v2583
      %v2657 = vsel %vm1536, %v2580, %v2581
      %v2658 = vsel %vm1536, %v2579, %v2580
      %v2659 = vadd.f32 %v2269, %v2658
      %v2660 = vadd.f32 %v2270, %v2657
      %v2661 = vadd.f32 %v2271, %v2656
      %v2662 = vadd.f32 %v2272, %v2655
      %v2663 = vadd.f32 %v2273, %v2654
      %v2664 = vadd.f32 %v2274, %v2653
      %v2665 = vadd.f32 %v2275, %v2652
      %v2666 = vadd.f32 %v2276, %v2651
      %v2667 = vadd.f32 %v2277, %v2650
      %v2668 = vadd.f32 %v2278, %v2649
      %v2669 = vadd.f32 %v2279, %v2648
      %v2670 = vadd.f32 %v2280, %v2647
      %v2671 = vadd.f32 %v2281, %v2646
      %v2672 = vadd.f32 %v2282, %v2645
      %v2673 = vadd.f32 %v2283, %v2644
      %v2674 = vadd.f32 %v2284, %v2643
      %v2675 = vadd.f32 %v2285, %v2642
      %v2676 = vadd.f32 %v2286, %v2641
      %v2677 = vadd.f32 %v2287, %v2640
      %v2678 = vadd.f32 %v2288, %v2639
      %v2679 = vadd.f32 %v2289, %v2638
      %v2680 = vadd.f32 %v2290, %v2637
      %v2681 = vadd.f32 %v2291, %v2636
      %v2682 = vadd.f32 %v2292, %v2635
      %v2683 = vadd.f32 %v2293, %v2634
      %v2684 = vadd.f32 %v2294, %v2633
      %v2685 = vadd.f32 %v2295, %v2632
      %v2686 = vadd.f32 %v2296, %v2631
      %v2687 = vadd.f32 %v2297, %v2630
      %v2688 = vadd.f32 %v2298, %v2629
      %v2689 = vadd.f32 %v2299, %v2628
      %v2690 = vadd.f32 %v2300, %v2627
      %s2691 = scalar_lea.vmem %s1, 12
      %v2692 = vld [vmem:[%s2691] sm:$0x3]
      %v2697 = vunpack.c.l.b16 %v326
      %v2698 = vunpack.c.l.b16 %v327
      %v2699 = vunpack.c.l.b16 %v328
      %v2700 = vunpack.c.l.b16 %v329
      %v2701 = vpack.c.b16 %v2698, %v2697
      %v2702 = vpack.c.b16 %v2700, %v2699
      %v2704 = vsel %vm493, %v2701, 0
      %v2707 = vsel %vm493, %v2702, 0
      %v2710 = vsel %vm590, %v2692, 0
      %2712 = vmatprep.subr.bf16.mxu0 0
      %2713 = vmatpush1.bf16.msra.mxu0 %v2710
      %2714 = vmatprep.subr.bf16.mxu0 0
      %2715 = vmatpush1.bf16.msra.mxu0 0
      %2716 = vmatprep.subr.bf16.mxu0 0
      %2717 = vmatpush1.bf16.msra.mxu0 0
      %2718 = vmatprep.subr.bf16.mxu0 0
      %2719 = vmatpush1.bf16.msra.mxu0 0
      %2720 = vmatprep.subr.bf16.mxu0 0
      %2721 = vmatpush1.bf16.msra.mxu0 0
      %2722 = vmatprep.subr.bf16.mxu0 0
      %2723 = vmatpush1.bf16.msra.mxu0 0
      %2724 = vmatprep.subr.bf16.mxu0 0
      %2725 = vmatpush1.bf16.msra.mxu0 0
      %2726 = vmatprep.subr.bf16.mxu0 0
      %2727 = vmatpush1.bf16.msra.mxu0 0
      %2728 = vmatprep.subr.bf16.mxu0 0
      %2729 = vmatpush1.bf16.msra.mxu0 0
      %2730 = vmatprep.subr.bf16.mxu0 0
      %2731 = vmatpush1.bf16.msra.mxu0 0
      %2732 = vmatprep.subr.bf16.mxu0 0
      %2733 = vmatpush1.bf16.msra.mxu0 0
      %2734 = vmatprep.subr.bf16.mxu0 0
      %2735 = vmatpush1.bf16.msra.mxu0 0
      %2736 = vmatprep.subr.bf16.mxu0 0
      %2737 = vmatpush1.bf16.msra.mxu0 0
      %2738 = vmatprep.subr.bf16.mxu0 0
      %2739 = vmatpush1.bf16.msra.mxu0 0
      %2740 = vmatprep.subr.bf16.mxu0 0
      %2741 = vmatpush1.bf16.msra.mxu0 0
      %2742 = vmatprep.subr.bf16.mxu0 0
      %2743 = vmatpush1.bf16.msra.mxu0 0
      %2744 = vmatprep.mubr.bf16.mxu0 0
      %2745 = vmatmul.mubr.bf16.gmra.mrb[0].mxu0 %v507
      %v2746 = vpop.f32.mrb[0].mxu0
      %v2747 = vadd.f32 0.0, %v2746
      %v2748 = vpop.f32.mrb[0].mxu0
      %v2749 = vpop.f32.mrb[0].mxu0
      %v2750 = vadd.f32 0.0, %v2749
      %v2751 = vpop.f32.mrb[0].mxu0
      %2752 = vmatprep.mubr.bf16.mxu0 0
      %2753 = vmatmul.mubr.bf16.gmra.mrb[0].mxu0 %v510
      %v2754 = vpop.f32.mrb[0].mxu0
      %v2755 = vpop.f32.mrb[0].mxu0
      %v2756 = vpop.f32.mrb[0].mxu0
      %v2757 = vpop.f32.mrb[0].mxu0
      %2758 = vmatprep.mubr.bf16.mxu0 0
      %2759 = vmatmul.mubr.bf16.gmra.mrb[0].mxu0 %v513
      %v2760 = vpop.f32.mrb[0].mxu0
      %v2761 = vadd.f32 0.0, %v2760
      %v2762 = vpop.f32.mrb[0].mxu0
      %v2763 = vpop.f32.mrb[0].mxu0
      %v2764 = vadd.f32 0.0, %v2763
      %v2765 = vpop.f32.mrb[0].mxu0
      %2766 = vmatprep.mubr.bf16.mxu0 0
      %2767 = vmatmul.mubr.bf16.gmra.mrb[0].mxu0 %v516
      %v2768 = vpop.f32.mrb[0].mxu0
      %v2769 = vpop.f32.mrb[0].mxu0
      %v2770 = vpop.f32.mrb[0].mxu0
      %v2771 = vpop.f32.mrb[0].mxu0
      %2772 = vmatprep.mubr.bf16.mxu0 0
      %2773 = vmatmul.mubr.bf16.gmra.mrb[0].mxu0 %v519
      %v2774 = vpop.f32.mrb[0].mxu0
      %v2775 = vadd.f32 0.0, %v2774
      %v2776 = vpop.f32.mrb[0].mxu0
      %v2777 = vpop.f32.mrb[0].mxu0
      %v2778 = vadd.f32 0.0, %v2777
      %v2779 = vpop.f32.mrb[0].mxu0
      %2780 = vmatprep.mubr.bf16.mxu0 0
      %2781 = vmatmul.mubr.bf16.gmra.mrb[0].mxu0 %v522
      %v2782 = vpop.f32.mrb[0].mxu0
      %v2783 = vpop.f32.mrb[0].mxu0
      %v2784 = vpop.f32.mrb[0].mxu0
      %v2785 = vpop.f32.mrb[0].mxu0
      %2786 = vmatprep.mubr.bf16.mxu0 0
      %2787 = vmatmul.mubr.bf16.gmra.mrb[0].mxu0 %v525
      %v2788 = vpop.f32.mrb[0].mxu0
      %v2789 = vadd.f32 0.0, %v2788
      %v2790 = vpop.f32.mrb[0].mxu0
      %v2791 = vpop.f32.mrb[0].mxu0
      %v2792 = vadd.f32 0.0, %v2791
      %v2793 = vpop.f32.mrb[0].mxu0
      %2794 = vmatprep.mubr.bf16.mxu0 0
      %2795 = vmatmul.mubr.bf16.gmra.mrb[0].mxu0 %v528
      %v2796 = vpop.f32.mrb[0].mxu0
      %v2797 = vpop.f32.mrb[0].mxu0
      %v2798 = vpop.f32.mrb[0].mxu0
      %v2799 = vpop.f32.mrb[0].mxu0
      %2800 = vmatprep.mubr.bf16.mxu0 0
      %2801 = vmatmul.mubr.bf16.gmra.mrb[0].mxu0 %v531
      %v2802 = vpop.f32.mrb[0].mxu0
      %v2803 = vadd.f32 0.0, %v2802
      %v2804 = vpop.f32.mrb[0].mxu0
      %v2805 = vpop.f32.mrb[0].mxu0
      %v2806 = vadd.f32 0.0, %v2805
      %v2807 = vpop.f32.mrb[0].mxu0
      %2808 = vmatprep.mubr.bf16.mxu0 0
      %2809 = vmatmul.mubr.bf16.gmra.mrb[0].mxu0 %v534
      %v2810 = vpop.f32.mrb[0].mxu0
      %v2811 = vpop.f32.mrb[0].mxu0
      %v2812 = vpop.f32.mrb[0].mxu0
      %v2813 = vpop.f32.mrb[0].mxu0
      %2814 = vmatprep.mubr.bf16.mxu0 0
      %2815 = vmatmul.mubr.bf16.gmra.mrb[0].mxu0 %v537
      %v2816 = vpop.f32.mrb[0].mxu0
      %v2817 = vadd.f32 0.0, %v2816
      %v2818 = vpop.f32.mrb[0].mxu0
      %v2819 = vpop.f32.mrb[0].mxu0
      %v2820 = vadd.f32 0.0, %v2819
      %v2821 = vpop.f32.mrb[0].mxu0
      %2822 = vmatprep.mubr.bf16.mxu0 0
      %2823 = vmatmul.mubr.bf16.gmra.mrb[0].mxu0 %v540
      %v2824 = vpop.f32.mrb[0].mxu0
      %v2825 = vpop.f32.mrb[0].mxu0
      %v2826 = vpop.f32.mrb[0].mxu0
      %v2827 = vpop.f32.mrb[0].mxu0
      %2828 = vmatprep.mubr.bf16.mxu0 0
      %2829 = vmatmul.mubr.bf16.gmra.mrb[0].mxu0 %v543
      %v2830 = vpop.f32.mrb[0].mxu0
      %v2831 = vadd.f32 0.0, %v2830
      %v2832 = vpop.f32.mrb[0].mxu0
      %v2833 = vpop.f32.mrb[0].mxu0
      %v2834 = vadd.f32 0.0, %v2833
      %v2835 = vpop.f32.mrb[0].mxu0
      %2836 = vmatprep.mubr.bf16.mxu0 0
      %2837 = vmatmul.mubr.bf16.gmra.mrb[0].mxu0 %v546
      %v2838 = vpop.f32.mrb[0].mxu0
      %v2839 = vpop.f32.mrb[0].mxu0
      %v2840 = vpop.f32.mrb[0].mxu0
      %v2841 = vpop.f32.mrb[0].mxu0
      %2842 = vmatprep.mubr.bf16.mxu0 0
      %2843 = vmatmul.mubr.bf16.gmra.mrb[0].mxu0 %v549
      %v2844 = vpop.f32.mrb[0].mxu0
      %v2845 = vadd.f32 0.0, %v2844
      %v2846 = vpop.f32.mrb[0].mxu0
      %v2847 = vpop.f32.mrb[0].mxu0
      %v2848 = vadd.f32 0.0, %v2847
      %v2849 = vpop.f32.mrb[0].mxu0
      %2850 = vmatprep.mubr.bf16.mxu0 0
      %2851 = vmatmul.mubr.bf16.gmra.mrb[0].mxu0 %v552
      %v2852 = vpop.f32.mrb[0].mxu0
      %v2853 = vpop.f32.mrb[0].mxu0
      %v2854 = vpop.f32.mrb[0].mxu0
      %v2855 = vpop.f32.mrb[0].mxu0
      %2856 = vmatprep.mubr.bf16.mxu0 0
      %2857 = vmatmul.mubr.bf16.gmra.mrb[0].mxu0 %v555
      %v2858 = vpop.f32.mrb[0].mxu0
      %v2859 = vadd.f32 0.0, %v2858
      %v2860 = vpop.f32.mrb[0].mxu0
      %v2861 = vpop.f32.mrb[0].mxu0
      %v2862 = vadd.f32 0.0, %v2861
      %v2863 = vpop.f32.mrb[0].mxu0
      %2864 = vmatprep.mubr.bf16.mxu0 0
      %2865 = vmatmul.mubr.bf16.gmra.mrb[0].mxu0 %v558
      %v2866 = vpop.f32.mrb[0].mxu0
      %v2867 = vpop.f32.mrb[0].mxu0
      %v2868 = vpop.f32.mrb[0].mxu0
      %v2869 = vpop.f32.mrb[0].mxu0
      %2870 = vmatprep.mubr.bf16.mxu0 0
      %2871 = vmatmul.mubr.bf16.gmra.mrb[0].mxu0 %v561
      %v2872 = vpop.f32.mrb[0].mxu0
      %v2873 = vadd.f32 0.0, %v2872
      %v2874 = vpop.f32.mrb[0].mxu0
      %v2875 = vpop.f32.mrb[0].mxu0
      %v2876 = vadd.f32 0.0, %v2875
      %v2877 = vpop.f32.mrb[0].mxu0
      %2878 = vmatprep.mubr.bf16.mxu0 0
      %2879 = vmatmul.mubr.bf16.gmra.mrb[0].mxu0 %v564
      %v2880 = vpop.f32.mrb[0].mxu0
      %v2881 = vpop.f32.mrb[0].mxu0
      %v2882 = vpop.f32.mrb[0].mxu0
      %v2883 = vpop.f32.mrb[0].mxu0
      %2884 = vmatprep.mubr.bf16.mxu0 0
      %2885 = vmatmul.mubr.bf16.gmra.mrb[0].mxu0 %v567
      %v2886 = vpop.f32.mrb[0].mxu0
      %v2887 = vadd.f32 0.0, %v2886
      %v2888 = vpop.f32.mrb[0].mxu0
      %v2889 = vpop.f32.mrb[0].mxu0
      %v2890 = vadd.f32 0.0, %v2889
      %v2891 = vpop.f32.mrb[0].mxu0
      %2892 = vmatprep.mubr.bf16.mxu0 0
      %2893 = vmatmul.mubr.bf16.gmra.mrb[0].mxu0 %v570
      %v2894 = vpop.f32.mrb[0].mxu0
      %v2895 = vpop.f32.mrb[0].mxu0
      %v2896 = vpop.f32.mrb[0].mxu0
      %v2897 = vpop.f32.mrb[0].mxu0
      %2898 = vmatprep.mubr.bf16.mxu0 0
      %2899 = vmatmul.mubr.bf16.gmra.mrb[0].mxu0 %v573
      %v2900 = vpop.f32.mrb[0].mxu0
      %v2901 = vadd.f32 0.0, %v2900
      %v2902 = vpop.f32.mrb[0].mxu0
      %v2903 = vpop.f32.mrb[0].mxu0
      %v2904 = vadd.f32 0.0, %v2903
      %v2905 = vpop.f32.mrb[0].mxu0
      %2906 = vmatprep.mubr.bf16.mxu0 0
      %2907 = vmatmul.mubr.bf16.gmra.mrb[0].mxu0 %v576
      %v2908 = vpop.f32.mrb[0].mxu0
      %v2909 = vpop.f32.mrb[0].mxu0
      %v2910 = vpop.f32.mrb[0].mxu0
      %v2911 = vpop.f32.mrb[0].mxu0
      %2912 = vmatprep.mubr.bf16.mxu0 0
      %2913 = vmatmul.mubr.bf16.gmra.mrb[0].mxu0 %v579
      %v2914 = vpop.f32.mrb[0].mxu0
      %v2915 = vadd.f32 0.0, %v2914
      %v2916 = vpop.f32.mrb[0].mxu0
      %v2917 = vpop.f32.mrb[0].mxu0
      %v2918 = vadd.f32 0.0, %v2917
      %v2919 = vpop.f32.mrb[0].mxu0
      %2920 = vmatprep.mubr.bf16.mxu0 0
      %2921 = vmatmul.mubr.bf16.gmra.mrb[0].mxu0 %v582
      %v2922 = vpop.f32.mrb[0].mxu0
      %v2923 = vpop.f32.mrb[0].mxu0
      %v2924 = vpop.f32.mrb[0].mxu0
      %v2925 = vpop.f32.mrb[0].mxu0
      %2926 = vmatprep.mubr.bf16.mxu0 0
      %2927 = vmatmul.mubr.bf16.gmra.mrb[0].mxu0 %v585
      %v2928 = vpop.f32.mrb[0].mxu0
      %v2929 = vadd.f32 0.0, %v2928
      %v2930 = vpop.f32.mrb[0].mxu0
      %v2931 = vpop.f32.mrb[0].mxu0
      %v2932 = vadd.f32 0.0, %v2931
      %v2933 = vpop.f32.mrb[0].mxu0
      %2934 = vmatprep.mubr.bf16.mxu0 0
      %2935 = vmatmul.mubr.bf16.gmra.mrb[0].mxu0 %v588
      %v2936 = vpop.f32.mrb[0].mxu0
      %v2937 = vpop.f32.mrb[0].mxu0
      %v2938 = vpop.f32.mrb[0].mxu0
      %v2939 = vpop.f32.mrb[0].mxu0
      %2940 = vmatprep.mubr.bf16.mxu0 0
      %2941 = vmatmul.mubr.bf16.gmra.mrb[0].mxu0 %v1614
      %v2942 = vpop.f32.mrb[0].mxu0
      %v2943 = vadd.f32 0.0, %v2942
      %v2944 = vpop.f32.mrb[0].mxu0
      %v2945 = vpop.f32.mrb[0].mxu0
      %v2946 = vadd.f32 0.0, %v2945
      %v2947 = vpop.f32.mrb[0].mxu0
      %2948 = vmatprep.mubr.bf16.mxu0 0
      %2949 = vmatmul.mubr.bf16.gmra.mrb[0].mxu0 %v1617
      %v2950 = vpop.f32.mrb[0].mxu0
      %v2951 = vpop.f32.mrb[0].mxu0
      %v2952 = vpop.f32.mrb[0].mxu0
      %v2953 = vpop.f32.mrb[0].mxu0
      %2954 = vmatprep.mubr.bf16.mxu0 0
      %2955 = vmatmul.mubr.bf16.gmra.mrb[0].mxu0 %v2704
      %v2956 = vpop.f32.mrb[0].mxu0
      %v2957 = vadd.f32 0.0, %v2956
      %v2958 = vpop.f32.mrb[0].mxu0
      %v2959 = vpop.f32.mrb[0].mxu0
      %v2960 = vadd.f32 0.0, %v2959
      %v2961 = vpop.f32.mrb[0].mxu0
      %2962 = vmatprep.mubr.bf16.mxu0 0
      %2963 = vmatmul.mubr.bf16.gmra.mrb[0].mxu0 %v2707
      %v2964 = vpop.f32.mrb[0].mxu0
      %v2965 = vpop.f32.mrb[0].mxu0
      %v2966 = vpop.f32.mrb[0].mxu0
      %v2967 = vpop.f32.mrb[0].mxu0
      %2968 = vdwg.mxu0
      %v2969 = vadd.f32 %v2659, %v2747
      %v2970 = vadd.f32 %v2660, %v2750
      %v2971 = vadd.f32 %v2661, %v2761
      %v2972 = vadd.f32 %v2662, %v2764
      %v2973 = vadd.f32 %v2663, %v2775
      %v2974 = vadd.f32 %v2664, %v2778
      %v2975 = vadd.f32 %v2665, %v2789
      %v2976 = vadd.f32 %v2666, %v2792
      %v2977 = vadd.f32 %v2667, %v2803
      %v2978 = vadd.f32 %v2668, %v2806
      %v2979 = vadd.f32 %v2669, %v2817
      %v2980 = vadd.f32 %v2670, %v2820
      %v2981 = vadd.f32 %v2671, %v2831
      %v2982 = vadd.f32 %v2672, %v2834
      %v2983 = vadd.f32 %v2673, %v2845
      %v2984 = vadd.f32 %v2674, %v2848
      %v2985 = vadd.f32 %v2675, %v2859
      %v2986 = vadd.f32 %v2676, %v2862
      %v2987 = vadd.f32 %v2677, %v2873
      %v2988 = vadd.f32 %v2678, %v2876
      %v2989 = vadd.f32 %v2679, %v2887
      %v2990 = vadd.f32 %v2680, %v2890
      %v2991 = vadd.f32 %v2681, %v2901
      %v2992 = vadd.f32 %v2682, %v2904
      %v2993 = vadd.f32 %v2683, %v2915
      %v2994 = vadd.f32 %v2684, %v2918
      %v2995 = vadd.f32 %v2685, %v2929
      %v2996 = vadd.f32 %v2686, %v2932
      %v2997 = vadd.f32 %v2687, %v2943
      %v2998 = vadd.f32 %v2688, %v2946
      %v2999 = vadd.f32 %v2689, %v2957
      %v3000 = vadd.f32 %v2690, %v2960
      %s3001 = scalar_lea.vmem %s1, 14
      %v3002 = vld [vmem:[%s3001] sm:$0x3]
      %v3004 = vsel %vm590, %v3002, 0
      %3006 = vmatprep.subr.bf16.mxu0 0
      %3007 = vmatpush1.bf16.msra.mxu0 %v3004
      %3008 = vmatprep.subr.bf16.mxu0 0
      %3009 = vmatpush1.bf16.msra.mxu0 0
      %3010 = vmatprep.subr.bf16.mxu0 0
      %3011 = vmatpush1.bf16.msra.mxu0 0
      %3012 = vmatprep.subr.bf16.mxu0 0
      %3013 = vmatpush1.bf16.msra.mxu0 0
      %3014 = vmatprep.subr.bf16.mxu0 0
      %3015 = vmatpush1.bf16.msra.mxu0 0
      %3016 = vmatprep.subr.bf16.mxu0 0
      %3017 = vmatpush1.bf16.msra.mxu0 0
      %3018 = vmatprep.subr.bf16.mxu0 0
      %3019 = vmatpush1.bf16.msra.mxu0 0
      %3020 = vmatprep.subr.bf16.mxu0 0
      %3021 = vmatpush1.bf16.msra.mxu0 0
      %3022 = vmatprep.subr.bf16.mxu0 0
      %3023 = vmatpush1.bf16.msra.mxu0 0
      %3024 = vmatprep.subr.bf16.mxu0 0
      %3025 = vmatpush1.bf16.msra.mxu0 0
      %3026 = vmatprep.subr.bf16.mxu0 0
      %3027 = vmatpush1.bf16.msra.mxu0 0
      %3028 = vmatprep.subr.bf16.mxu0 0
      %3029 = vmatpush1.bf16.msra.mxu0 0
      %3030 = vmatprep.subr.bf16.mxu0 0
      %3031 = vmatpush1.bf16.msra.mxu0 0
      %3032 = vmatprep.subr.bf16.mxu0 0
      %3033 = vmatpush1.bf16.msra.mxu0 0
      %3034 = vmatprep.subr.bf16.mxu0 0
      %3035 = vmatpush1.bf16.msra.mxu0 0
      %3036 = vmatprep.subr.bf16.mxu0 0
      %3037 = vmatpush1.bf16.msra.mxu0 0
      %3038 = vmatprep.mubr.bf16.mxu0 0
      %3039 = vmatmul.mubr.bf16.gmra.mrb[0].mxu0 %v507
      %v3040 = vpop.f32.mrb[0].mxu0
      %v3041 = vadd.f32 0.0, %v3040
      %v3042 = vpop.f32.mrb[0].mxu0
      %v3043 = vpop.f32.mrb[0].mxu0
      %v3044 = vadd.f32 0.0, %v3043
      %v3045 = vpop.f32.mrb[0].mxu0
      %3046 = vmatprep.mubr.bf16.mxu0 0
      %3047 = vmatmul.mubr.bf16.gmra.mrb[0].mxu0 %v510
      %v3048 = vpop.f32.mrb[0].mxu0
      %v3049 = vadd.f32 0.0, %v3048
      %v3050 = vpop.f32.mrb[0].mxu0
      %v3051 = vpop.f32.mrb[0].mxu0
      %v3052 = vpop.f32.mrb[0].mxu0
      %3053 = vmatprep.mubr.bf16.mxu0 0
      %3054 = vmatmul.mubr.bf16.gmra.mrb[0].mxu0 %v513
      %v3055 = vpop.f32.mrb[0].mxu0
      %v3056 = vadd.f32 0.0, %v3055
      %v3057 = vpop.f32.mrb[0].mxu0
      %v3058 = vpop.f32.mrb[0].mxu0
      %v3059 = vadd.f32 0.0, %v3058
      %v3060 = vpop.f32.mrb[0].mxu0
      %3061 = vmatprep.mubr.bf16.mxu0 0
      %3062 = vmatmul.mubr.bf16.gmra.mrb[0].mxu0 %v516
      %v3063 = vpop.f32.mrb[0].mxu0
      %v3064 = vadd.f32 0.0, %v3063
      %v3065 = vpop.f32.mrb[0].mxu0
      %v3066 = vpop.f32.mrb[0].mxu0
      %v3067 = vpop.f32.mrb[0].mxu0
      %3068 = vmatprep.mubr.bf16.mxu0 0
      %3069 = vmatmul.mubr.bf16.gmra.mrb[0].mxu0 %v519
      %v3070 = vpop.f32.mrb[0].mxu0
      %v3071 = vadd.f32 0.0, %v3070
      %v3072 = vpop.f32.mrb[0].mxu0
      %v3073 = vpop.f32.mrb[0].mxu0
      %v3074 = vadd.f32 0.0, %v3073
      %v3075 = vpop.f32.mrb[0].mxu0
      %3076 = vmatprep.mubr.bf16.mxu0 0
      %3077 = vmatmul.mubr.bf16.gmra.mrb[0].mxu0 %v522
      %v3078 = vpop.f32.mrb[0].mxu0
      %v3079 = vadd.f32 0.0, %v3078
      %v3080 = vpop.f32.mrb[0].mxu0
      %v3081 = vpop.f32.mrb[0].mxu0
      %v3082 = vpop.f32.mrb[0].mxu0
      %3083 = vmatprep.mubr.bf16.mxu0 0
      %3084 = vmatmul.mubr.bf16.gmra.mrb[0].mxu0 %v525
      %v3085 = vpop.f32.mrb[0].mxu0
      %v3086 = vadd.f32 0.0, %v3085
      %v3087 = vpop.f32.mrb[0].mxu0
      %v3088 = vpop.f32.mrb[0].mxu0
      %v3089 = vadd.f32 0.0, %v3088
      %v3090 = vpop.f32.mrb[0].mxu0
      %3091 = vmatprep.mubr.bf16.mxu0 0
      %3092 = vmatmul.mubr.bf16.gmra.mrb[0].mxu0 %v528
      %v3093 = vpop.f32.mrb[0].mxu0
      %v3094 = vadd.f32 0.0, %v3093
      %v3095 = vpop.f32.mrb[0].mxu0
      %v3096 = vpop.f32.mrb[0].mxu0
      %v3097 = vpop.f32.mrb[0].mxu0
      %3098 = vmatprep.mubr.bf16.mxu0 0
      %3099 = vmatmul.mubr.bf16.gmra.mrb[0].mxu0 %v531
      %v3100 = vpop.f32.mrb[0].mxu0
      %v3101 = vadd.f32 0.0, %v3100
      %v3102 = vpop.f32.mrb[0].mxu0
      %v3103 = vpop.f32.mrb[0].mxu0
      %v3104 = vadd.f32 0.0, %v3103
      %v3105 = vpop.f32.mrb[0].mxu0
      %3106 = vmatprep.mubr.bf16.mxu0 0
      %3107 = vmatmul.mubr.bf16.gmra.mrb[0].mxu0 %v534
      %v3108 = vpop.f32.mrb[0].mxu0
      %v3109 = vadd.f32 0.0, %v3108
      %v3110 = vpop.f32.mrb[0].mxu0
      %v3111 = vpop.f32.mrb[0].mxu0
      %v3112 = vpop.f32.mrb[0].mxu0
      %3113 = vmatprep.mubr.bf16.mxu0 0
      %3114 = vmatmul.mubr.bf16.gmra.mrb[0].mxu0 %v537
      %v3115 = vpop.f32.mrb[0].mxu0
      %v3116 = vadd.f32 0.0, %v3115
      %v3117 = vpop.f32.mrb[0].mxu0
      %v3118 = vpop.f32.mrb[0].mxu0
      %v3119 = vadd.f32 0.0, %v3118
      %v3120 = vpop.f32.mrb[0].mxu0
      %3121 = vmatprep.mubr.bf16.mxu0 0
      %3122 = vmatmul.mubr.bf16.gmra.mrb[0].mxu0 %v540
      %v3123 = vpop.f32.mrb[0].mxu0
      %v3124 = vadd.f32 0.0, %v3123
      %v3125 = vpop.f32.mrb[0].mxu0
      %v3126 = vpop.f32.mrb[0].mxu0
      %v3127 = vpop.f32.mrb[0].mxu0
      %3128 = vmatprep.mubr.bf16.mxu0 0
      %3129 = vmatmul.mubr.bf16.gmra.mrb[0].mxu0 %v543
      %v3130 = vpop.f32.mrb[0].mxu0
      %v3131 = vadd.f32 0.0, %v3130
      %v3132 = vpop.f32.mrb[0].mxu0
      %v3133 = vpop.f32.mrb[0].mxu0
      %v3134 = vadd.f32 0.0, %v3133
      %v3135 = vpop.f32.mrb[0].mxu0
      %3136 = vmatprep.mubr.bf16.mxu0 0
      %3137 = vmatmul.mubr.bf16.gmra.mrb[0].mxu0 %v546
      %v3138 = vpop.f32.mrb[0].mxu0
      %v3139 = vadd.f32 0.0, %v3138
      %v3140 = vpop.f32.mrb[0].mxu0
      %v3141 = vpop.f32.mrb[0].mxu0
      %v3142 = vpop.f32.mrb[0].mxu0
      %3143 = vmatprep.mubr.bf16.mxu0 0
      %3144 = vmatmul.mubr.bf16.gmra.mrb[0].mxu0 %v549
      %v3145 = vpop.f32.mrb[0].mxu0
      %v3146 = vadd.f32 0.0, %v3145
      %v3147 = vpop.f32.mrb[0].mxu0
      %v3148 = vpop.f32.mrb[0].mxu0
      %v3149 = vadd.f32 0.0, %v3148
      %v3150 = vpop.f32.mrb[0].mxu0
      %3151 = vmatprep.mubr.bf16.mxu0 0
      %3152 = vmatmul.mubr.bf16.gmra.mrb[0].mxu0 %v552
      %v3153 = vpop.f32.mrb[0].mxu0
      %v3154 = vadd.f32 0.0, %v3153
      %v3155 = vpop.f32.mrb[0].mxu0
      %v3156 = vpop.f32.mrb[0].mxu0
      %v3157 = vpop.f32.mrb[0].mxu0
      %3158 = vmatprep.mubr.bf16.mxu0 0
      %3159 = vmatmul.mubr.bf16.gmra.mrb[0].mxu0 %v555
      %v3160 = vpop.f32.mrb[0].mxu0
      %v3161 = vadd.f32 0.0, %v3160
      %v3162 = vpop.f32.mrb[0].mxu0
      %v3163 = vpop.f32.mrb[0].mxu0
      %v3164 = vadd.f32 0.0, %v3163
      %v3165 = vpop.f32.mrb[0].mxu0
      %3166 = vmatprep.mubr.bf16.mxu0 0
      %3167 = vmatmul.mubr.bf16.gmra.mrb[0].mxu0 %v558
      %v3168 = vpop.f32.mrb[0].mxu0
      %v3169 = vadd.f32 0.0, %v3168
      %v3170 = vpop.f32.mrb[0].mxu0
      %v3171 = vpop.f32.mrb[0].mxu0
      %v3172 = vpop.f32.mrb[0].mxu0
      %3173 = vmatprep.mubr.bf16.mxu0 0
      %3174 = vmatmul.mubr.bf16.gmra.mrb[0].mxu0 %v561
      %v3175 = vpop.f32.mrb[0].mxu0
      %v3176 = vadd.f32 0.0, %v3175
      %v3177 = vpop.f32.mrb[0].mxu0
      %v3178 = vpop.f32.mrb[0].mxu0
      %v3179 = vadd.f32 0.0, %v3178
      %v3180 = vpop.f32.mrb[0].mxu0
      %3181 = vmatprep.mubr.bf16.mxu0 0
      %3182 = vmatmul.mubr.bf16.gmra.mrb[0].mxu0 %v564
      %v3183 = vpop.f32.mrb[0].mxu0
      %v3184 = vadd.f32 0.0, %v3183
      %v3185 = vpop.f32.mrb[0].mxu0
      %v3186 = vpop.f32.mrb[0].mxu0
      %v3187 = vpop.f32.mrb[0].mxu0
      %3188 = vmatprep.mubr.bf16.mxu0 0
      %3189 = vmatmul.mubr.bf16.gmra.mrb[0].mxu0 %v567
      %v3190 = vpop.f32.mrb[0].mxu0
      %v3191 = vadd.f32 0.0, %v3190
      %v3192 = vpop.f32.mrb[0].mxu0
      %v3193 = vpop.f32.mrb[0].mxu0
      %v3194 = vadd.f32 0.0, %v3193
      %v3195 = vpop.f32.mrb[0].mxu0
      %3196 = vmatprep.mubr.bf16.mxu0 0
      %3197 = vmatmul.mubr.bf16.gmra.mrb[0].mxu0 %v570
      %v3198 = vpop.f32.mrb[0].mxu0
      %v3199 = vadd.f32 0.0, %v3198
      %v3200 = vpop.f32.mrb[0].mxu0
      %v3201 = vpop.f32.mrb[0].mxu0
      %v3202 = vpop.f32.mrb[0].mxu0
      %3203 = vmatprep.mubr.bf16.mxu0 0
      %3204 = vmatmul.mubr.bf16.gmra.mrb[0].mxu0 %v573
      %v3205 = vpop.f32.mrb[0].mxu0
      %v3206 = vadd.f32 0.0, %v3205
      %v3207 = vpop.f32.mrb[0].mxu0
      %v3208 = vpop.f32.mrb[0].mxu0
      %v3209 = vadd.f32 0.0, %v3208
      %v3210 = vpop.f32.mrb[0].mxu0
      %3211 = vmatprep.mubr.bf16.mxu0 0
      %3212 = vmatmul.mubr.bf16.gmra.mrb[0].mxu0 %v576
      %v3213 = vpop.f32.mrb[0].mxu0
      %v3214 = vadd.f32 0.0, %v3213
      %v3215 = vpop.f32.mrb[0].mxu0
      %v3216 = vpop.f32.mrb[0].mxu0
      %v3217 = vpop.f32.mrb[0].mxu0
      %3218 = vmatprep.mubr.bf16.mxu0 0
      %3219 = vmatmul.mubr.bf16.gmra.mrb[0].mxu0 %v579
      %v3220 = vpop.f32.mrb[0].mxu0
      %v3221 = vadd.f32 0.0, %v3220
      %v3222 = vpop.f32.mrb[0].mxu0
      %v3223 = vpop.f32.mrb[0].mxu0
      %v3224 = vadd.f32 0.0, %v3223
      %v3225 = vpop.f32.mrb[0].mxu0
      %3226 = vmatprep.mubr.bf16.mxu0 0
      %3227 = vmatmul.mubr.bf16.gmra.mrb[0].mxu0 %v582
      %v3228 = vpop.f32.mrb[0].mxu0
      %v3229 = vadd.f32 0.0, %v3228
      %v3230 = vpop.f32.mrb[0].mxu0
      %v3231 = vpop.f32.mrb[0].mxu0
      %v3232 = vpop.f32.mrb[0].mxu0
      %3233 = vmatprep.mubr.bf16.mxu0 0
      %3234 = vmatmul.mubr.bf16.gmra.mrb[0].mxu0 %v585
      %v3235 = vpop.f32.mrb[0].mxu0
      %v3236 = vadd.f32 0.0, %v3235
      %v3237 = vpop.f32.mrb[0].mxu0
      %v3238 = vpop.f32.mrb[0].mxu0
      %v3239 = vadd.f32 0.0, %v3238
      %v3240 = vpop.f32.mrb[0].mxu0
      %3241 = vmatprep.mubr.bf16.mxu0 0
      %3242 = vmatmul.mubr.bf16.gmra.mrb[0].mxu0 %v588
      %v3243 = vpop.f32.mrb[0].mxu0
      %v3244 = vadd.f32 0.0, %v3243
      %v3245 = vpop.f32.mrb[0].mxu0
      %v3246 = vpop.f32.mrb[0].mxu0
      %v3247 = vpop.f32.mrb[0].mxu0
      %3248 = vmatprep.mubr.bf16.mxu0 0
      %3249 = vmatmul.mubr.bf16.gmra.mrb[0].mxu0 %v1614
      %v3250 = vpop.f32.mrb[0].mxu0
      %v3251 = vadd.f32 0.0, %v3250
      %v3252 = vpop.f32.mrb[0].mxu0
      %v3253 = vpop.f32.mrb[0].mxu0
      %v3254 = vadd.f32 0.0, %v3253
      %v3255 = vpop.f32.mrb[0].mxu0
      %3256 = vmatprep.mubr.bf16.mxu0 0
      %3257 = vmatmul.mubr.bf16.gmra.mrb[0].mxu0 %v1617
      %v3258 = vpop.f32.mrb[0].mxu0
      %v3259 = vadd.f32 0.0, %v3258
      %v3260 = vpop.f32.mrb[0].mxu0
      %v3261 = vpop.f32.mrb[0].mxu0
      %v3262 = vpop.f32.mrb[0].mxu0
      %3263 = vmatprep.mubr.bf16.mxu0 0
      %3264 = vmatmul.mubr.bf16.gmra.mrb[0].mxu0 %v2704
      %v3265 = vpop.f32.mrb[0].mxu0
      %v3266 = vadd.f32 0.0, %v3265
      %v3267 = vpop.f32.mrb[0].mxu0
      %v3268 = vpop.f32.mrb[0].mxu0
      %v3269 = vadd.f32 0.0, %v3268
      %v3270 = vpop.f32.mrb[0].mxu0
      %3271 = vmatprep.mubr.bf16.mxu0 0
      %3272 = vmatmul.mubr.bf16.gmra.mrb[0].mxu0 %v2707
      %v3273 = vpop.f32.mrb[0].mxu0
      %v3274 = vadd.f32 0.0, %v3273
      %v3275 = vpop.f32.mrb[0].mxu0
      %v3276 = vpop.f32.mrb[0].mxu0
      %v3277 = vpop.f32.mrb[0].mxu0
      %3278 = vdwg.mxu0
      %v3279 = vrot.slane %v3041, 1
      %v3280 = vrot.slane %v3044, 1
      %v3281 = vrot.slane %v3049, 1
      %v3282 = vrot.slane %v3056, 1
      %v3283 = vrot.slane %v3059, 1
      %v3284 = vrot.slane %v3064, 1
      %v3285 = vrot.slane %v3071, 1
      %v3286 = vrot.slane %v3074, 1
      %v3287 = vrot.slane %v3079, 1
      %v3288 = vrot.slane %v3086, 1
      %v3289 = vrot.slane %v3089, 1
      %v3290 = vrot.slane %v3094, 1
      %v3291 = vrot.slane %v3101, 1
      %v3292 = vrot.slane %v3104, 1
      %v3293 = vrot.slane %v3109, 1
      %v3294 = vrot.slane %v3116, 1
      %v3295 = vrot.slane %v3119, 1
      %v3296 = vrot.slane %v3124, 1
      %v3297 = vrot.slane %v3131, 1
      %v3298 = vrot.slane %v3134, 1
      %v3299 = vrot.slane %v3139, 1
      %v3300 = vrot.slane %v3146, 1
      %v3301 = vrot.slane %v3149, 1
      %v3302 = vrot.slane %v3154, 1
      %v3303 = vrot.slane %v3161, 1
      %v3304 = vrot.slane %v3164, 1
      %v3305 = vrot.slane %v3169, 1
      %v3306 = vrot.slane %v3176, 1
      %v3307 = vrot.slane %v3179, 1
      %v3308 = vrot.slane %v3184, 1
      %v3309 = vrot.slane %v3191, 1
      %v3310 = vrot.slane %v3194, 1
      %v3311 = vrot.slane %v3199, 1
      %v3312 = vrot.slane %v3206, 1
      %v3313 = vrot.slane %v3209, 1
      %v3314 = vrot.slane %v3214, 1
      %v3315 = vrot.slane %v3221, 1
      %v3316 = vrot.slane %v3224, 1
      %v3317 = vrot.slane %v3229, 1
      %v3318 = vrot.slane %v3236, 1
      %v3319 = vrot.slane %v3239, 1
      %v3320 = vrot.slane %v3244, 1
      %v3321 = vrot.slane %v3251, 1
      %v3322 = vrot.slane %v3254, 1
      %v3323 = vrot.slane %v3259, 1
      %v3324 = vrot.slane %v3266, 1
      %v3325 = vrot.slane %v3269, 1
      %v3326 = vrot.slane %v3274, 1
      %v3327 = vsel %vm917, %v3325, %v3326
      %v3328 = vsel %vm917, %v3324, %v3325
      %v3329 = vsel %vm917, %v3322, %v3323
      %v3330 = vsel %vm917, %v3321, %v3322
      %v3331 = vsel %vm917, %v3319, %v3320
      %v3332 = vsel %vm917, %v3318, %v3319
      %v3333 = vsel %vm917, %v3316, %v3317
      %v3334 = vsel %vm917, %v3315, %v3316
      %v3335 = vsel %vm917, %v3313, %v3314
      %v3336 = vsel %vm917, %v3312, %v3313
      %v3337 = vsel %vm917, %v3310, %v3311
      %v3338 = vsel %vm917, %v3309, %v3310
      %v3339 = vsel %vm917, %v3307, %v3308
      %v3340 = vsel %vm917, %v3306, %v3307
      %v3341 = vsel %vm917, %v3304, %v3305
      %v3342 = vsel %vm917, %v3303, %v3304
      %v3343 = vsel %vm917, %v3301, %v3302
      %v3344 = vsel %vm917, %v3300, %v3301
      %v3345 = vsel %vm917, %v3298, %v3299
      %v3346 = vsel %vm917, %v3297, %v3298
      %v3347 = vsel %vm917, %v3295, %v3296
      %v3348 = vsel %vm917, %v3294, %v3295
      %v3349 = vsel %vm917, %v3292, %v3293
      %v3350 = vsel %vm917, %v3291, %v3292
      %v3351 = vsel %vm917, %v3289, %v3290
      %v3352 = vsel %vm917, %v3288, %v3289
      %v3353 = vsel %vm917, %v3286, %v3287
      %v3354 = vsel %vm917, %v3285, %v3286
      %v3355 = vsel %vm917, %v3283, %v3284
      %v3356 = vsel %vm917, %v3282, %v3283
      %v3357 = vsel %vm917, %v3280, %v3281
      %v3358 = vsel %vm917, %v3279, %v3280
      %v3359 = vadd.f32 %v2969, %v3358
      %v3360 = vadd.f32 %v2970, %v3357
      %v3361 = vadd.f32 %v2971, %v3356
      %v3362 = vadd.f32 %v2972, %v3355
      %v3363 = vadd.f32 %v2973, %v3354
      %v3364 = vadd.f32 %v2974, %v3353
      %v3365 = vadd.f32 %v2975, %v3352
      %v3366 = vadd.f32 %v2976, %v3351
      %v3367 = vadd.f32 %v2977, %v3350
      %v3368 = vadd.f32 %v2978, %v3349
      %v3369 = vadd.f32 %v2979, %v3348
      %v3370 = vadd.f32 %v2980, %v3347
      %v3371 = vadd.f32 %v2981, %v3346
      %v3372 = vadd.f32 %v2982, %v3345
      %v3373 = vadd.f32 %v2983, %v3344
      %v3374 = vadd.f32 %v2984, %v3343
      %v3375 = vadd.f32 %v2985, %v3342
      %v3376 = vadd.f32 %v2986, %v3341
      %v3377 = vadd.f32 %v2987, %v3340
      %v3378 = vadd.f32 %v2988, %v3339
      %v3379 = vadd.f32 %v2989, %v3338
      %v3380 = vadd.f32 %v2990, %v3337
      %v3381 = vadd.f32 %v2991, %v3336
      %v3382 = vadd.f32 %v2992, %v3335
      %v3383 = vadd.f32 %v2993, %v3334
      %v3384 = vadd.f32 %v2994, %v3333
      %v3385 = vadd.f32 %v2995, %v3332
      %v3386 = vadd.f32 %v2996, %v3331
      %v3387 = vadd.f32 %v2997, %v3330
      %v3388 = vadd.f32 %v2998, %v3329
      %v3389 = vadd.f32 %v2999, %v3328
      %v3390 = vadd.f32 %v3000, %v3327
      %s3391 = scalar_lea.vmem %s1, 16
      %v3392 = vld [vmem:[%s3391] sm:$0x3]
      %v3394 = vsel %vm590, %v3392, 0
      %3396 = vmatprep.subr.bf16.mxu0 0
      %3397 = vmatpush1.bf16.msra.mxu0 %v3394
      %3398 = vmatprep.subr.bf16.mxu0 0
      %3399 = vmatpush1.bf16.msra.mxu0 0
      %3400 = vmatprep.subr.bf16.mxu0 0
      %3401 = vmatpush1.bf16.msra.mxu0 0
      %3402 = vmatprep.subr.bf16.mxu0 0
      %3403 = vmatpush1.bf16.msra.mxu0 0
      %3404 = vmatprep.subr.bf16.mxu0 0
      %3405 = vmatpush1.bf16.msra.mxu0 0
      %3406 = vmatprep.subr.bf16.mxu0 0
      %3407 = vmatpush1.bf16.msra.mxu0 0
      %3408 = vmatprep.subr.bf16.mxu0 0
      %3409 = vmatpush1.bf16.msra.mxu0 0
      %3410 = vmatprep.subr.bf16.mxu0 0
      %3411 = vmatpush1.bf16.msra.mxu0 0
      %3412 = vmatprep.subr.bf16.mxu0 0
      %3413 = vmatpush1.bf16.msra.mxu0 0
      %3414 = vmatprep.subr.bf16.mxu0 0
      %3415 = vmatpush1.bf16.msra.mxu0 0
      %3416 = vmatprep.subr.bf16.mxu0 0
      %3417 = vmatpush1.bf16.msra.mxu0 0
      %3418 = vmatprep.subr.bf16.mxu0 0
      %3419 = vmatpush1.bf16.msra.mxu0 0
      %3420 = vmatprep.subr.bf16.mxu0 0
      %3421 = vmatpush1.bf16.msra.mxu0 0
      %3422 = vmatprep.subr.bf16.mxu0 0
      %3423 = vmatpush1.bf16.msra.mxu0 0
      %3424 = vmatprep.subr.bf16.mxu0 0
      %3425 = vmatpush1.bf16.msra.mxu0 0
      %3426 = vmatprep.subr.bf16.mxu0 0
      %3427 = vmatpush1.bf16.msra.mxu0 0
      %3428 = vmatprep.mubr.bf16.mxu0 0
      %3429 = vmatmul.mubr.bf16.gmra.mrb[0].mxu0 %v507
      %v3430 = vpop.f32.mrb[0].mxu0
      %v3431 = vadd.f32 0.0, %v3430
      %v3432 = vpop.f32.mrb[0].mxu0
      %v3433 = vpop.f32.mrb[0].mxu0
      %v3434 = vadd.f32 0.0, %v3433
      %v3435 = vpop.f32.mrb[0].mxu0
      %3436 = vmatprep.mubr.bf16.mxu0 0
      %3437 = vmatmul.mubr.bf16.gmra.mrb[0].mxu0 %v510
      %v3438 = vpop.f32.mrb[0].mxu0
      %v3439 = vadd.f32 0.0, %v3438
      %v3440 = vpop.f32.mrb[0].mxu0
      %v3441 = vpop.f32.mrb[0].mxu0
      %v3442 = vpop.f32.mrb[0].mxu0
      %3443 = vmatprep.mubr.bf16.mxu0 0
      %3444 = vmatmul.mubr.bf16.gmra.mrb[0].mxu0 %v513
      %v3445 = vpop.f32.mrb[0].mxu0
      %v3446 = vadd.f32 0.0, %v3445
      %v3447 = vpop.f32.mrb[0].mxu0
      %v3448 = vpop.f32.mrb[0].mxu0
      %v3449 = vadd.f32 0.0, %v3448
      %v3450 = vpop.f32.mrb[0].mxu0
      %3451 = vmatprep.mubr.bf16.mxu0 0
      %3452 = vmatmul.mubr.bf16.gmra.mrb[0].mxu0 %v516
      %v3453 = vpop.f32.mrb[0].mxu0
      %v3454 = vadd.f32 0.0, %v3453
      %v3455 = vpop.f32.mrb[0].mxu0
      %v3456 = vpop.f32.mrb[0].mxu0
      %v3457 = vpop.f32.mrb[0].mxu0
      %3458 = vmatprep.mubr.bf16.mxu0 0
      %3459 = vmatmul.mubr.bf16.gmra.mrb[0].mxu0 %v519
      %v3460 = vpop.f32.mrb[0].mxu0
      %v3461 = vadd.f32 0.0, %v3460
      %v3462 = vpop.f32.mrb[0].mxu0
      %v3463 = vpop.f32.mrb[0].mxu0
      %v3464 = vadd.f32 0.0, %v3463
      %v3465 = vpop.f32.mrb[0].mxu0
      %3466 = vmatprep.mubr.bf16.mxu0 0
      %3467 = vmatmul.mubr.bf16.gmra.mrb[0].mxu0 %v522
      %v3468 = vpop.f32.mrb[0].mxu0
      %v3469 = vadd.f32 0.0, %v3468
      %v3470 = vpop.f32.mrb[0].mxu0
      %v3471 = vpop.f32.mrb[0].mxu0
      %v3472 = vpop.f32.mrb[0].mxu0
      %3473 = vmatprep.mubr.bf16.mxu0 0
      %3474 = vmatmul.mubr.bf16.gmra.mrb[0].mxu0 %v525
      %v3475 = vpop.f32.mrb[0].mxu0
      %v3476 = vadd.f32 0.0, %v3475
      %v3477 = vpop.f32.mrb[0].mxu0
      %v3478 = vpop.f32.mrb[0].mxu0
      %v3479 = vadd.f32 0.0, %v3478
      %v3480 = vpop.f32.mrb[0].mxu0
      %3481 = vmatprep.mubr.bf16.mxu0 0
      %3482 = vmatmul.mubr.bf16.gmra.mrb[0].mxu0 %v528
      %v3483 = vpop.f32.mrb[0].mxu0
      %v3484 = vadd.f32 0.0, %v3483
      %v3485 = vpop.f32.mrb[0].mxu0
      %v3486 = vpop.f32.mrb[0].mxu0
      %v3487 = vpop.f32.mrb[0].mxu0
      %3488 = vmatprep.mubr.bf16.mxu0 0
      %3489 = vmatmul.mubr.bf16.gmra.mrb[0].mxu0 %v531
      %v3490 = vpop.f32.mrb[0].mxu0
      %v3491 = vadd.f32 0.0, %v3490
      %v3492 = vpop.f32.mrb[0].mxu0
      %v3493 = vpop.f32.mrb[0].mxu0
      %v3494 = vadd.f32 0.0, %v3493
      %v3495 = vpop.f32.mrb[0].mxu0
      %3496 = vmatprep.mubr.bf16.mxu0 0
      %3497 = vmatmul.mubr.bf16.gmra.mrb[0].mxu0 %v534
      %v3498 = vpop.f32.mrb[0].mxu0
      %v3499 = vadd.f32 0.0, %v3498
      %v3500 = vpop.f32.mrb[0].mxu0
      %v3501 = vpop.f32.mrb[0].mxu0
      %v3502 = vpop.f32.mrb[0].mxu0
      %3503 = vmatprep.mubr.bf16.mxu0 0
      %3504 = vmatmul.mubr.bf16.gmra.mrb[0].mxu0 %v537
      %v3505 = vpop.f32.mrb[0].mxu0
      %v3506 = vadd.f32 0.0, %v3505
      %v3507 = vpop.f32.mrb[0].mxu0
      %v3508 = vpop.f32.mrb[0].mxu0
      %v3509 = vadd.f32 0.0, %v3508
      %v3510 = vpop.f32.mrb[0].mxu0
      %3511 = vmatprep.mubr.bf16.mxu0 0
      %3512 = vmatmul.mubr.bf16.gmra.mrb[0].mxu0 %v540
      %v3513 = vpop.f32.mrb[0].mxu0
      %v3514 = vadd.f32 0.0, %v3513
      %v3515 = vpop.f32.mrb[0].mxu0
      %v3516 = vpop.f32.mrb[0].mxu0
      %v3517 = vpop.f32.mrb[0].mxu0
      %3518 = vmatprep.mubr.bf16.mxu0 0
      %3519 = vmatmul.mubr.bf16.gmra.mrb[0].mxu0 %v543
      %v3520 = vpop.f32.mrb[0].mxu0
      %v3521 = vadd.f32 0.0, %v3520
      %v3522 = vpop.f32.mrb[0].mxu0
      %v3523 = vpop.f32.mrb[0].mxu0
      %v3524 = vadd.f32 0.0, %v3523
      %v3525 = vpop.f32.mrb[0].mxu0
      %3526 = vmatprep.mubr.bf16.mxu0 0
      %3527 = vmatmul.mubr.bf16.gmra.mrb[0].mxu0 %v546
      %v3528 = vpop.f32.mrb[0].mxu0
      %v3529 = vadd.f32 0.0, %v3528
      %v3530 = vpop.f32.mrb[0].mxu0
      %v3531 = vpop.f32.mrb[0].mxu0
      %v3532 = vpop.f32.mrb[0].mxu0
      %3533 = vmatprep.mubr.bf16.mxu0 0
      %3534 = vmatmul.mubr.bf16.gmra.mrb[0].mxu0 %v549
      %v3535 = vpop.f32.mrb[0].mxu0
      %v3536 = vadd.f32 0.0, %v3535
      %v3537 = vpop.f32.mrb[0].mxu0
      %v3538 = vpop.f32.mrb[0].mxu0
      %v3539 = vadd.f32 0.0, %v3538
      %v3540 = vpop.f32.mrb[0].mxu0
      %3541 = vmatprep.mubr.bf16.mxu0 0
      %3542 = vmatmul.mubr.bf16.gmra.mrb[0].mxu0 %v552
      %v3543 = vpop.f32.mrb[0].mxu0
      %v3544 = vadd.f32 0.0, %v3543
      %v3545 = vpop.f32.mrb[0].mxu0
      %v3546 = vpop.f32.mrb[0].mxu0
      %v3547 = vpop.f32.mrb[0].mxu0
      %3548 = vmatprep.mubr.bf16.mxu0 0
      %3549 = vmatmul.mubr.bf16.gmra.mrb[0].mxu0 %v555
      %v3550 = vpop.f32.mrb[0].mxu0
      %v3551 = vadd.f32 0.0, %v3550
      %v3552 = vpop.f32.mrb[0].mxu0
      %v3553 = vpop.f32.mrb[0].mxu0
      %v3554 = vadd.f32 0.0, %v3553
      %v3555 = vpop.f32.mrb[0].mxu0
      %3556 = vmatprep.mubr.bf16.mxu0 0
      %3557 = vmatmul.mubr.bf16.gmra.mrb[0].mxu0 %v558
      %v3558 = vpop.f32.mrb[0].mxu0
      %v3559 = vadd.f32 0.0, %v3558
      %v3560 = vpop.f32.mrb[0].mxu0
      %v3561 = vpop.f32.mrb[0].mxu0
      %v3562 = vpop.f32.mrb[0].mxu0
      %3563 = vmatprep.mubr.bf16.mxu0 0
      %3564 = vmatmul.mubr.bf16.gmra.mrb[0].mxu0 %v561
      %v3565 = vpop.f32.mrb[0].mxu0
      %v3566 = vadd.f32 0.0, %v3565
      %v3567 = vpop.f32.mrb[0].mxu0
      %v3568 = vpop.f32.mrb[0].mxu0
      %v3569 = vadd.f32 0.0, %v3568
      %v3570 = vpop.f32.mrb[0].mxu0
      %3571 = vmatprep.mubr.bf16.mxu0 0
      %3572 = vmatmul.mubr.bf16.gmra.mrb[0].mxu0 %v564
      %v3573 = vpop.f32.mrb[0].mxu0
      %v3574 = vadd.f32 0.0, %v3573
      %v3575 = vpop.f32.mrb[0].mxu0
      %v3576 = vpop.f32.mrb[0].mxu0
      %v3577 = vpop.f32.mrb[0].mxu0
      %3578 = vmatprep.mubr.bf16.mxu0 0
      %3579 = vmatmul.mubr.bf16.gmra.mrb[0].mxu0 %v567
      %v3580 = vpop.f32.mrb[0].mxu0
      %v3581 = vadd.f32 0.0, %v3580
      %v3582 = vpop.f32.mrb[0].mxu0
      %v3583 = vpop.f32.mrb[0].mxu0
      %v3584 = vadd.f32 0.0, %v3583
      %v3585 = vpop.f32.mrb[0].mxu0
      %3586 = vmatprep.mubr.bf16.mxu0 0
      %3587 = vmatmul.mubr.bf16.gmra.mrb[0].mxu0 %v570
      %v3588 = vpop.f32.mrb[0].mxu0
      %v3589 = vadd.f32 0.0, %v3588
      %v3590 = vpop.f32.mrb[0].mxu0
      %v3591 = vpop.f32.mrb[0].mxu0
      %v3592 = vpop.f32.mrb[0].mxu0
      %3593 = vmatprep.mubr.bf16.mxu0 0
      %3594 = vmatmul.mubr.bf16.gmra.mrb[0].mxu0 %v573
      %v3595 = vpop.f32.mrb[0].mxu0
      %v3596 = vadd.f32 0.0, %v3595
      %v3597 = vpop.f32.mrb[0].mxu0
      %v3598 = vpop.f32.mrb[0].mxu0
      %v3599 = vadd.f32 0.0, %v3598
      %v3600 = vpop.f32.mrb[0].mxu0
      %3601 = vmatprep.mubr.bf16.mxu0 0
      %3602 = vmatmul.mubr.bf16.gmra.mrb[0].mxu0 %v576
      %v3603 = vpop.f32.mrb[0].mxu0
      %v3604 = vadd.f32 0.0, %v3603
      %v3605 = vpop.f32.mrb[0].mxu0
      %v3606 = vpop.f32.mrb[0].mxu0
      %v3607 = vpop.f32.mrb[0].mxu0
      %3608 = vmatprep.mubr.bf16.mxu0 0
      %3609 = vmatmul.mubr.bf16.gmra.mrb[0].mxu0 %v579
      %v3610 = vpop.f32.mrb[0].mxu0
      %v3611 = vadd.f32 0.0, %v3610
      %v3612 = vpop.f32.mrb[0].mxu0
      %v3613 = vpop.f32.mrb[0].mxu0
      %v3614 = vadd.f32 0.0, %v3613
      %v3615 = vpop.f32.mrb[0].mxu0
      %3616 = vmatprep.mubr.bf16.mxu0 0
      %3617 = vmatmul.mubr.bf16.gmra.mrb[0].mxu0 %v582
      %v3618 = vpop.f32.mrb[0].mxu0
      %v3619 = vadd.f32 0.0, %v3618
      %v3620 = vpop.f32.mrb[0].mxu0
      %v3621 = vpop.f32.mrb[0].mxu0
      %v3622 = vpop.f32.mrb[0].mxu0
      %3623 = vmatprep.mubr.bf16.mxu0 0
      %3624 = vmatmul.mubr.bf16.gmra.mrb[0].mxu0 %v585
      %v3625 = vpop.f32.mrb[0].mxu0
      %v3626 = vadd.f32 0.0, %v3625
      %v3627 = vpop.f32.mrb[0].mxu0
      %v3628 = vpop.f32.mrb[0].mxu0
      %v3629 = vadd.f32 0.0, %v3628
      %v3630 = vpop.f32.mrb[0].mxu0
      %3631 = vmatprep.mubr.bf16.mxu0 0
      %3632 = vmatmul.mubr.bf16.gmra.mrb[0].mxu0 %v588
      %v3633 = vpop.f32.mrb[0].mxu0
      %v3634 = vadd.f32 0.0, %v3633
      %v3635 = vpop.f32.mrb[0].mxu0
      %v3636 = vpop.f32.mrb[0].mxu0
      %v3637 = vpop.f32.mrb[0].mxu0
      %3638 = vmatprep.mubr.bf16.mxu0 0
      %3639 = vmatmul.mubr.bf16.gmra.mrb[0].mxu0 %v1614
      %v3640 = vpop.f32.mrb[0].mxu0
      %v3641 = vadd.f32 0.0, %v3640
      %v3642 = vpop.f32.mrb[0].mxu0
      %v3643 = vpop.f32.mrb[0].mxu0
      %v3644 = vadd.f32 0.0, %v3643
      %v3645 = vpop.f32.mrb[0].mxu0
      %3646 = vmatprep.mubr.bf16.mxu0 0
      %3647 = vmatmul.mubr.bf16.gmra.mrb[0].mxu0 %v1617
      %v3648 = vpop.f32.mrb[0].mxu0
      %v3649 = vadd.f32 0.0, %v3648
      %v3650 = vpop.f32.mrb[0].mxu0
      %v3651 = vpop.f32.mrb[0].mxu0
      %v3652 = vpop.f32.mrb[0].mxu0
      %3653 = vmatprep.mubr.bf16.mxu0 0
      %3654 = vmatmul.mubr.bf16.gmra.mrb[0].mxu0 %v2704
      %v3655 = vpop.f32.mrb[0].mxu0
      %v3656 = vadd.f32 0.0, %v3655
      %v3657 = vpop.f32.mrb[0].mxu0
      %v3658 = vpop.f32.mrb[0].mxu0
      %v3659 = vadd.f32 0.0, %v3658
      %v3660 = vpop.f32.mrb[0].mxu0
      %3661 = vmatprep.mubr.bf16.mxu0 0
      %3662 = vmatmul.mubr.bf16.gmra.mrb[0].mxu0 %v2707
      %v3663 = vpop.f32.mrb[0].mxu0
      %v3664 = vadd.f32 0.0, %v3663
      %v3665 = vpop.f32.mrb[0].mxu0
      %v3666 = vpop.f32.mrb[0].mxu0
      %v3667 = vpop.f32.mrb[0].mxu0
      %3668 = vdwg.mxu0
      %v3669 = vrot.slane %v3431, 2
      %v3670 = vrot.slane %v3434, 2
      %v3671 = vrot.slane %v3439, 2
      %v3672 = vrot.slane %v3446, 2
      %v3673 = vrot.slane %v3449, 2
      %v3674 = vrot.slane %v3454, 2
      %v3675 = vrot.slane %v3461, 2
      %v3676 = vrot.slane %v3464, 2
      %v3677 = vrot.slane %v3469, 2
      %v3678 = vrot.slane %v3476, 2
      %v3679 = vrot.slane %v3479, 2
      %v3680 = vrot.slane %v3484, 2
      %v3681 = vrot.slane %v3491, 2
      %v3682 = vrot.slane %v3494, 2
      %v3683 = vrot.slane %v3499, 2
      %v3684 = vrot.slane %v3506, 2
      %v3685 = vrot.slane %v3509, 2
      %v3686 = vrot.slane %v3514, 2
      %v3687 = vrot.slane %v3521, 2
      %v3688 = vrot.slane %v3524, 2
      %v3689 = vrot.slane %v3529, 2
      %v3690 = vrot.slane %v3536, 2
      %v3691 = vrot.slane %v3539, 2
      %v3692 = vrot.slane %v3544, 2
      %v3693 = vrot.slane %v3551, 2
      %v3694 = vrot.slane %v3554, 2
      %v3695 = vrot.slane %v3559, 2
      %v3696 = vrot.slane %v3566, 2
      %v3697 = vrot.slane %v3569, 2
      %v3698 = vrot.slane %v3574, 2
      %v3699 = vrot.slane %v3581, 2
      %v3700 = vrot.slane %v3584, 2
      %v3701 = vrot.slane %v3589, 2
      %v3702 = vrot.slane %v3596, 2
      %v3703 = vrot.slane %v3599, 2
      %v3704 = vrot.slane %v3604, 2
      %v3705 = vrot.slane %v3611, 2
      %v3706 = vrot.slane %v3614, 2
      %v3707 = vrot.slane %v3619, 2
      %v3708 = vrot.slane %v3626, 2
      %v3709 = vrot.slane %v3629, 2
      %v3710 = vrot.slane %v3634, 2
      %v3711 = vrot.slane %v3641, 2
      %v3712 = vrot.slane %v3644, 2
      %v3713 = vrot.slane %v3649, 2
      %v3714 = vrot.slane %v3656, 2
      %v3715 = vrot.slane %v3659, 2
      %v3716 = vrot.slane %v3664, 2
      %v3717 = vsel %vm1536, %v3715, %v3716
      %v3718 = vsel %vm1536, %v3714, %v3715
      %v3719 = vsel %vm1536, %v3712, %v3713
      %v3720 = vsel %vm1536, %v3711, %v3712
      %v3721 = vsel %vm1536, %v3709, %v3710
      %v3722 = vsel %vm1536, %v3708, %v3709
      %v3723 = vsel %vm1536, %v3706, %v3707
      %v3724 = vsel %vm1536, %v3705, %v3706
      %v3725 = vsel %vm1536, %v3703, %v3704
      %v3726 = vsel %vm1536, %v3702, %v3703
      %v3727 = vsel %vm1536, %v3700, %v3701
      %v3728 = vsel %vm1536, %v3699, %v3700
      %v3729 = vsel %vm1536, %v3697, %v3698
      %v3730 = vsel %vm1536, %v3696, %v3697
      %v3731 = vsel %vm1536, %v3694, %v3695
      %v3732 = vsel %vm1536, %v3693, %v3694
      %v3733 = vsel %vm1536, %v3691, %v3692
      %v3734 = vsel %vm1536, %v3690, %v3691
      %v3735 = vsel %vm1536, %v3688, %v3689
      %v3736 = vsel %vm1536, %v3687, %v3688
      %v3737 = vsel %vm1536, %v3685, %v3686
      %v3738 = vsel %vm1536, %v3684, %v3685
      %v3739 = vsel %vm1536, %v3682, %v3683
      %v3740 = vsel %vm1536, %v3681, %v3682
      %v3741 = vsel %vm1536, %v3679, %v3680
      %v3742 = vsel %vm1536, %v3678, %v3679
      %v3743 = vsel %vm1536, %v3676, %v3677
      %v3744 = vsel %vm1536, %v3675, %v3676
      %v3745 = vsel %vm1536, %v3673, %v3674
      %v3746 = vsel %vm1536, %v3672, %v3673
      %v3747 = vsel %vm1536, %v3670, %v3671
      %v3748 = vsel %vm1536, %v3669, %v3670
      %v3749 = vadd.f32 %v3359, %v3748
      %v3750 = vadd.f32 %v3360, %v3747
      %v3751 = vadd.f32 %v3361, %v3746
      %v3752 = vadd.f32 %v3362, %v3745
      %v3753 = vadd.f32 %v3363, %v3744
      %v3754 = vadd.f32 %v3364, %v3743
      %v3755 = vadd.f32 %v3365, %v3742
      %v3756 = vadd.f32 %v3366, %v3741
      %v3757 = vadd.f32 %v3367, %v3740
      %v3758 = vadd.f32 %v3368, %v3739
      %v3759 = vadd.f32 %v3369, %v3738
      %v3760 = vadd.f32 %v3370, %v3737
      %v3761 = vadd.f32 %v3371, %v3736
      %v3762 = vadd.f32 %v3372, %v3735
      %v3763 = vadd.f32 %v3373, %v3734
      %v3764 = vadd.f32 %v3374, %v3733
      %v3765 = vadd.f32 %v3375, %v3732
      %v3766 = vadd.f32 %v3376, %v3731
      %v3767 = vadd.f32 %v3377, %v3730
      %v3768 = vadd.f32 %v3378, %v3729
      %v3769 = vadd.f32 %v3379, %v3728
      %v3770 = vadd.f32 %v3380, %v3727
      %v3771 = vadd.f32 %v3381, %v3726
      %v3772 = vadd.f32 %v3382, %v3725
      %v3773 = vadd.f32 %v3383, %v3724
      %v3774 = vadd.f32 %v3384, %v3723
      %v3775 = vadd.f32 %v3385, %v3722
      %v3776 = vadd.f32 %v3386, %v3721
      %v3777 = vadd.f32 %v3387, %v3720
      %v3778 = vadd.f32 %v3388, %v3719
      %v3779 = vadd.f32 %v3389, %v3718
      %v3780 = vadd.f32 %v3390, %v3717
      %v3781 = vpack.c.bf16 %v3750, %v3749
      %v3782 = vpack.c.bf16 %v3752, %v3751
      %v3783 = vpack.c.bf16 %v3754, %v3753
      %v3784 = vpack.c.bf16 %v3756, %v3755
      %v3785 = vpack.c.bf16 %v3758, %v3757
      %v3786 = vpack.c.bf16 %v3760, %v3759
      %v3787 = vpack.c.bf16 %v3762, %v3761
      %v3788 = vpack.c.bf16 %v3764, %v3763
      %v3789 = vpack.c.bf16 %v3766, %v3765
      %v3790 = vpack.c.bf16 %v3768, %v3767
      %v3791 = vpack.c.bf16 %v3770, %v3769
      %v3792 = vpack.c.bf16 %v3772, %v3771
      %v3793 = vpack.c.bf16 %v3774, %v3773
      %v3794 = vpack.c.bf16 %v3776, %v3775
      %v3795 = vpack.c.bf16 %v3778, %v3777
      %v3796 = vpack.c.bf16 %v3780, %v3779
      %v3813 = vunpack.c.l.b16 %v3781
      %v3814 = vunpack.c.h.b16 %v3781
      %v3815 = vunpack.c.l.b16 %v3782
      %v3816 = vunpack.c.h.b16 %v3782
      %v3817 = vunpack.c.l.b16 %v3783
      %v3818 = vunpack.c.h.b16 %v3783
      %v3819 = vunpack.c.l.b16 %v3784
      %v3820 = vunpack.c.h.b16 %v3784
      %v3821 = vunpack.c.l.b16 %v3785
      %v3822 = vunpack.c.h.b16 %v3785
      %v3823 = vunpack.c.l.b16 %v3786
      %v3824 = vunpack.c.h.b16 %v3786
      %v3825 = vunpack.c.l.b16 %v3787
      %v3826 = vunpack.c.h.b16 %v3787
      %v3827 = vunpack.c.l.b16 %v3788
      %v3828 = vunpack.c.h.b16 %v3788
      %v3829 = vunpack.c.l.b16 %v3789
      %v3830 = vunpack.c.h.b16 %v3789
      %v3831 = vunpack.c.l.b16 %v3790
      %v3832 = vunpack.c.h.b16 %v3790
      %v3833 = vunpack.c.l.b16 %v3791
      %v3834 = vunpack.c.h.b16 %v3791
      %v3835 = vunpack.c.l.b16 %v3792
      %v3836 = vunpack.c.h.b16 %v3792
      %v3837 = vunpack.c.l.b16 %v3793
      %v3838 = vunpack.c.h.b16 %v3793
      %v3839 = vunpack.c.l.b16 %v3794
      %v3840 = vunpack.c.h.b16 %v3794
      %v3841 = vunpack.c.l.b16 %v3795
      %v3842 = vunpack.c.h.b16 %v3795
      %v3843 = vunpack.c.l.b16 %v3796
      %v3844 = vunpack.c.h.b16 %v3796
      %v3845 = vpack.c.b16 %v3813, %v3813
      %v3846 = vpack.c.b16 %v3814, %v3814
      %v3847 = vpack.c.b16 %v3815, %v3815
      %v3848 = vpack.c.b16 %v3816, %v3816
      %v3849 = vpack.c.b16 %v3817, %v3817
      %v3850 = vpack.c.b16 %v3818, %v3818
      %v3851 = vpack.c.b16 %v3819, %v3819
      %v3852 = vpack.c.b16 %v3820, %v3820
      %v3853 = vpack.c.b16 %v3821, %v3821
      %v3854 = vpack.c.b16 %v3822, %v3822
      %v3855 = vpack.c.b16 %v3823, %v3823
      %v3856 = vpack.c.b16 %v3824, %v3824
      %v3857 = vpack.c.b16 %v3825, %v3825
      %v3858 = vpack.c.b16 %v3826, %v3826
      %v3859 = vpack.c.b16 %v3827, %v3827
      %v3860 = vpack.c.b16 %v3828, %v3828
      %v3861 = vpack.c.b16 %v3829, %v3829
      %v3862 = vpack.c.b16 %v3830, %v3830
      %v3863 = vpack.c.b16 %v3831, %v3831
      %v3864 = vpack.c.b16 %v3832, %v3832
      %v3865 = vpack.c.b16 %v3833, %v3833
      %v3866 = vpack.c.b16 %v3834, %v3834
      %v3867 = vpack.c.b16 %v3835, %v3835
      %v3868 = vpack.c.b16 %v3836, %v3836
      %v3869 = vpack.c.b16 %v3837, %v3837
      %v3870 = vpack.c.b16 %v3838, %v3838
      %v3871 = vpack.c.b16 %v3839, %v3839
      %v3872 = vpack.c.b16 %v3840, %v3840
      %v3873 = vpack.c.b16 %v3841, %v3841
      %v3874 = vpack.c.b16 %v3842, %v3842
      %v3875 = vpack.c.b16 %v3843, %v3843
      %v3876 = vpack.c.b16 %v3844, %v3844
      %vm3909 = vcmask 60416
      %3910 = vst.msk [vmem:[%s245] sm:$0xf] %vm3909, %v3845
      %3911 = vst.msk [vmem:[%s245 + $0x4] sm:$0xf] %vm3909, %v3846
      %3912 = vst.msk [vmem:[%s245 + $0x8] sm:$0xf] %vm3909, %v3847
      %3913 = vst.msk [vmem:[%s245 + $0xc] sm:$0xf] %vm3909, %v3848
      %3914 = vst.msk [vmem:[%s245 + $0x10] sm:$0xf] %vm3909, %v3849
      %3915 = vst.msk [vmem:[%s245 + $0x14] sm:$0xf] %vm3909, %v3850
      %3916 = vst.msk [vmem:[%s245 + $0x18] sm:$0xf] %vm3909, %v3851
      %3917 = vst.msk [vmem:[%s245 + $0x1c] sm:$0xf] %vm3909, %v3852
      %3918 = vst.msk [vmem:[%s245 + $0x20] sm:$0xf] %vm3909, %v3853
      %3919 = vst.msk [vmem:[%s245 + $0x24] sm:$0xf] %vm3909, %v3854
      %3920 = vst.msk [vmem:[%s245 + $0x28] sm:$0xf] %vm3909, %v3855
      %3921 = vst.msk [vmem:[%s245 + $0x2c] sm:$0xf] %vm3909, %v3856
      %3922 = vst.msk [vmem:[%s245 + $0x30] sm:$0xf] %vm3909, %v3857
      %3923 = vst.msk [vmem:[%s245 + $0x34] sm:$0xf] %vm3909, %v3858
      %3924 = vst.msk [vmem:[%s245 + $0x38] sm:$0xf] %vm3909, %v3859
      %3925 = vst.msk [vmem:[%s245 + $0x3c] sm:$0xf] %vm3909, %v3860
      %3926 = vst.msk [vmem:[%s245 + $0x40] sm:$0xf] %vm3909, %v3861
      %3927 = vst.msk [vmem:[%s245 + $0x44] sm:$0xf] %vm3909, %v3862
      %3928 = vst.msk [vmem:[%s245 + $0x48] sm:$0xf] %vm3909, %v3863
      %3929 = vst.msk [vmem:[%s245 + $0x4c] sm:$0xf] %vm3909, %v3864
      %3930 = vst.msk [vmem:[%s245 + $0x50] sm:$0xf] %vm3909, %v3865
      %3931 = vst.msk [vmem:[%s245 + $0x54] sm:$0xf] %vm3909, %v3866
      %3932 = vst.msk [vmem:[%s245 + $0x58] sm:$0xf] %vm3909, %v3867
      %3933 = vst.msk [vmem:[%s245 + $0x5c] sm:$0xf] %vm3909, %v3868
      %3934 = vst.msk [vmem:[%s245 + $0x60] sm:$0xf] %vm3909, %v3869
      %3935 = vst.msk [vmem:[%s245 + $0x64] sm:$0xf] %vm3909, %v3870
      %3936 = vst.msk [vmem:[%s245 + $0x68] sm:$0xf] %vm3909, %v3871
      %3937 = vst.msk [vmem:[%s245 + $0x6c] sm:$0xf] %vm3909, %v3872
      %3938 = vst.msk [vmem:[%s245 + $0x70] sm:$0xf] %vm3909, %v3873
      %3939 = vst.msk [vmem:[%s245 + $0x74] sm:$0xf] %vm3909, %v3874
      %3940 = vst.msk [vmem:[%s245 + $0x78] sm:$0xf] %vm3909, %v3875
      %3941 = vst.msk [vmem:[%s245 + $0x7c] sm:$0xf] %vm3909, %v3876
      %vm3942 = vcmask 64512
      %v3943 = vsel %vm3942, %v3749, 0.0
      %v3944 = vsel %vm3942, %v3751, 0.0
      %v3945 = vadd.f32 %v3943, %v3944
      %v3946 = vsel %vm3942, %v3753, 0.0
      %v3947 = vadd.f32 %v3945, %v3946
      %v3948 = vsel %vm3942, %v3755, 0.0
      %v3949 = vadd.f32 %v3947, %v3948
      %v3950 = vsel %vm3942, %v3757, 0.0
      %v3951 = vadd.f32 %v3949, %v3950
      %v3952 = vsel %vm3942, %v3759, 0.0
      %v3953 = vadd.f32 %v3951, %v3952
      %v3954 = vsel %vm3942, %v3761, 0.0
      %v3955 = vadd.f32 %v3953, %v3954
      %v3956 = vsel %vm3942, %v3763, 0.0
      %v3957 = vadd.f32 %v3955, %v3956
      %v3958 = vsel %vm3942, %v3765, 0.0
      %v3959 = vadd.f32 %v3957, %v3958
      %v3960 = vsel %vm3942, %v3767, 0.0
      %v3961 = vadd.f32 %v3959, %v3960
      %v3962 = vsel %vm3942, %v3769, 0.0
      %v3963 = vadd.f32 %v3961, %v3962
      %v3964 = vsel %vm3942, %v3771, 0.0
      %v3965 = vadd.f32 %v3963, %v3964
      %v3966 = vsel %vm3942, %v3773, 0.0
      %v3967 = vadd.f32 %v3965, %v3966
      %v3968 = vsel %vm3942, %v3775, 0.0
      %v3969 = vadd.f32 %v3967, %v3968
      %v3970 = vsel %vm3942, %v3777, 0.0
      %v3971 = vadd.f32 %v3969, %v3970
      %v3972 = vsel %vm3942, %v3779, 0.0
      %v3973 = vadd.f32 %v3971, %v3972
      %v3974 = vsel %vm3942, %v3750, 0.0
      %v3975 = vsel %vm3942, %v3752, 0.0
      %v3976 = vadd.f32 %v3974, %v3975
      %v3977 = vsel %vm3942, %v3754, 0.0
      %v3978 = vadd.f32 %v3976, %v3977
      %v3979 = vsel %vm3942, %v3756, 0.0
      %v3980 = vadd.f32 %v3978, %v3979
      %v3981 = vsel %vm3942, %v3758, 0.0
      %v3982 = vadd.f32 %v3980, %v3981
      %v3983 = vsel %vm3942, %v3760, 0.0
      %v3984 = vadd.f32 %v3982, %v3983
      %v3985 = vsel %vm3942, %v3762, 0.0
      %v3986 = vadd.f32 %v3984, %v3985
      %v3987 = vsel %vm3942, %v3764, 0.0
      %v3988 = vadd.f32 %v3986, %v3987
      %v3989 = vsel %vm3942, %v3766, 0.0
      %v3990 = vadd.f32 %v3988, %v3989
      %v3991 = vsel %vm3942, %v3768, 0.0
      %v3992 = vadd.f32 %v3990, %v3991
      %v3993 = vsel %vm3942, %v3770, 0.0
      %v3994 = vadd.f32 %v3992, %v3993
      %v3995 = vsel %vm3942, %v3772, 0.0
      %v3996 = vadd.f32 %v3994, %v3995
      %v3997 = vsel %vm3942, %v3774, 0.0
      %v3998 = vadd.f32 %v3996, %v3997
      %v3999 = vsel %vm3942, %v3776, 0.0
      %v4000 = vadd.f32 %v3998, %v3999
      %v4001 = vsel %vm3942, %v3778, 0.0
      %v4002 = vadd.f32 %v4000, %v4001
      %v4003 = vsel %vm3942, %v3780, 0.0
      %v4004 = vadd.f32 %v4002, %v4003
      %v4005 = vsel %vm3942, %v3973, 0.0
      %v4006 = vsel %vm3942, %v4004, 0.0
      %v4007 = vadd.f32 %v4005, %v4006
      %v4008 = vrot.slane %v4007, 4
      %v4009 = vadd.f32 %v4007, %v4008
      %v4010 = vrot.slane %v4009, 2
      %v4011 = vadd.f32 %v4009, %v4010
      %v4012 = vrot.slane %v4011, 1
      %v4013 = vadd.f32 %v4011, %v4012
      %vm4014 = vcmask 57344
      %4015 = vst.msk [vmem:[%s250] sm:$0x1] %vm4014, %v4013
      %v4016 = vmul.f32 %v3749, %v3749
      %v4017 = vmul.f32 %v3750, %v3750
      %v4018 = vmul.f32 %v3751, %v3751
      %v4019 = vmul.f32 %v3752, %v3752
      %v4020 = vmul.f32 %v3753, %v3753
      %v4021 = vmul.f32 %v3754, %v3754
      %v4022 = vmul.f32 %v3755, %v3755
      %v4023 = vmul.f32 %v3756, %v3756
      %v4024 = vmul.f32 %v3757, %v3757
      %v4025 = vmul.f32 %v3758, %v3758
      %v4026 = vmul.f32 %v3759, %v3759
      %v4027 = vmul.f32 %v3760, %v3760
      %v4028 = vmul.f32 %v3761, %v3761
      %v4029 = vmul.f32 %v3762, %v3762
      %v4030 = vmul.f32 %v3763, %v3763
      %v4031 = vmul.f32 %v3764, %v3764
      %v4032 = vmul.f32 %v3765, %v3765
      %v4033 = vmul.f32 %v3766, %v3766
      %v4034 = vmul.f32 %v3767, %v3767
      %v4035 = vmul.f32 %v3768, %v3768
      %v4036 = vmul.f32 %v3769, %v3769
      %v4037 = vmul.f32 %v3770, %v3770
      %v4038 = vmul.f32 %v3771, %v3771
      %v4039 = vmul.f32 %v3772, %v3772
      %v4040 = vmul.f32 %v3773, %v3773
      %v4041 = vmul.f32 %v3774, %v3774
      %v4042 = vmul.f32 %v3775, %v3775
      %v4043 = vmul.f32 %v3776, %v3776
      %v4044 = vmul.f32 %v3777, %v3777
      %v4045 = vmul.f32 %v3778, %v3778
      %v4046 = vmul.f32 %v3779, %v3779
      %v4047 = vmul.f32 %v3780, %v3780
      %v4048 = vsel %vm3942, %v4016, 0.0
      %v4049 = vsel %vm3942, %v4018, 0.0
      %v4050 = vadd.f32 %v4048, %v4049
      %v4051 = vsel %vm3942, %v4020, 0.0
      %v4052 = vadd.f32 %v4050, %v4051
      %v4053 = vsel %vm3942, %v4022, 0.0
      %v4054 = vadd.f32 %v4052, %v4053
      %v4055 = vsel %vm3942, %v4024, 0.0
      %v4056 = vadd.f32 %v4054, %v4055
      %v4057 = vsel %vm3942, %v4026, 0.0
      %v4058 = vadd.f32 %v4056, %v4057
      %v4059 = vsel %vm3942, %v4028, 0.0
      %v4060 = vadd.f32 %v4058, %v4059
      %v4061 = vsel %vm3942, %v4030, 0.0
      %v4062 = vadd.f32 %v4060, %v4061
      %v4063 = vsel %vm3942, %v4032, 0.0
      %v4064 = vadd.f32 %v4062, %v4063
      %v4065 = vsel %vm3942, %v4034, 0.0
      %v4066 = vadd.f32 %v4064, %v4065
      %v4067 = vsel %vm3942, %v4036, 0.0
      %v4068 = vadd.f32 %v4066, %v4067
      %v4069 = vsel %vm3942, %v4038, 0.0
      %v4070 = vadd.f32 %v4068, %v4069
      %v4071 = vsel %vm3942, %v4040, 0.0
      %v4072 = vadd.f32 %v4070, %v4071
      %v4073 = vsel %vm3942, %v4042, 0.0
      %v4074 = vadd.f32 %v4072, %v4073
      %v4075 = vsel %vm3942, %v4044, 0.0
      %v4076 = vadd.f32 %v4074, %v4075
      %v4077 = vsel %vm3942, %v4046, 0.0
      %v4078 = vadd.f32 %v4076, %v4077
      %v4079 = vsel %vm3942, %v4017, 0.0
      %v4080 = vsel %vm3942, %v4019, 0.0
      %v4081 = vadd.f32 %v4079, %v4080
      %v4082 = vsel %vm3942, %v4021, 0.0
      %v4083 = vadd.f32 %v4081, %v4082
      %v4084 = vsel %vm3942, %v4023, 0.0
      %v4085 = vadd.f32 %v4083, %v4084
      %v4086 = vsel %vm3942, %v4025, 0.0
      %v4087 = vadd.f32 %v4085, %v4086
      %v4088 = vsel %vm3942, %v4027, 0.0
      %v4089 = vadd.f32 %v4087, %v4088
      %v4090 = vsel %vm3942, %v4029, 0.0
      %v4091 = vadd.f32 %v4089, %v4090
      %v4092 = vsel %vm3942, %v4031, 0.0
      %v4093 = vadd.f32 %v4091, %v4092
      %v4094 = vsel %vm3942, %v4033, 0.0
      %v4095 = vadd.f32 %v4093, %v4094
      %v4096 = vsel %vm3942, %v4035, 0.0
      %v4097 = vadd.f32 %v4095, %v4096
      %v4098 = vsel %vm3942, %v4037, 0.0
      %v4099 = vadd.f32 %v4097, %v4098
      %v4100 = vsel %vm3942, %v4039, 0.0
      %v4101 = vadd.f32 %v4099, %v4100
      %v4102 = vsel %vm3942, %v4041, 0.0
      %v4103 = vadd.f32 %v4101, %v4102
      %v4104 = vsel %vm3942, %v4043, 0.0
      %v4105 = vadd.f32 %v4103, %v4104
      %v4106 = vsel %vm3942, %v4045, 0.0
      %v4107 = vadd.f32 %v4105, %v4106
      %v4108 = vsel %vm3942, %v4047, 0.0
      %v4109 = vadd.f32 %v4107, %v4108
      %v4110 = vsel %vm3942, %v4078, 0.0
      %v4111 = vsel %vm3942, %v4109, 0.0
      %v4112 = vadd.f32 %v4110, %v4111
      %v4113 = vrot.slane %v4112, 4
      %v4114 = vadd.f32 %v4112, %v4113
      %v4115 = vrot.slane %v4114, 2
      %v4116 = vadd.f32 %v4114, %v4115
      %v4117 = vrot.slane %v4116, 1
      %v4118 = vadd.f32 %v4116, %v4117
      %4119 = vst.msk [vmem:[%s255] sm:$0x1] %vm4014, %v4118
      %s4120 = smul.u32 16, %s21
      %p4121 = scmp.lt.s32.totalorder %s20, 1
      %s4122 = scalar_select %p4121, %s20, 1
      %p4123 = scmp.lt.s32.totalorder %s4120, 15
      %s4124 = scalar_select %p4123, %s4120, 15
      %s4125 = smul.addr %s4124, 2
      %s4126 = smul.addr %s4122, 32
      %s4127 = sadd.s32 %s4125, %s4126
      %s4128 = smul.addr %s4127, 4
      %s4129 = scalar_lea.vmem %s2, %s4128
      %s4130 = sadd.s32 %s20, %s21
      %p4131 = scmp.lt.s32.totalorder %s4130, 1
      %s4132 = scalar_select %p4131, %s4130, 1
      %s4133 = scalar_lea.vmem %s3, %s4132
      %s4134 = sadd.s32 %s20, %s21
      %p4135 = scmp.lt.s32.totalorder %s4134, 1
      %s4136 = scalar_select %p4135, %s4134, 1
      %s4137 = scalar_lea.vmem %s4, %s4136
      // Predicated region
      $region29: #{discriminator_block_forward.2} parent=27 // pred_check
        %p4138 = pneg %p97
      $region30: #{discriminator_block_forward.2} parent=27 // pred_check_branch
        %4140 = sbr.rel (%p4138) target = $region32
      $region31: #{discriminator_block_forward.2} parent=27 // pred_region
        %s4141 = smul.u32 16, %s21
      $region32: #{discriminator_block_forward.2} parent=27 // pred_fallthru
        _
      // Predicated region
      $region33: #{discriminator_block_forward.2} parent=27 // pred_check
        %p4142 = pneg %p125
      $region34: #{discriminator_block_forward.2} parent=27 // pred_check_branch
        %4144 = sbr.rel (%p4142) target = $region36
      $region35: #{discriminator_block_forward.2} parent=27 // pred_region
        %s4145 = sadd.s32 %s20, %s21
      $region36: #{discriminator_block_forward.2} parent=27 // pred_fallthru
        _
      // Predicated region
      $region37: #{discriminator_block_forward.2} parent=27 // pred_check
        %p4146 = pneg %p153
      $region38: #{discriminator_block_forward.2} parent=27 // pred_check_branch
        %4148 = sbr.rel (%p4146) target = $region40
      $region39: #{discriminator_block_forward.2} parent=27 // pred_region
        %s4149 = sadd.s32 %s20, %s21
      $region40: #{discriminator_block_forward.2} parent=27 // pred_fallthru
        _
    $region28: #{discriminator_block_forward.2} parent=5 // pred_fallthru
      _
    %p4150 = scmp.le.s32.totalorder 2, %s11
    // Predicated region
    $region41: #{discriminator_block_forward.2} parent=5 // pred_check
      %p4151 = pneg %p4150
    $region42: #{discriminator_block_forward.2} parent=5 // pred_check_branch
      %4153 = sbr.rel (%p4151) target = $region44
    $region43: #{discriminator_block_forward.2} parent=5 // pred_region
      %s4154 = ssub.s32 %s11, 2
      // Predicated region
      $region45: #{discriminator_block_forward.2} parent=43 // pred_check
        %p4155 = pneg %p103
      $region46: #{discriminator_block_forward.2} parent=43 // pred_check_branch
        %4157 = sbr.rel (%p4155) target = $region48
      $region47: #{discriminator_block_forward.2} parent=43 // pred_region
        %s4158 = smul.u32 16, %s23
        %p4159 = scmp.lt.s32.totalorder %s22, 1
        %s4160 = scalar_select %p4159, %s22, 1
        %p4161 = scmp.lt.s32.totalorder %s4158, 15
        %s4162 = scalar_select %p4161, %s4158, 15
        %s4163 = smul.addr %s4162, 2
        %s4164 = smul.addr %s4160, 32
        %s4165 = sadd.s32 %s4163, %s4164
        %s4166 = smul.addr %s4165, 4
        %s4167 = scalar_lea.vmem %s2, %s4166
      $region48: #{discriminator_block_forward.2} parent=43 // pred_fallthru
        _
      // Predicated region
      $region49: #{discriminator_block_forward.2} parent=43 // pred_check
        %p4168 = pneg %p131
      $region50: #{discriminator_block_forward.2} parent=43 // pred_check_branch
        %4170 = sbr.rel (%p4168) target = $region52
      $region51: #{discriminator_block_forward.2} parent=43 // pred_region
        %s4171 = sadd.s32 %s22, %s23
        %p4172 = scmp.lt.s32.totalorder %s4171, 1
        %s4173 = scalar_select %p4172, %s4171, 1
        %s4174 = scalar_lea.vmem %s3, %s4173
      $region52: #{discriminator_block_forward.2} parent=43 // pred_fallthru
        _
      // Predicated region
      $region53: #{discriminator_block_forward.2} parent=43 // pred_check
        %p4175 = pneg %p159
      $region54: #{discriminator_block_forward.2} parent=43 // pred_check_branch
        %4177 = sbr.rel (%p4175) target = $region56
      $region55: #{discriminator_block_forward.2} parent=43 // pred_region
        %s4178 = sadd.s32 %s22, %s23
        %p4179 = scmp.lt.s32.totalorder %s4178, 1
        %s4180 = scalar_select %p4179, %s4178, 1
        %s4181 = scalar_lea.vmem %s4, %s4180
      $region56: #{discriminator_block_forward.2} parent=43 // pred_fallthru
        _
    $region44: #{discriminator_block_forward.2} parent=5 // pred_fallthru
      _
  $region6: #{discriminator_block_forward.2} parent=0 // loop_footer
    %s15 = sadd.s32 1, %s11
  $region7: #{discriminator_block_forward.2} parent=0 // loop_footer_branch
    %10 = sbr.rel target = $region3
  $region8: #{discriminator_block_forward.2} parent=0 // loop_exit
    _

</llo_original>
